<compile_context>
chip_gen: v7x
topology: tpu7x:2x2x1
jax: 0.10.0
libtpu: 0.0.40
codegen_flags: <defaults>
</compile_context>

<pallas_src>
import functools

import jax
import jax.numpy as jnp
import numpy as np
from jax import lax
from jax.experimental import pallas as pl
from jax.experimental.pallas import tpu as pltpu


# ----------------------------- Pallas kernel ------------------------------- #
def _lstm_fc_kernel(x_ref,      # (T*B, D)            f32  time-major rows (row = t*B + b)
                    w_ih0_ref,  # (D, 4H)             bf16 layer-0 input weights^T (i/f/o cols *0.5)
                    w_ihr_ref,  # (max(L-1,1), H, 4H) bf16 layers 1..L-1 input weights^T (scaled)
                    w_hh_ref,   # (L, H, 4H)          bf16 recurrent weights^T (scaled)
                    b_ref,      # (L, 1, 4H)          f32  b_ih + b_hh (i/f/o cols *0.5)
                    fc_w_ref,   # (H, 2)              f32
                    fc_b_ref,   # (1, 2)              f32
                    out_ref,    # (B, 2)              f32
                    *, seq_len, batch):
    T, B = seq_len, batch
    L, H, fourH = w_hh_ref.shape

    # Hoisted per-column constants for the sigmoid-via-tanh fixup:
    #   act = tanh(gates_scaled) * scale + shift
    # g columns (tanh): scale=1, shift=0 ; i/f/o columns (sigmoid): 0.5 / 0.5.
    col = lax.broadcasted_iota(jnp.int32, (B, fourH), 1)
    g_mask = (col >= 2 * H) & (col < 3 * H)
    act_scale = jnp.where(g_mask, 1.0, 0.5).astype(jnp.float32)
    act_shift = jnp.where(g_mask, 0.0, 0.5).astype(jnp.float32)

    # Hoist all weight / bias loads out of the wavefront loops.
    w_hh = [w_hh_ref[l] for l in range(L)]            # each (H, 4H) bf16
    w_ihr = [w_ihr_ref[l] for l in range(L - 1)]      # each (H, 4H) bf16
    bias = [b_ref[l] for l in range(L)]               # each (1, 4H) f32

    # Layer-0 input projection for the whole sequence: one bf16 MXU GEMM with
    # f32 accumulation (independent of the recurrent chain).
    pre0 = jnp.dot(x_ref[...].astype(jnp.bfloat16), w_ih0_ref[...],
                   preferred_element_type=jnp.float32) + bias[0]   # (T*B, 4H)

    def cell(pre, h_prev_bf, c_prev, w_hh_l):
        # `pre` already holds input projection + bias (i/f/o columns scaled).
        gates = pre + jnp.dot(h_prev_bf, w_hh_l,
                              preferred_element_type=jnp.float32)   # (B, 4H)
        t_act = jnp.tanh(gates)                  # single full-width EUP pass
        act = t_act * act_scale + act_shift      # sigmoid on i/f/o, tanh on g
        i_g = act[:, 0 * H:1 * H]
        f_g = act[:, 1 * H:2 * H]
        g_g = act[:, 2 * H:3 * H]
        o_g = act[:, 3 * H:4 * H]
        c_new = f_g * c_prev + i_g * g_g
        h_new = o_g * jnp.tanh(c_new)
        return h_new, c_new

    # Per-layer recurrent state (traced values; no scratch refs).
    h_f32 = [jnp.zeros((B, H), jnp.float32) for _ in range(L)]
    h_bf = [jnp.zeros((B, H), jnp.bfloat16) for _ in range(L)]
    c = [jnp.zeros((B, H), jnp.float32) for _ in range(L)]
    # pend[l] = input projection (+bias) for layer l's next step, produced by
    # layer l-1 in the previous wave.
    pend = [None] * L

    # Wavefront schedule: wave w runs (l, t=w-l) for every valid layer; steps
    # within a wave are independent, so the serial chain length is T + L - 1.
    # Layers are visited in DESCENDING order inside a wave so that pend[l+1]
    # written by layer l this wave is only consumed in the next wave.
    for w in range(T + L - 1):
        for l in range(min(L - 1, w), -1, -1):
            t = w - l
            if t < 0 or t >= T:
                continue
            if l == 0:
                row = t * B                       # static, sublane-aligned
                pre = pre0[row:row + B, :]
            else:
                pre = pend[l]
            h_new, c_new = cell(pre, h_bf[l], c[l], w_hh[l])
            h_f32[l] = h_new
            c[l] = c_new
            h_new_bf = h_new.astype(jnp.bfloat16)
            h_bf[l] = h_new_bf
            if l + 1 < L:
                # Layer l+1's step-t input projection, issued as soon as h_t
                # exists (it is off that layer's recurrent chain).
                pend[l + 1] = jnp.dot(h_new_bf, w_ihr[l],
                                      preferred_element_type=jnp.float32) + bias[l + 1]

    # fc(h_n[-1])
    out_ref[...] = (jnp.dot(h_f32[L - 1], fc_w_ref[...],
                            preferred_element_type=jnp.float32) + fc_b_ref[...])


# ------------------------------- Wrappers ----------------------------------- #
def pack_params(params, compute_dtype=jnp.bfloat16):
    """One-time weight packing / transposition / gate-column pre-scaling.

    Call OUTSIDE the jitted forward.  The i/f/o gate columns of W_ih, W_hh and
    of the combined bias are pre-scaled by 0.5 so the kernel evaluates all
    four gates with a single tanh pass (sigmoid(x) = 0.5*(1 + tanh(x/2))).
    The 0.5 scale is a power of two, hence exact and it commutes with the
    bf16 cast.
    """
    L, fourH, H = params["w_hh"].shape
    col_scale = np.ones((fourH,), np.float32)
    col_scale[0:2 * H] = 0.5       # i, f gates
    col_scale[3 * H:4 * H] = 0.5   # o gate
    col_scale = jnp.asarray(col_scale)

    w_ih0_t = (jnp.transpose(params["w_ih0"], (1, 0)) * col_scale).astype(compute_dtype)
    if L > 1:
        w_ihr_t = (jnp.transpose(params["w_ih_rest"], (0, 2, 1))
                   * col_scale).astype(compute_dtype)
    else:
        # Dummy (never read) so Mosaic never sees a zero-sized VMEM operand.
        w_ihr_t = jnp.zeros((1, H, fourH), compute_dtype)
    w_hh_t = (jnp.transpose(params["w_hh"], (0, 2, 1)) * col_scale).astype(compute_dtype)
    b = ((params["b_ih"] + params["b_hh"]) * col_scale)[:, None, :].astype(jnp.float32)
    fc_w_t = jnp.transpose(params["fc_w"], (1, 0)).astype(jnp.float32)     # (H, 2)
    fc_b = params["fc_b"][None, :].astype(jnp.float32)                     # (1, 2)
    return {"w_ih0": w_ih0_t, "w_ihr": w_ihr_t, "w_hh": w_hh_t,
            "b": b, "fc_w": fc_w_t, "fc_b": fc_b}


def lstm_conditioning_forward(x, packed):
    """x: (B, T, D) float32 (batch_first). Returns (mu, sigma_param), each (B, 1)."""
    B, T, D = x.shape
    L, H, fourH = packed["w_hh"].shape

    # Time-major 2-D layout: row index = t*B + b.
    x_2d = jnp.transpose(x, (1, 0, 2)).reshape(T * B, D)

    kernel = functools.partial(_lstm_fc_kernel, seq_len=T, batch=B)
    out = pl.pallas_call(
        kernel,
        out_shape=jax.ShapeDtypeStruct((B, 2), jnp.float32),
        in_specs=[pl.BlockSpec(memory_space=pltpu.MemorySpace.VMEM)] * 7,
        out_specs=pl.BlockSpec(memory_space=pltpu.MemorySpace.VMEM),
    )(x_2d, packed["w_ih0"], packed["w_ihr"], packed["w_hh"],
      packed["b"], packed["fc_w"], packed["fc_b"])

    # torch: params.chunk(2, dim=-1)
    return out[:, 0:1], out[:, 1:2]


# --------------------------- Pure-JAX reference ------------------------------ #
def lstm_conditioning_ref(x, params):
    B, T, D = x.shape
    L, fourH, H = params["w_hh"].shape
    layer_in = x
    h = jnp.zeros((B, H), jnp.float32)
    for l in range(L):
        w_ih = params["w_ih0"] if l == 0 else params["w_ih_rest"][l - 1]
        w_hh = params["w_hh"][l]
        b = params["b_ih"][l] + params["b_hh"][l]
        h = jnp.zeros((B, H), jnp.float32)
        c = jnp.zeros((B, H), jnp.float32)
        outs = []
        for t in range(T):
            gates = layer_in[:, t, :] @ w_ih.T + h @ w_hh.T + b
            i = jax.nn.sigmoid(gates[:, 0 * H:1 * H])
            f = jax.nn.sigmoid(gates[:, 1 * H:2 * H])
            g = jnp.tanh(gates[:, 2 * H:3 * H])
            o = jax.nn.sigmoid(gates[:, 3 * H:4 * H])
            c = f * c + i * g
            h = o * jnp.tanh(c)
            outs.append(h)
        layer_in = jnp.stack(outs, axis=1)
    out = h @ params["fc_w"].T + params["fc_b"]
    return out[:, 0:1], out[:, 1:2]


# ------------------------------ Param init ----------------------------------- #
def init_params(key, input_dim, hidden_dim, lstm_layers):
    """PyTorch-style uniform(-1/sqrt(H), 1/sqrt(H)) initialization."""
    H, D, L = hidden_dim, input_dim, lstm_layers
    k = 1.0 / np.sqrt(H)
    keys = jax.random.split(key, 7)
    u = lambda kk, shape: jax.random.uniform(kk, shape, jnp.float32, -k, k)
    return {
        "w_ih0": u(keys[0], (4 * H, D)),
        "w_ih_rest": u(keys[1], (max(L - 1, 0), 4 * H, H)),
        "w_hh": u(keys[2], (L, 4 * H, H)),
        "b_ih": u(keys[3], (L, 4 * H)),
        "b_hh": u(keys[4], (L, 4 * H)),
        "fc_w": u(keys[5], (2, H)),
        "fc_b": u(keys[6], (2,)),
    }


# --------------------------------- Main --------------------------------------- #
if __name__ == "__main__":
    # Small shapes consistent with the module's forward (batch_first LSTM ->
    # fc -> chunk(2)).  B=8 keeps per-step row blocks sublane-aligned; H=32
    # makes 4H exactly one vreg lane width; L=3 exercises the layer wavefront.
    B, T, D, H, L = 8, 8, 16, 32, 3

    key = jax.random.PRNGKey(0)
    kx, kp = jax.random.split(key)
    x = jax.random.normal(kx, (B, T, D), jnp.float32)
    params = init_params(kp, D, H, L)

    packed = pack_params(params)          # one-time packing, outside jit
    fwd = jax.jit(lstm_conditioning_forward)
    mu, sig = fwd(x, packed)
    jax.block_until_ready((mu, sig))

    mu_ref, sig_ref = lstm_conditioning_ref(x, params)
    assert mu.shape == (B, 1) and sig.shape == (B, 1)
    # Tolerances loosened (3e-2) because the kernel uses bf16 MXU operands for
    # the recurrent / inter-layer matmuls (f32 accumulation); reference is f32.
    np.testing.assert_allclose(np.asarray(mu), np.asarray(mu_ref), rtol=3e-2, atol=3e-2)
    np.testing.assert_allclose(np.asarray(sig), np.asarray(sig_ref), rtol=3e-2, atol=3e-2)

    print("KERNEL_OK")
</pallas_src>

<mosaic_0001>
module attributes {stable_mosaic.version = 11 : i64} {
  func.func @_lstm_fc_kernel(%arg0: memref<64x16xf32, #tpu.memory_space<vmem>>, %arg1: memref<16x128xbf16, #tpu.memory_space<vmem>>, %arg2: memref<2x32x128xbf16, #tpu.memory_space<vmem>>, %arg3: memref<3x32x128xbf16, #tpu.memory_space<vmem>>, %arg4: memref<3x1x128xf32, #tpu.memory_space<vmem>>, %arg5: memref<32x2xf32, #tpu.memory_space<vmem>>, %arg6: memref<1x2xf32, #tpu.memory_space<vmem>>, %arg7: memref<8x2xf32, #tpu.memory_space<vmem>>) attributes {dimension_semantics = [], scalar_prefetch = 0 : i64, scratch_operands = 0 : i64, tpu.core_type = #tpu.core_type<tc>} {
    %0 = tpu.iota {dimensions = array<i32: 1>} : vector<8x128xi32>
    %c64_i32 = arith.constant 64 : i32
    %1 = vector.broadcast %c64_i32 : i32 to vector<8x128xi32>
    %2 = arith.cmpi sge, %0, %1 : vector<8x128xi32>
    %c96_i32 = arith.constant 96 : i32
    %3 = vector.broadcast %c96_i32 : i32 to vector<8x128xi32>
    %4 = arith.cmpi slt, %0, %3 : vector<8x128xi32>
    %5 = arith.andi %2, %4 : vector<8x128xi1>
    %cst = arith.constant 1.000000e+00 : f32
    %cst_0 = arith.constant 5.000000e-01 : f32
    %6 = vector.broadcast %cst : f32 to vector<8x128xf32>
    %7 = vector.broadcast %cst_0 : f32 to vector<8x128xf32>
    %8 = arith.select %5, %6, %7 : vector<8x128xi1>, vector<8x128xf32>
    %cst_1 = arith.constant 0.000000e+00 : f32
    %cst_2 = arith.constant 5.000000e-01 : f32
    %9 = vector.broadcast %cst_1 : f32 to vector<8x128xf32>
    %10 = vector.broadcast %cst_2 : f32 to vector<8x128xf32>
    %11 = arith.select %5, %9, %10 : vector<8x128xi1>, vector<8x128xf32>
    %c0 = arith.constant 0 : index
    %c0_3 = arith.constant 0 : index
    %c0_4 = arith.constant 0 : index
    %12 = vector.load %arg3[%c0, %c0_3, %c0_4] : memref<3x32x128xbf16, #tpu.memory_space<vmem>>, vector<1x32x128xbf16>
    %13 = vector.shape_cast %12 : vector<1x32x128xbf16> to vector<32x128xbf16>
    %c1 = arith.constant 1 : index
    %c0_5 = arith.constant 0 : index
    %c0_6 = arith.constant 0 : index
    %14 = vector.load %arg3[%c1, %c0_5, %c0_6] : memref<3x32x128xbf16, #tpu.memory_space<vmem>>, vector<1x32x128xbf16>
    %15 = vector.shape_cast %14 : vector<1x32x128xbf16> to vector<32x128xbf16>
    %c2 = arith.constant 2 : index
    %c0_7 = arith.constant 0 : index
    %c0_8 = arith.constant 0 : index
    %16 = vector.load %arg3[%c2, %c0_7, %c0_8] : memref<3x32x128xbf16, #tpu.memory_space<vmem>>, vector<1x32x128xbf16>
    %17 = vector.shape_cast %16 : vector<1x32x128xbf16> to vector<32x128xbf16>
    %c0_9 = arith.constant 0 : index
    %c0_10 = arith.constant 0 : index
    %c0_11 = arith.constant 0 : index
    %18 = vector.load %arg2[%c0_9, %c0_10, %c0_11] : memref<2x32x128xbf16, #tpu.memory_space<vmem>>, vector<1x32x128xbf16>
    %19 = vector.shape_cast %18 : vector<1x32x128xbf16> to vector<32x128xbf16>
    %c1_12 = arith.constant 1 : index
    %c0_13 = arith.constant 0 : index
    %c0_14 = arith.constant 0 : index
    %20 = vector.load %arg2[%c1_12, %c0_13, %c0_14] : memref<2x32x128xbf16, #tpu.memory_space<vmem>>, vector<1x32x128xbf16>
    %21 = vector.shape_cast %20 : vector<1x32x128xbf16> to vector<32x128xbf16>
    %c0_15 = arith.constant 0 : index
    %c0_16 = arith.constant 0 : index
    %c0_17 = arith.constant 0 : index
    %22 = vector.load %arg4[%c0_15, %c0_16, %c0_17] : memref<3x1x128xf32, #tpu.memory_space<vmem>>, vector<1x1x128xf32>
    %23 = vector.shape_cast %22 : vector<1x1x128xf32> to vector<1x128xf32>
    %c1_18 = arith.constant 1 : index
    %c0_19 = arith.constant 0 : index
    %c0_20 = arith.constant 0 : index
    %24 = vector.load %arg4[%c1_18, %c0_19, %c0_20] : memref<3x1x128xf32, #tpu.memory_space<vmem>>, vector<1x1x128xf32>
    %25 = vector.shape_cast %24 : vector<1x1x128xf32> to vector<1x128xf32>
    %c2_21 = arith.constant 2 : index
    %c0_22 = arith.constant 0 : index
    %c0_23 = arith.constant 0 : index
    %26 = vector.load %arg4[%c2_21, %c0_22, %c0_23] : memref<3x1x128xf32, #tpu.memory_space<vmem>>, vector<1x1x128xf32>
    %27 = vector.shape_cast %26 : vector<1x1x128xf32> to vector<1x128xf32>
    %c0_24 = arith.constant 0 : index
    %c0_25 = arith.constant 0 : index
    %28 = vector.load %arg0[%c0_24, %c0_25] : memref<64x16xf32, #tpu.memory_space<vmem>>, vector<64x16xf32>
    %29 = arith.truncf %28 : vector<64x16xf32> to vector<64x16xbf16>
    %c0_26 = arith.constant 0 : index
    %c0_27 = arith.constant 0 : index
    %30 = vector.load %arg1[%c0_26, %c0_27] : memref<16x128xbf16, #tpu.memory_space<vmem>>, vector<16x128xbf16>
    %cst_28 = arith.constant dense<0.000000e+00> : vector<64x128xf32>
    %31 = tpu.matmul %29, %30, %cst_28 {dimension_numbers = #tpu.dot_dimension_numbers<[1], [0], [0], [1], [0, 0, 1, 1], [], []>} : vector<64x16xbf16>, vector<16x128xbf16>, vector<64x128xf32> -> vector<64x128xf32>
    %32 = vector.broadcast %23 : vector<1x128xf32> to vector<64x128xf32>
    %33 = arith.addf %31, %32 : vector<64x128xf32>
    %cst_29 = arith.constant 0.000000e+00 : bf16
    %34 = vector.broadcast %cst_29 : bf16 to vector<8x32xbf16>
    %cst_30 = arith.constant 0.000000e+00 : bf16
    %35 = vector.broadcast %cst_30 : bf16 to vector<8x32xbf16>
    %cst_31 = arith.constant 0.000000e+00 : bf16
    %36 = vector.broadcast %cst_31 : bf16 to vector<8x32xbf16>
    %cst_32 = arith.constant 0.000000e+00 : f32
    %37 = vector.broadcast %cst_32 : f32 to vector<8x32xf32>
    %cst_33 = arith.constant 0.000000e+00 : f32
    %38 = vector.broadcast %cst_33 : f32 to vector<8x32xf32>
    %cst_34 = arith.constant 0.000000e+00 : f32
    %39 = vector.broadcast %cst_34 : f32 to vector<8x32xf32>
    %40 = vector.extract_strided_slice %33 {offsets = [0, 0], sizes = [8, 128], strides = [1, 1]} : vector<64x128xf32> to vector<8x128xf32>
    %cst_35 = arith.constant dense<0.000000e+00> : vector<8x128xf32>
    %41 = tpu.matmul %34, %13, %cst_35 {dimension_numbers = #tpu.dot_dimension_numbers<[1], [0], [0], [1], [0, 0, 1, 1], [], []>} : vector<8x32xbf16>, vector<32x128xbf16>, vector<8x128xf32> -> vector<8x128xf32>
    %42 = arith.addf %40, %41 : vector<8x128xf32>
    %43 = math.tanh %42 : vector<8x128xf32>
    %44 = arith.mulf %43, %8 : vector<8x128xf32>
    %45 = arith.addf %44, %11 : vector<8x128xf32>
    %46 = vector.extract_strided_slice %45 {offsets = [0, 0], sizes = [8, 32], strides = [1, 1]} : vector<8x128xf32> to vector<8x32xf32>
    %47 = vector.extract_strided_slice %45 {offsets = [0, 32], sizes = [8, 32], strides = [1, 1]} : vector<8x128xf32> to vector<8x32xf32>
    %48 = vector.extract_strided_slice %45 {offsets = [0, 64], sizes = [8, 32], strides = [1, 1]} : vector<8x128xf32> to vector<8x32xf32>
    %49 = vector.extract_strided_slice %45 {offsets = [0, 96], sizes = [8, 32], strides = [1, 1]} : vector<8x128xf32> to vector<8x32xf32>
    %50 = arith.mulf %47, %37 : vector<8x32xf32>
    %51 = arith.mulf %46, %48 : vector<8x32xf32>
    %52 = arith.addf %50, %51 : vector<8x32xf32>
    %53 = math.tanh %52 : vector<8x32xf32>
    %54 = arith.mulf %49, %53 : vector<8x32xf32>
    %55 = arith.truncf %54 : vector<8x32xf32> to vector<8x32xbf16>
    %cst_36 = arith.constant dense<0.000000e+00> : vector<8x128xf32>
    %56 = tpu.matmul %55, %19, %cst_36 {dimension_numbers = #tpu.dot_dimension_numbers<[1], [0], [0], [1], [0, 0, 1, 1], [], []>} : vector<8x32xbf16>, vector<32x128xbf16>, vector<8x128xf32> -> vector<8x128xf32>
    %57 = vector.broadcast %25 : vector<1x128xf32> to vector<8x128xf32>
    %58 = arith.addf %56, %57 : vector<8x128xf32>
    %cst_37 = arith.constant dense<0.000000e+00> : vector<8x128xf32>
    %59 = tpu.matmul %35, %15, %cst_37 {dimension_numbers = #tpu.dot_dimension_numbers<[1], [0], [0], [1], [0, 0, 1, 1], [], []>} : vector<8x32xbf16>, vector<32x128xbf16>, vector<8x128xf32> -> vector<8x128xf32>
    %60 = arith.addf %58, %59 : vector<8x128xf32>
    %61 = math.tanh %60 : vector<8x128xf32>
    %62 = arith.mulf %61, %8 : vector<8x128xf32>
    %63 = arith.addf %62, %11 : vector<8x128xf32>
    %64 = vector.extract_strided_slice %63 {offsets = [0, 0], sizes = [8, 32], strides = [1, 1]} : vector<8x128xf32> to vector<8x32xf32>
    %65 = vector.extract_strided_slice %63 {offsets = [0, 32], sizes = [8, 32], strides = [1, 1]} : vector<8x128xf32> to vector<8x32xf32>
    %66 = vector.extract_strided_slice %63 {offsets = [0, 64], sizes = [8, 32], strides = [1, 1]} : vector<8x128xf32> to vector<8x32xf32>
    %67 = vector.extract_strided_slice %63 {offsets = [0, 96], sizes = [8, 32], strides = [1, 1]} : vector<8x128xf32> to vector<8x32xf32>
    %68 = arith.mulf %65, %38 : vector<8x32xf32>
    %69 = arith.mulf %64, %66 : vector<8x32xf32>
    %70 = arith.addf %68, %69 : vector<8x32xf32>
    %71 = math.tanh %70 : vector<8x32xf32>
    %72 = arith.mulf %67, %71 : vector<8x32xf32>
    %73 = arith.truncf %72 : vector<8x32xf32> to vector<8x32xbf16>
    %cst_38 = arith.constant dense<0.000000e+00> : vector<8x128xf32>
    %74 = tpu.matmul %73, %21, %cst_38 {dimension_numbers = #tpu.dot_dimension_numbers<[1], [0], [0], [1], [0, 0, 1, 1], [], []>} : vector<8x32xbf16>, vector<32x128xbf16>, vector<8x128xf32> -> vector<8x128xf32>
    %75 = vector.broadcast %27 : vector<1x128xf32> to vector<8x128xf32>
    %76 = arith.addf %74, %75 : vector<8x128xf32>
    %77 = vector.extract_strided_slice %33 {offsets = [8, 0], sizes = [8, 128], strides = [1, 1]} : vector<64x128xf32> to vector<8x128xf32>
    %cst_39 = arith.constant dense<0.000000e+00> : vector<8x128xf32>
    %78 = tpu.matmul %55, %13, %cst_39 {dimension_numbers = #tpu.dot_dimension_numbers<[1], [0], [0], [1], [0, 0, 1, 1], [], []>} : vector<8x32xbf16>, vector<32x128xbf16>, vector<8x128xf32> -> vector<8x128xf32>
    %79 = arith.addf %77, %78 : vector<8x128xf32>
    %80 = math.tanh %79 : vector<8x128xf32>
    %81 = arith.mulf %80, %8 : vector<8x128xf32>
    %82 = arith.addf %81, %11 : vector<8x128xf32>
    %83 = vector.extract_strided_slice %82 {offsets = [0, 0], sizes = [8, 32], strides = [1, 1]} : vector<8x128xf32> to vector<8x32xf32>
    %84 = vector.extract_strided_slice %82 {offsets = [0, 32], sizes = [8, 32], strides = [1, 1]} : vector<8x128xf32> to vector<8x32xf32>
    %85 = vector.extract_strided_slice %82 {offsets = [0, 64], sizes = [8, 32], strides = [1, 1]} : vector<8x128xf32> to vector<8x32xf32>
    %86 = vector.extract_strided_slice %82 {offsets = [0, 96], sizes = [8, 32], strides = [1, 1]} : vector<8x128xf32> to vector<8x32xf32>
    %87 = arith.mulf %84, %52 : vector<8x32xf32>
    %88 = arith.mulf %83, %85 : vector<8x32xf32>
    %89 = arith.addf %87, %88 : vector<8x32xf32>
    %90 = math.tanh %89 : vector<8x32xf32>
    %91 = arith.mulf %86, %90 : vector<8x32xf32>
    %92 = arith.truncf %91 : vector<8x32xf32> to vector<8x32xbf16>
    %cst_40 = arith.constant dense<0.000000e+00> : vector<8x128xf32>
    %93 = tpu.matmul %92, %19, %cst_40 {dimension_numbers = #tpu.dot_dimension_numbers<[1], [0], [0], [1], [0, 0, 1, 1], [], []>} : vector<8x32xbf16>, vector<32x128xbf16>, vector<8x128xf32> -> vector<8x128xf32>
    %94 = vector.broadcast %25 : vector<1x128xf32> to vector<8x128xf32>
    %95 = arith.addf %93, %94 : vector<8x128xf32>
    %cst_41 = arith.constant dense<0.000000e+00> : vector<8x128xf32>
    %96 = tpu.matmul %36, %17, %cst_41 {dimension_numbers = #tpu.dot_dimension_numbers<[1], [0], [0], [1], [0, 0, 1, 1], [], []>} : vector<8x32xbf16>, vector<32x128xbf16>, vector<8x128xf32> -> vector<8x128xf32>
    %97 = arith.addf %76, %96 : vector<8x128xf32>
    %98 = math.tanh %97 : vector<8x128xf32>
    %99 = arith.mulf %98, %8 : vector<8x128xf32>
    %100 = arith.addf %99, %11 : vector<8x128xf32>
    %101 = vector.extract_strided_slice %100 {offsets = [0, 0], sizes = [8, 32], strides = [1, 1]} : vector<8x128xf32> to vector<8x32xf32>
    %102 = vector.extract_strided_slice %100 {offsets = [0, 32], sizes = [8, 32], strides = [1, 1]} : vector<8x128xf32> to vector<8x32xf32>
    %103 = vector.extract_strided_slice %100 {offsets = [0, 64], sizes = [8, 32], strides = [1, 1]} : vector<8x128xf32> to vector<8x32xf32>
    %104 = vector.extract_strided_slice %100 {offsets = [0, 96], sizes = [8, 32], strides = [1, 1]} : vector<8x128xf32> to vector<8x32xf32>
    %105 = arith.mulf %102, %39 : vector<8x32xf32>
    %106 = arith.mulf %101, %103 : vector<8x32xf32>
    %107 = arith.addf %105, %106 : vector<8x32xf32>
    %108 = math.tanh %107 : vector<8x32xf32>
    %109 = arith.mulf %104, %108 : vector<8x32xf32>
    %110 = arith.truncf %109 : vector<8x32xf32> to vector<8x32xbf16>
    %cst_42 = arith.constant dense<0.000000e+00> : vector<8x128xf32>
    %111 = tpu.matmul %73, %15, %cst_42 {dimension_numbers = #tpu.dot_dimension_numbers<[1], [0], [0], [1], [0, 0, 1, 1], [], []>} : vector<8x32xbf16>, vector<32x128xbf16>, vector<8x128xf32> -> vector<8x128xf32>
    %112 = arith.addf %95, %111 : vector<8x128xf32>
    %113 = math.tanh %112 : vector<8x128xf32>
    %114 = arith.mulf %113, %8 : vector<8x128xf32>
    %115 = arith.addf %114, %11 : vector<8x128xf32>
    %116 = vector.extract_strided_slice %115 {offsets = [0, 0], sizes = [8, 32], strides = [1, 1]} : vector<8x128xf32> to vector<8x32xf32>
    %117 = vector.extract_strided_slice %115 {offsets = [0, 32], sizes = [8, 32], strides = [1, 1]} : vector<8x128xf32> to vector<8x32xf32>
    %118 = vector.extract_strided_slice %115 {offsets = [0, 64], sizes = [8, 32], strides = [1, 1]} : vector<8x128xf32> to vector<8x32xf32>
    %119 = vector.extract_strided_slice %115 {offsets = [0, 96], sizes = [8, 32], strides = [1, 1]} : vector<8x128xf32> to vector<8x32xf32>
    %120 = arith.mulf %117, %70 : vector<8x32xf32>
    %121 = arith.mulf %116, %118 : vector<8x32xf32>
    %122 = arith.addf %120, %121 : vector<8x32xf32>
    %123 = math.tanh %122 : vector<8x32xf32>
    %124 = arith.mulf %119, %123 : vector<8x32xf32>
    %125 = arith.truncf %124 : vector<8x32xf32> to vector<8x32xbf16>
    %cst_43 = arith.constant dense<0.000000e+00> : vector<8x128xf32>
    %126 = tpu.matmul %125, %21, %cst_43 {dimension_numbers = #tpu.dot_dimension_numbers<[1], [0], [0], [1], [0, 0, 1, 1], [], []>} : vector<8x32xbf16>, vector<32x128xbf16>, vector<8x128xf32> -> vector<8x128xf32>
    %127 = vector.broadcast %27 : vector<1x128xf32> to vector<8x128xf32>
    %128 = arith.addf %126, %127 : vector<8x128xf32>
    %129 = vector.extract_strided_slice %33 {offsets = [16, 0], sizes = [8, 128], strides = [1, 1]} : vector<64x128xf32> to vector<8x128xf32>
    %cst_44 = arith.constant dense<0.000000e+00> : vector<8x128xf32>
    %130 = tpu.matmul %92, %13, %cst_44 {dimension_numbers = #tpu.dot_dimension_numbers<[1], [0], [0], [1], [0, 0, 1, 1], [], []>} : vector<8x32xbf16>, vector<32x128xbf16>, vector<8x128xf32> -> vector<8x128xf32>
    %131 = arith.addf %129, %130 : vector<8x128xf32>
    %132 = math.tanh %131 : vector<8x128xf32>
    %133 = arith.mulf %132, %8 : vector<8x128xf32>
    %134 = arith.addf %133, %11 : vector<8x128xf32>
    %135 = vector.extract_strided_slice %134 {offsets = [0, 0], sizes = [8, 32], strides = [1, 1]} : vector<8x128xf32> to vector<8x32xf32>
    %136 = vector.extract_strided_slice %134 {offsets = [0, 32], sizes = [8, 32], strides = [1, 1]} : vector<8x128xf32> to vector<8x32xf32>
    %137 = vector.extract_strided_slice %134 {offsets = [0, 64], sizes = [8, 32], strides = [1, 1]} : vector<8x128xf32> to vector<8x32xf32>
    %138 = vector.extract_strided_slice %134 {offsets = [0, 96], sizes = [8, 32], strides = [1, 1]} : vector<8x128xf32> to vector<8x32xf32>
    %139 = arith.mulf %136, %89 : vector<8x32xf32>
    %140 = arith.mulf %135, %137 : vector<8x32xf32>
    %141 = arith.addf %139, %140 : vector<8x32xf32>
    %142 = math.tanh %141 : vector<8x32xf32>
    %143 = arith.mulf %138, %142 : vector<8x32xf32>
    %144 = arith.truncf %143 : vector<8x32xf32> to vector<8x32xbf16>
    %cst_45 = arith.constant dense<0.000000e+00> : vector<8x128xf32>
    %145 = tpu.matmul %144, %19, %cst_45 {dimension_numbers = #tpu.dot_dimension_numbers<[1], [0], [0], [1], [0, 0, 1, 1], [], []>} : vector<8x32xbf16>, vector<32x128xbf16>, vector<8x128xf32> -> vector<8x128xf32>
    %146 = vector.broadcast %25 : vector<1x128xf32> to vector<8x128xf32>
    %147 = arith.addf %145, %146 : vector<8x128xf32>
    %cst_46 = arith.constant dense<0.000000e+00> : vector<8x128xf32>
    %148 = tpu.matmul %110, %17, %cst_46 {dimension_numbers = #tpu.dot_dimension_numbers<[1], [0], [0], [1], [0, 0, 1, 1], [], []>} : vector<8x32xbf16>, vector<32x128xbf16>, vector<8x128xf32> -> vector<8x128xf32>
    %149 = arith.addf %128, %148 : vector<8x128xf32>
    %150 = math.tanh %149 : vector<8x128xf32>
    %151 = arith.mulf %150, %8 : vector<8x128xf32>
    %152 = arith.addf %151, %11 : vector<8x128xf32>
    %153 = vector.extract_strided_slice %152 {offsets = [0, 0], sizes = [8, 32], strides = [1, 1]} : vector<8x128xf32> to vector<8x32xf32>
    %154 = vector.extract_strided_slice %152 {offsets = [0, 32], sizes = [8, 32], strides = [1, 1]} : vector<8x128xf32> to vector<8x32xf32>
    %155 = vector.extract_strided_slice %152 {offsets = [0, 64], sizes = [8, 32], strides = [1, 1]} : vector<8x128xf32> to vector<8x32xf32>
    %156 = vector.extract_strided_slice %152 {offsets = [0, 96], sizes = [8, 32], strides = [1, 1]} : vector<8x128xf32> to vector<8x32xf32>
    %157 = arith.mulf %154, %107 : vector<8x32xf32>
    %158 = arith.mulf %153, %155 : vector<8x32xf32>
    %159 = arith.addf %157, %158 : vector<8x32xf32>
    %160 = math.tanh %159 : vector<8x32xf32>
    %161 = arith.mulf %156, %160 : vector<8x32xf32>
    %162 = arith.truncf %161 : vector<8x32xf32> to vector<8x32xbf16>
    %cst_47 = arith.constant dense<0.000000e+00> : vector<8x128xf32>
    %163 = tpu.matmul %125, %15, %cst_47 {dimension_numbers = #tpu.dot_dimension_numbers<[1], [0], [0], [1], [0, 0, 1, 1], [], []>} : vector<8x32xbf16>, vector<32x128xbf16>, vector<8x128xf32> -> vector<8x128xf32>
    %164 = arith.addf %147, %163 : vector<8x128xf32>
    %165 = math.tanh %164 : vector<8x128xf32>
    %166 = arith.mulf %165, %8 : vector<8x128xf32>
    %167 = arith.addf %166, %11 : vector<8x128xf32>
    %168 = vector.extract_strided_slice %167 {offsets = [0, 0], sizes = [8, 32], strides = [1, 1]} : vector<8x128xf32> to vector<8x32xf32>
    %169 = vector.extract_strided_slice %167 {offsets = [0, 32], sizes = [8, 32], strides = [1, 1]} : vector<8x128xf32> to vector<8x32xf32>
    %170 = vector.extract_strided_slice %167 {offsets = [0, 64], sizes = [8, 32], strides = [1, 1]} : vector<8x128xf32> to vector<8x32xf32>
    %171 = vector.extract_strided_slice %167 {offsets = [0, 96], sizes = [8, 32], strides = [1, 1]} : vector<8x128xf32> to vector<8x32xf32>
    %172 = arith.mulf %169, %122 : vector<8x32xf32>
    %173 = arith.mulf %168, %170 : vector<8x32xf32>
    %174 = arith.addf %172, %173 : vector<8x32xf32>
    %175 = math.tanh %174 : vector<8x32xf32>
    %176 = arith.mulf %171, %175 : vector<8x32xf32>
    %177 = arith.truncf %176 : vector<8x32xf32> to vector<8x32xbf16>
    %cst_48 = arith.constant dense<0.000000e+00> : vector<8x128xf32>
    %178 = tpu.matmul %177, %21, %cst_48 {dimension_numbers = #tpu.dot_dimension_numbers<[1], [0], [0], [1], [0, 0, 1, 1], [], []>} : vector<8x32xbf16>, vector<32x128xbf16>, vector<8x128xf32> -> vector<8x128xf32>
    %179 = vector.broadcast %27 : vector<1x128xf32> to vector<8x128xf32>
    %180 = arith.addf %178, %179 : vector<8x128xf32>
    %181 = vector.extract_strided_slice %33 {offsets = [24, 0], sizes = [8, 128], strides = [1, 1]} : vector<64x128xf32> to vector<8x128xf32>
    %cst_49 = arith.constant dense<0.000000e+00> : vector<8x128xf32>
    %182 = tpu.matmul %144, %13, %cst_49 {dimension_numbers = #tpu.dot_dimension_numbers<[1], [0], [0], [1], [0, 0, 1, 1], [], []>} : vector<8x32xbf16>, vector<32x128xbf16>, vector<8x128xf32> -> vector<8x128xf32>
    %183 = arith.addf %181, %182 : vector<8x128xf32>
    %184 = math.tanh %183 : vector<8x128xf32>
    %185 = arith.mulf %184, %8 : vector<8x128xf32>
    %186 = arith.addf %185, %11 : vector<8x128xf32>
    %187 = vector.extract_strided_slice %186 {offsets = [0, 0], sizes = [8, 32], strides = [1, 1]} : vector<8x128xf32> to vector<8x32xf32>
    %188 = vector.extract_strided_slice %186 {offsets = [0, 32], sizes = [8, 32], strides = [1, 1]} : vector<8x128xf32> to vector<8x32xf32>
    %189 = vector.extract_strided_slice %186 {offsets = [0, 64], sizes = [8, 32], strides = [1, 1]} : vector<8x128xf32> to vector<8x32xf32>
    %190 = vector.extract_strided_slice %186 {offsets = [0, 96], sizes = [8, 32], strides = [1, 1]} : vector<8x128xf32> to vector<8x32xf32>
    %191 = arith.mulf %188, %141 : vector<8x32xf32>
    %192 = arith.mulf %187, %189 : vector<8x32xf32>
    %193 = arith.addf %191, %192 : vector<8x32xf32>
    %194 = math.tanh %193 : vector<8x32xf32>
    %195 = arith.mulf %190, %194 : vector<8x32xf32>
    %196 = arith.truncf %195 : vector<8x32xf32> to vector<8x32xbf16>
    %cst_50 = arith.constant dense<0.000000e+00> : vector<8x128xf32>
    %197 = tpu.matmul %196, %19, %cst_50 {dimension_numbers = #tpu.dot_dimension_numbers<[1], [0], [0], [1], [0, 0, 1, 1], [], []>} : vector<8x32xbf16>, vector<32x128xbf16>, vector<8x128xf32> -> vector<8x128xf32>
    %198 = vector.broadcast %25 : vector<1x128xf32> to vector<8x128xf32>
    %199 = arith.addf %197, %198 : vector<8x128xf32>
    %cst_51 = arith.constant dense<0.000000e+00> : vector<8x128xf32>
    %200 = tpu.matmul %162, %17, %cst_51 {dimension_numbers = #tpu.dot_dimension_numbers<[1], [0], [0], [1], [0, 0, 1, 1], [], []>} : vector<8x32xbf16>, vector<32x128xbf16>, vector<8x128xf32> -> vector<8x128xf32>
    %201 = arith.addf %180, %200 : vector<8x128xf32>
    %202 = math.tanh %201 : vector<8x128xf32>
    %203 = arith.mulf %202, %8 : vector<8x128xf32>
    %204 = arith.addf %203, %11 : vector<8x128xf32>
    %205 = vector.extract_strided_slice %204 {offsets = [0, 0], sizes = [8, 32], strides = [1, 1]} : vector<8x128xf32> to vector<8x32xf32>
    %206 = vector.extract_strided_slice %204 {offsets = [0, 32], sizes = [8, 32], strides = [1, 1]} : vector<8x128xf32> to vector<8x32xf32>
    %207 = vector.extract_strided_slice %204 {offsets = [0, 64], sizes = [8, 32], strides = [1, 1]} : vector<8x128xf32> to vector<8x32xf32>
    %208 = vector.extract_strided_slice %204 {offsets = [0, 96], sizes = [8, 32], strides = [1, 1]} : vector<8x128xf32> to vector<8x32xf32>
    %209 = arith.mulf %206, %159 : vector<8x32xf32>
    %210 = arith.mulf %205, %207 : vector<8x32xf32>
    %211 = arith.addf %209, %210 : vector<8x32xf32>
    %212 = math.tanh %211 : vector<8x32xf32>
    %213 = arith.mulf %208, %212 : vector<8x32xf32>
    %214 = arith.truncf %213 : vector<8x32xf32> to vector<8x32xbf16>
    %cst_52 = arith.constant dense<0.000000e+00> : vector<8x128xf32>
    %215 = tpu.matmul %177, %15, %cst_52 {dimension_numbers = #tpu.dot_dimension_numbers<[1], [0], [0], [1], [0, 0, 1, 1], [], []>} : vector<8x32xbf16>, vector<32x128xbf16>, vector<8x128xf32> -> vector<8x128xf32>
    %216 = arith.addf %199, %215 : vector<8x128xf32>
    %217 = math.tanh %216 : vector<8x128xf32>
    %218 = arith.mulf %217, %8 : vector<8x128xf32>
    %219 = arith.addf %218, %11 : vector<8x128xf32>
    %220 = vector.extract_strided_slice %219 {offsets = [0, 0], sizes = [8, 32], strides = [1, 1]} : vector<8x128xf32> to vector<8x32xf32>
    %221 = vector.extract_strided_slice %219 {offsets = [0, 32], sizes = [8, 32], strides = [1, 1]} : vector<8x128xf32> to vector<8x32xf32>
    %222 = vector.extract_strided_slice %219 {offsets = [0, 64], sizes = [8, 32], strides = [1, 1]} : vector<8x128xf32> to vector<8x32xf32>
    %223 = vector.extract_strided_slice %219 {offsets = [0, 96], sizes = [8, 32], strides = [1, 1]} : vector<8x128xf32> to vector<8x32xf32>
    %224 = arith.mulf %221, %174 : vector<8x32xf32>
    %225 = arith.mulf %220, %222 : vector<8x32xf32>
    %226 = arith.addf %224, %225 : vector<8x32xf32>
    %227 = math.tanh %226 : vector<8x32xf32>
    %228 = arith.mulf %223, %227 : vector<8x32xf32>
    %229 = arith.truncf %228 : vector<8x32xf32> to vector<8x32xbf16>
    %cst_53 = arith.constant dense<0.000000e+00> : vector<8x128xf32>
    %230 = tpu.matmul %229, %21, %cst_53 {dimension_numbers = #tpu.dot_dimension_numbers<[1], [0], [0], [1], [0, 0, 1, 1], [], []>} : vector<8x32xbf16>, vector<32x128xbf16>, vector<8x128xf32> -> vector<8x128xf32>
    %231 = vector.broadcast %27 : vector<1x128xf32> to vector<8x128xf32>
    %232 = arith.addf %230, %231 : vector<8x128xf32>
    %233 = vector.extract_strided_slice %33 {offsets = [32, 0], sizes = [8, 128], strides = [1, 1]} : vector<64x128xf32> to vector<8x128xf32>
    %cst_54 = arith.constant dense<0.000000e+00> : vector<8x128xf32>
    %234 = tpu.matmul %196, %13, %cst_54 {dimension_numbers = #tpu.dot_dimension_numbers<[1], [0], [0], [1], [0, 0, 1, 1], [], []>} : vector<8x32xbf16>, vector<32x128xbf16>, vector<8x128xf32> -> vector<8x128xf32>
    %235 = arith.addf %233, %234 : vector<8x128xf32>
    %236 = math.tanh %235 : vector<8x128xf32>
    %237 = arith.mulf %236, %8 : vector<8x128xf32>
    %238 = arith.addf %237, %11 : vector<8x128xf32>
    %239 = vector.extract_strided_slice %238 {offsets = [0, 0], sizes = [8, 32], strides = [1, 1]} : vector<8x128xf32> to vector<8x32xf32>
    %240 = vector.extract_strided_slice %238 {offsets = [0, 32], sizes = [8, 32], strides = [1, 1]} : vector<8x128xf32> to vector<8x32xf32>
    %241 = vector.extract_strided_slice %238 {offsets = [0, 64], sizes = [8, 32], strides = [1, 1]} : vector<8x128xf32> to vector<8x32xf32>
    %242 = vector.extract_strided_slice %238 {offsets = [0, 96], sizes = [8, 32], strides = [1, 1]} : vector<8x128xf32> to vector<8x32xf32>
    %243 = arith.mulf %240, %193 : vector<8x32xf32>
    %244 = arith.mulf %239, %241 : vector<8x32xf32>
    %245 = arith.addf %243, %244 : vector<8x32xf32>
    %246 = math.tanh %245 : vector<8x32xf32>
    %247 = arith.mulf %242, %246 : vector<8x32xf32>
    %248 = arith.truncf %247 : vector<8x32xf32> to vector<8x32xbf16>
    %cst_55 = arith.constant dense<0.000000e+00> : vector<8x128xf32>
    %249 = tpu.matmul %248, %19, %cst_55 {dimension_numbers = #tpu.dot_dimension_numbers<[1], [0], [0], [1], [0, 0, 1, 1], [], []>} : vector<8x32xbf16>, vector<32x128xbf16>, vector<8x128xf32> -> vector<8x128xf32>
    %250 = vector.broadcast %25 : vector<1x128xf32> to vector<8x128xf32>
    %251 = arith.addf %249, %250 : vector<8x128xf32>
    %cst_56 = arith.constant dense<0.000000e+00> : vector<8x128xf32>
    %252 = tpu.matmul %214, %17, %cst_56 {dimension_numbers = #tpu.dot_dimension_numbers<[1], [0], [0], [1], [0, 0, 1, 1], [], []>} : vector<8x32xbf16>, vector<32x128xbf16>, vector<8x128xf32> -> vector<8x128xf32>
    %253 = arith.addf %232, %252 : vector<8x128xf32>
    %254 = math.tanh %253 : vector<8x128xf32>
    %255 = arith.mulf %254, %8 : vector<8x128xf32>
    %256 = arith.addf %255, %11 : vector<8x128xf32>
    %257 = vector.extract_strided_slice %256 {offsets = [0, 0], sizes = [8, 32], strides = [1, 1]} : vector<8x128xf32> to vector<8x32xf32>
    %258 = vector.extract_strided_slice %256 {offsets = [0, 32], sizes = [8, 32], strides = [1, 1]} : vector<8x128xf32> to vector<8x32xf32>
    %259 = vector.extract_strided_slice %256 {offsets = [0, 64], sizes = [8, 32], strides = [1, 1]} : vector<8x128xf32> to vector<8x32xf32>
    %260 = vector.extract_strided_slice %256 {offsets = [0, 96], sizes = [8, 32], strides = [1, 1]} : vector<8x128xf32> to vector<8x32xf32>
    %261 = arith.mulf %258, %211 : vector<8x32xf32>
    %262 = arith.mulf %257, %259 : vector<8x32xf32>
    %263 = arith.addf %261, %262 : vector<8x32xf32>
    %264 = math.tanh %263 : vector<8x32xf32>
    %265 = arith.mulf %260, %264 : vector<8x32xf32>
    %266 = arith.truncf %265 : vector<8x32xf32> to vector<8x32xbf16>
    %cst_57 = arith.constant dense<0.000000e+00> : vector<8x128xf32>
    %267 = tpu.matmul %229, %15, %cst_57 {dimension_numbers = #tpu.dot_dimension_numbers<[1], [0], [0], [1], [0, 0, 1, 1], [], []>} : vector<8x32xbf16>, vector<32x128xbf16>, vector<8x128xf32> -> vector<8x128xf32>
    %268 = arith.addf %251, %267 : vector<8x128xf32>
    %269 = math.tanh %268 : vector<8x128xf32>
    %270 = arith.mulf %269, %8 : vector<8x128xf32>
    %271 = arith.addf %270, %11 : vector<8x128xf32>
    %272 = vector.extract_strided_slice %271 {offsets = [0, 0], sizes = [8, 32], strides = [1, 1]} : vector<8x128xf32> to vector<8x32xf32>
    %273 = vector.extract_strided_slice %271 {offsets = [0, 32], sizes = [8, 32], strides = [1, 1]} : vector<8x128xf32> to vector<8x32xf32>
    %274 = vector.extract_strided_slice %271 {offsets = [0, 64], sizes = [8, 32], strides = [1, 1]} : vector<8x128xf32> to vector<8x32xf32>
    %275 = vector.extract_strided_slice %271 {offsets = [0, 96], sizes = [8, 32], strides = [1, 1]} : vector<8x128xf32> to vector<8x32xf32>
    %276 = arith.mulf %273, %226 : vector<8x32xf32>
    %277 = arith.mulf %272, %274 : vector<8x32xf32>
    %278 = arith.addf %276, %277 : vector<8x32xf32>
    %279 = math.tanh %278 : vector<8x32xf32>
    %280 = arith.mulf %275, %279 : vector<8x32xf32>
    %281 = arith.truncf %280 : vector<8x32xf32> to vector<8x32xbf16>
    %cst_58 = arith.constant dense<0.000000e+00> : vector<8x128xf32>
    %282 = tpu.matmul %281, %21, %cst_58 {dimension_numbers = #tpu.dot_dimension_numbers<[1], [0], [0], [1], [0, 0, 1, 1], [], []>} : vector<8x32xbf16>, vector<32x128xbf16>, vector<8x128xf32> -> vector<8x128xf32>
    %283 = vector.broadcast %27 : vector<1x128xf32> to vector<8x128xf32>
    %284 = arith.addf %282, %283 : vector<8x128xf32>
    %285 = vector.extract_strided_slice %33 {offsets = [40, 0], sizes = [8, 128], strides = [1, 1]} : vector<64x128xf32> to vector<8x128xf32>
    %cst_59 = arith.constant dense<0.000000e+00> : vector<8x128xf32>
    %286 = tpu.matmul %248, %13, %cst_59 {dimension_numbers = #tpu.dot_dimension_numbers<[1], [0], [0], [1], [0, 0, 1, 1], [], []>} : vector<8x32xbf16>, vector<32x128xbf16>, vector<8x128xf32> -> vector<8x128xf32>
    %287 = arith.addf %285, %286 : vector<8x128xf32>
    %288 = math.tanh %287 : vector<8x128xf32>
    %289 = arith.mulf %288, %8 : vector<8x128xf32>
    %290 = arith.addf %289, %11 : vector<8x128xf32>
    %291 = vector.extract_strided_slice %290 {offsets = [0, 0], sizes = [8, 32], strides = [1, 1]} : vector<8x128xf32> to vector<8x32xf32>
    %292 = vector.extract_strided_slice %290 {offsets = [0, 32], sizes = [8, 32], strides = [1, 1]} : vector<8x128xf32> to vector<8x32xf32>
    %293 = vector.extract_strided_slice %290 {offsets = [0, 64], sizes = [8, 32], strides = [1, 1]} : vector<8x128xf32> to vector<8x32xf32>
    %294 = vector.extract_strided_slice %290 {offsets = [0, 96], sizes = [8, 32], strides = [1, 1]} : vector<8x128xf32> to vector<8x32xf32>
    %295 = arith.mulf %292, %245 : vector<8x32xf32>
    %296 = arith.mulf %291, %293 : vector<8x32xf32>
    %297 = arith.addf %295, %296 : vector<8x32xf32>
    %298 = math.tanh %297 : vector<8x32xf32>
    %299 = arith.mulf %294, %298 : vector<8x32xf32>
    %300 = arith.truncf %299 : vector<8x32xf32> to vector<8x32xbf16>
    %cst_60 = arith.constant dense<0.000000e+00> : vector<8x128xf32>
    %301 = tpu.matmul %300, %19, %cst_60 {dimension_numbers = #tpu.dot_dimension_numbers<[1], [0], [0], [1], [0, 0, 1, 1], [], []>} : vector<8x32xbf16>, vector<32x128xbf16>, vector<8x128xf32> -> vector<8x128xf32>
    %302 = vector.broadcast %25 : vector<1x128xf32> to vector<8x128xf32>
    %303 = arith.addf %301, %302 : vector<8x128xf32>
    %cst_61 = arith.constant dense<0.000000e+00> : vector<8x128xf32>
    %304 = tpu.matmul %266, %17, %cst_61 {dimension_numbers = #tpu.dot_dimension_numbers<[1], [0], [0], [1], [0, 0, 1, 1], [], []>} : vector<8x32xbf16>, vector<32x128xbf16>, vector<8x128xf32> -> vector<8x128xf32>
    %305 = arith.addf %284, %304 : vector<8x128xf32>
    %306 = math.tanh %305 : vector<8x128xf32>
    %307 = arith.mulf %306, %8 : vector<8x128xf32>
    %308 = arith.addf %307, %11 : vector<8x128xf32>
    %309 = vector.extract_strided_slice %308 {offsets = [0, 0], sizes = [8, 32], strides = [1, 1]} : vector<8x128xf32> to vector<8x32xf32>
    %310 = vector.extract_strided_slice %308 {offsets = [0, 32], sizes = [8, 32], strides = [1, 1]} : vector<8x128xf32> to vector<8x32xf32>
    %311 = vector.extract_strided_slice %308 {offsets = [0, 64], sizes = [8, 32], strides = [1, 1]} : vector<8x128xf32> to vector<8x32xf32>
    %312 = vector.extract_strided_slice %308 {offsets = [0, 96], sizes = [8, 32], strides = [1, 1]} : vector<8x128xf32> to vector<8x32xf32>
    %313 = arith.mulf %310, %263 : vector<8x32xf32>
    %314 = arith.mulf %309, %311 : vector<8x32xf32>
    %315 = arith.addf %313, %314 : vector<8x32xf32>
    %316 = math.tanh %315 : vector<8x32xf32>
    %317 = arith.mulf %312, %316 : vector<8x32xf32>
    %318 = arith.truncf %317 : vector<8x32xf32> to vector<8x32xbf16>
    %cst_62 = arith.constant dense<0.000000e+00> : vector<8x128xf32>
    %319 = tpu.matmul %281, %15, %cst_62 {dimension_numbers = #tpu.dot_dimension_numbers<[1], [0], [0], [1], [0, 0, 1, 1], [], []>} : vector<8x32xbf16>, vector<32x128xbf16>, vector<8x128xf32> -> vector<8x128xf32>
    %320 = arith.addf %303, %319 : vector<8x128xf32>
    %321 = math.tanh %320 : vector<8x128xf32>
    %322 = arith.mulf %321, %8 : vector<8x128xf32>
    %323 = arith.addf %322, %11 : vector<8x128xf32>
    %324 = vector.extract_strided_slice %323 {offsets = [0, 0], sizes = [8, 32], strides = [1, 1]} : vector<8x128xf32> to vector<8x32xf32>
    %325 = vector.extract_strided_slice %323 {offsets = [0, 32], sizes = [8, 32], strides = [1, 1]} : vector<8x128xf32> to vector<8x32xf32>
    %326 = vector.extract_strided_slice %323 {offsets = [0, 64], sizes = [8, 32], strides = [1, 1]} : vector<8x128xf32> to vector<8x32xf32>
    %327 = vector.extract_strided_slice %323 {offsets = [0, 96], sizes = [8, 32], strides = [1, 1]} : vector<8x128xf32> to vector<8x32xf32>
    %328 = arith.mulf %325, %278 : vector<8x32xf32>
    %329 = arith.mulf %324, %326 : vector<8x32xf32>
    %330 = arith.addf %328, %329 : vector<8x32xf32>
    %331 = math.tanh %330 : vector<8x32xf32>
    %332 = arith.mulf %327, %331 : vector<8x32xf32>
    %333 = arith.truncf %332 : vector<8x32xf32> to vector<8x32xbf16>
    %cst_63 = arith.constant dense<0.000000e+00> : vector<8x128xf32>
    %334 = tpu.matmul %333, %21, %cst_63 {dimension_numbers = #tpu.dot_dimension_numbers<[1], [0], [0], [1], [0, 0, 1, 1], [], []>} : vector<8x32xbf16>, vector<32x128xbf16>, vector<8x128xf32> -> vector<8x128xf32>
    %335 = vector.broadcast %27 : vector<1x128xf32> to vector<8x128xf32>
    %336 = arith.addf %334, %335 : vector<8x128xf32>
    %337 = vector.extract_strided_slice %33 {offsets = [48, 0], sizes = [8, 128], strides = [1, 1]} : vector<64x128xf32> to vector<8x128xf32>
    %cst_64 = arith.constant dense<0.000000e+00> : vector<8x128xf32>
    %338 = tpu.matmul %300, %13, %cst_64 {dimension_numbers = #tpu.dot_dimension_numbers<[1], [0], [0], [1], [0, 0, 1, 1], [], []>} : vector<8x32xbf16>, vector<32x128xbf16>, vector<8x128xf32> -> vector<8x128xf32>
    %339 = arith.addf %337, %338 : vector<8x128xf32>
    %340 = math.tanh %339 : vector<8x128xf32>
    %341 = arith.mulf %340, %8 : vector<8x128xf32>
    %342 = arith.addf %341, %11 : vector<8x128xf32>
    %343 = vector.extract_strided_slice %342 {offsets = [0, 0], sizes = [8, 32], strides = [1, 1]} : vector<8x128xf32> to vector<8x32xf32>
    %344 = vector.extract_strided_slice %342 {offsets = [0, 32], sizes = [8, 32], strides = [1, 1]} : vector<8x128xf32> to vector<8x32xf32>
    %345 = vector.extract_strided_slice %342 {offsets = [0, 64], sizes = [8, 32], strides = [1, 1]} : vector<8x128xf32> to vector<8x32xf32>
    %346 = vector.extract_strided_slice %342 {offsets = [0, 96], sizes = [8, 32], strides = [1, 1]} : vector<8x128xf32> to vector<8x32xf32>
    %347 = arith.mulf %344, %297 : vector<8x32xf32>
    %348 = arith.mulf %343, %345 : vector<8x32xf32>
    %349 = arith.addf %347, %348 : vector<8x32xf32>
    %350 = math.tanh %349 : vector<8x32xf32>
    %351 = arith.mulf %346, %350 : vector<8x32xf32>
    %352 = arith.truncf %351 : vector<8x32xf32> to vector<8x32xbf16>
    %cst_65 = arith.constant dense<0.000000e+00> : vector<8x128xf32>
    %353 = tpu.matmul %352, %19, %cst_65 {dimension_numbers = #tpu.dot_dimension_numbers<[1], [0], [0], [1], [0, 0, 1, 1], [], []>} : vector<8x32xbf16>, vector<32x128xbf16>, vector<8x128xf32> -> vector<8x128xf32>
    %354 = vector.broadcast %25 : vector<1x128xf32> to vector<8x128xf32>
    %355 = arith.addf %353, %354 : vector<8x128xf32>
    %cst_66 = arith.constant dense<0.000000e+00> : vector<8x128xf32>
    %356 = tpu.matmul %318, %17, %cst_66 {dimension_numbers = #tpu.dot_dimension_numbers<[1], [0], [0], [1], [0, 0, 1, 1], [], []>} : vector<8x32xbf16>, vector<32x128xbf16>, vector<8x128xf32> -> vector<8x128xf32>
    %357 = arith.addf %336, %356 : vector<8x128xf32>
    %358 = math.tanh %357 : vector<8x128xf32>
    %359 = arith.mulf %358, %8 : vector<8x128xf32>
    %360 = arith.addf %359, %11 : vector<8x128xf32>
    %361 = vector.extract_strided_slice %360 {offsets = [0, 0], sizes = [8, 32], strides = [1, 1]} : vector<8x128xf32> to vector<8x32xf32>
    %362 = vector.extract_strided_slice %360 {offsets = [0, 32], sizes = [8, 32], strides = [1, 1]} : vector<8x128xf32> to vector<8x32xf32>
    %363 = vector.extract_strided_slice %360 {offsets = [0, 64], sizes = [8, 32], strides = [1, 1]} : vector<8x128xf32> to vector<8x32xf32>
    %364 = vector.extract_strided_slice %360 {offsets = [0, 96], sizes = [8, 32], strides = [1, 1]} : vector<8x128xf32> to vector<8x32xf32>
    %365 = arith.mulf %362, %315 : vector<8x32xf32>
    %366 = arith.mulf %361, %363 : vector<8x32xf32>
    %367 = arith.addf %365, %366 : vector<8x32xf32>
    %368 = math.tanh %367 : vector<8x32xf32>
    %369 = arith.mulf %364, %368 : vector<8x32xf32>
    %370 = arith.truncf %369 : vector<8x32xf32> to vector<8x32xbf16>
    %cst_67 = arith.constant dense<0.000000e+00> : vector<8x128xf32>
    %371 = tpu.matmul %333, %15, %cst_67 {dimension_numbers = #tpu.dot_dimension_numbers<[1], [0], [0], [1], [0, 0, 1, 1], [], []>} : vector<8x32xbf16>, vector<32x128xbf16>, vector<8x128xf32> -> vector<8x128xf32>
    %372 = arith.addf %355, %371 : vector<8x128xf32>
    %373 = math.tanh %372 : vector<8x128xf32>
    %374 = arith.mulf %373, %8 : vector<8x128xf32>
    %375 = arith.addf %374, %11 : vector<8x128xf32>
    %376 = vector.extract_strided_slice %375 {offsets = [0, 0], sizes = [8, 32], strides = [1, 1]} : vector<8x128xf32> to vector<8x32xf32>
    %377 = vector.extract_strided_slice %375 {offsets = [0, 32], sizes = [8, 32], strides = [1, 1]} : vector<8x128xf32> to vector<8x32xf32>
    %378 = vector.extract_strided_slice %375 {offsets = [0, 64], sizes = [8, 32], strides = [1, 1]} : vector<8x128xf32> to vector<8x32xf32>
    %379 = vector.extract_strided_slice %375 {offsets = [0, 96], sizes = [8, 32], strides = [1, 1]} : vector<8x128xf32> to vector<8x32xf32>
    %380 = arith.mulf %377, %330 : vector<8x32xf32>
    %381 = arith.mulf %376, %378 : vector<8x32xf32>
    %382 = arith.addf %380, %381 : vector<8x32xf32>
    %383 = math.tanh %382 : vector<8x32xf32>
    %384 = arith.mulf %379, %383 : vector<8x32xf32>
    %385 = arith.truncf %384 : vector<8x32xf32> to vector<8x32xbf16>
    %cst_68 = arith.constant dense<0.000000e+00> : vector<8x128xf32>
    %386 = tpu.matmul %385, %21, %cst_68 {dimension_numbers = #tpu.dot_dimension_numbers<[1], [0], [0], [1], [0, 0, 1, 1], [], []>} : vector<8x32xbf16>, vector<32x128xbf16>, vector<8x128xf32> -> vector<8x128xf32>
    %387 = vector.broadcast %27 : vector<1x128xf32> to vector<8x128xf32>
    %388 = arith.addf %386, %387 : vector<8x128xf32>
    %389 = vector.extract_strided_slice %33 {offsets = [56, 0], sizes = [8, 128], strides = [1, 1]} : vector<64x128xf32> to vector<8x128xf32>
    %cst_69 = arith.constant dense<0.000000e+00> : vector<8x128xf32>
    %390 = tpu.matmul %352, %13, %cst_69 {dimension_numbers = #tpu.dot_dimension_numbers<[1], [0], [0], [1], [0, 0, 1, 1], [], []>} : vector<8x32xbf16>, vector<32x128xbf16>, vector<8x128xf32> -> vector<8x128xf32>
    %391 = arith.addf %389, %390 : vector<8x128xf32>
    %392 = math.tanh %391 : vector<8x128xf32>
    %393 = arith.mulf %392, %8 : vector<8x128xf32>
    %394 = arith.addf %393, %11 : vector<8x128xf32>
    %395 = vector.extract_strided_slice %394 {offsets = [0, 0], sizes = [8, 32], strides = [1, 1]} : vector<8x128xf32> to vector<8x32xf32>
    %396 = vector.extract_strided_slice %394 {offsets = [0, 32], sizes = [8, 32], strides = [1, 1]} : vector<8x128xf32> to vector<8x32xf32>
    %397 = vector.extract_strided_slice %394 {offsets = [0, 64], sizes = [8, 32], strides = [1, 1]} : vector<8x128xf32> to vector<8x32xf32>
    %398 = vector.extract_strided_slice %394 {offsets = [0, 96], sizes = [8, 32], strides = [1, 1]} : vector<8x128xf32> to vector<8x32xf32>
    %399 = arith.mulf %396, %349 : vector<8x32xf32>
    %400 = arith.mulf %395, %397 : vector<8x32xf32>
    %401 = arith.addf %399, %400 : vector<8x32xf32>
    %402 = math.tanh %401 : vector<8x32xf32>
    %403 = arith.mulf %398, %402 : vector<8x32xf32>
    %404 = arith.truncf %403 : vector<8x32xf32> to vector<8x32xbf16>
    %cst_70 = arith.constant dense<0.000000e+00> : vector<8x128xf32>
    %405 = tpu.matmul %404, %19, %cst_70 {dimension_numbers = #tpu.dot_dimension_numbers<[1], [0], [0], [1], [0, 0, 1, 1], [], []>} : vector<8x32xbf16>, vector<32x128xbf16>, vector<8x128xf32> -> vector<8x128xf32>
    %406 = vector.broadcast %25 : vector<1x128xf32> to vector<8x128xf32>
    %407 = arith.addf %405, %406 : vector<8x128xf32>
    %cst_71 = arith.constant dense<0.000000e+00> : vector<8x128xf32>
    %408 = tpu.matmul %370, %17, %cst_71 {dimension_numbers = #tpu.dot_dimension_numbers<[1], [0], [0], [1], [0, 0, 1, 1], [], []>} : vector<8x32xbf16>, vector<32x128xbf16>, vector<8x128xf32> -> vector<8x128xf32>
    %409 = arith.addf %388, %408 : vector<8x128xf32>
    %410 = math.tanh %409 : vector<8x128xf32>
    %411 = arith.mulf %410, %8 : vector<8x128xf32>
    %412 = arith.addf %411, %11 : vector<8x128xf32>
    %413 = vector.extract_strided_slice %412 {offsets = [0, 0], sizes = [8, 32], strides = [1, 1]} : vector<8x128xf32> to vector<8x32xf32>
    %414 = vector.extract_strided_slice %412 {offsets = [0, 32], sizes = [8, 32], strides = [1, 1]} : vector<8x128xf32> to vector<8x32xf32>
    %415 = vector.extract_strided_slice %412 {offsets = [0, 64], sizes = [8, 32], strides = [1, 1]} : vector<8x128xf32> to vector<8x32xf32>
    %416 = vector.extract_strided_slice %412 {offsets = [0, 96], sizes = [8, 32], strides = [1, 1]} : vector<8x128xf32> to vector<8x32xf32>
    %417 = arith.mulf %414, %367 : vector<8x32xf32>
    %418 = arith.mulf %413, %415 : vector<8x32xf32>
    %419 = arith.addf %417, %418 : vector<8x32xf32>
    %420 = math.tanh %419 : vector<8x32xf32>
    %421 = arith.mulf %416, %420 : vector<8x32xf32>
    %422 = arith.truncf %421 : vector<8x32xf32> to vector<8x32xbf16>
    %cst_72 = arith.constant dense<0.000000e+00> : vector<8x128xf32>
    %423 = tpu.matmul %385, %15, %cst_72 {dimension_numbers = #tpu.dot_dimension_numbers<[1], [0], [0], [1], [0, 0, 1, 1], [], []>} : vector<8x32xbf16>, vector<32x128xbf16>, vector<8x128xf32> -> vector<8x128xf32>
    %424 = arith.addf %407, %423 : vector<8x128xf32>
    %425 = math.tanh %424 : vector<8x128xf32>
    %426 = arith.mulf %425, %8 : vector<8x128xf32>
    %427 = arith.addf %426, %11 : vector<8x128xf32>
    %428 = vector.extract_strided_slice %427 {offsets = [0, 0], sizes = [8, 32], strides = [1, 1]} : vector<8x128xf32> to vector<8x32xf32>
    %429 = vector.extract_strided_slice %427 {offsets = [0, 32], sizes = [8, 32], strides = [1, 1]} : vector<8x128xf32> to vector<8x32xf32>
    %430 = vector.extract_strided_slice %427 {offsets = [0, 64], sizes = [8, 32], strides = [1, 1]} : vector<8x128xf32> to vector<8x32xf32>
    %431 = vector.extract_strided_slice %427 {offsets = [0, 96], sizes = [8, 32], strides = [1, 1]} : vector<8x128xf32> to vector<8x32xf32>
    %432 = arith.mulf %429, %382 : vector<8x32xf32>
    %433 = arith.mulf %428, %430 : vector<8x32xf32>
    %434 = arith.addf %432, %433 : vector<8x32xf32>
    %435 = math.tanh %434 : vector<8x32xf32>
    %436 = arith.mulf %431, %435 : vector<8x32xf32>
    %437 = arith.truncf %436 : vector<8x32xf32> to vector<8x32xbf16>
    %cst_73 = arith.constant dense<0.000000e+00> : vector<8x128xf32>
    %438 = tpu.matmul %437, %21, %cst_73 {dimension_numbers = #tpu.dot_dimension_numbers<[1], [0], [0], [1], [0, 0, 1, 1], [], []>} : vector<8x32xbf16>, vector<32x128xbf16>, vector<8x128xf32> -> vector<8x128xf32>
    %439 = vector.broadcast %27 : vector<1x128xf32> to vector<8x128xf32>
    %440 = arith.addf %438, %439 : vector<8x128xf32>
    %cst_74 = arith.constant dense<0.000000e+00> : vector<8x128xf32>
    %441 = tpu.matmul %422, %17, %cst_74 {dimension_numbers = #tpu.dot_dimension_numbers<[1], [0], [0], [1], [0, 0, 1, 1], [], []>} : vector<8x32xbf16>, vector<32x128xbf16>, vector<8x128xf32> -> vector<8x128xf32>
    %442 = arith.addf %440, %441 : vector<8x128xf32>
    %443 = math.tanh %442 : vector<8x128xf32>
    %444 = arith.mulf %443, %8 : vector<8x128xf32>
    %445 = arith.addf %444, %11 : vector<8x128xf32>
    %446 = vector.extract_strided_slice %445 {offsets = [0, 0], sizes = [8, 32], strides = [1, 1]} : vector<8x128xf32> to vector<8x32xf32>
    %447 = vector.extract_strided_slice %445 {offsets = [0, 32], sizes = [8, 32], strides = [1, 1]} : vector<8x128xf32> to vector<8x32xf32>
    %448 = vector.extract_strided_slice %445 {offsets = [0, 64], sizes = [8, 32], strides = [1, 1]} : vector<8x128xf32> to vector<8x32xf32>
    %449 = vector.extract_strided_slice %445 {offsets = [0, 96], sizes = [8, 32], strides = [1, 1]} : vector<8x128xf32> to vector<8x32xf32>
    %450 = arith.mulf %447, %419 : vector<8x32xf32>
    %451 = arith.mulf %446, %448 : vector<8x32xf32>
    %452 = arith.addf %450, %451 : vector<8x32xf32>
    %453 = math.tanh %452 : vector<8x32xf32>
    %454 = arith.mulf %449, %453 : vector<8x32xf32>
    %c0_75 = arith.constant 0 : index
    %c0_76 = arith.constant 0 : index
    %455 = vector.load %arg5[%c0_75, %c0_76] : memref<32x2xf32, #tpu.memory_space<vmem>>, vector<32x2xf32>
    %cst_77 = arith.constant dense<0.000000e+00> : vector<8x2xf32>
    %456 = tpu.matmul %454, %455, %cst_77 {dimension_numbers = #tpu.dot_dimension_numbers<[1], [0], [0], [1], [0, 0, 1, 1], [], []>} : vector<8x32xf32>, vector<32x2xf32>, vector<8x2xf32> -> vector<8x2xf32>
    %c0_78 = arith.constant 0 : index
    %c0_79 = arith.constant 0 : index
    %457 = vector.load %arg6[%c0_78, %c0_79] : memref<1x2xf32, #tpu.memory_space<vmem>>, vector<1x2xf32>
    %458 = vector.broadcast %457 : vector<1x2xf32> to vector<8x2xf32>
    %459 = arith.addf %456, %458 : vector<8x2xf32>
    %c0_80 = arith.constant 0 : index
    %c0_81 = arith.constant 0 : index
    %460 = vector.load %arg7[%c0_80, %c0_81] : memref<8x2xf32, #tpu.memory_space<vmem>>, vector<8x2xf32>
    tpu.vector_store %arg7[%c0_80, %c0_81], %459 {strides = array<i32>} : memref<8x2xf32, #tpu.memory_space<vmem>>, vector<8x2xf32>,
    return
  }
}

</mosaic_0001>

<llo_original>
// kernel: lstm_conditioning_forward.1
$region0: #{lstm_conditioning_forward.1}
  #allocation0 [shape = 'u32[]', space=smem, size = 0x4, offset = 0x4, fixed_abs, tag = 'smem constant byte address 0x4 - core index']
  #allocation1 [shape = 'u32[144,128]{1,0:T(1,128)}', space=vmem, size = 0x12000, scoped, tag = 'internal scratch']
  %s0 = inlined_call_operand.vmem [shape: f32[64,16], index: 0, kind: input, shape index: {}]
  %s1 = inlined_call_operand.vmem [shape: bf16[16,128], index: 1, kind: input, shape index: {}]
  %s2 = inlined_call_operand.vmem [shape: bf16[2,32,128], index: 2, kind: input, shape index: {}]
  %s3 = inlined_call_operand.vmem [shape: bf16[3,32,128], index: 3, kind: input, shape index: {}]
  %s4 = inlined_call_operand.vmem [shape: f32[3,1,128], index: 4, kind: input, shape index: {}]
  %s5 = inlined_call_operand.vmem [shape: f32[32,2], index: 5, kind: input, shape index: {}]
  %s6 = inlined_call_operand.vmem [shape: f32[1,2], index: 6, kind: input, shape index: {}]
  %s7 = inlined_call_operand.vmem [shape: f32[8,2], index: 7, kind: output, shape index: {}]
  %s8 = sld [smem:[#allocation0]]
  $region38: #{lstm_conditioning_forward.1} parent=0
    _
  %s10 = ssub.s32 1, %s8
  %s11 = scalar_select 0, %s10, %s8
  // Predicated region
  $region2: #{lstm_conditioning_forward.1} parent=0 // pred_check
    _
  $region3: #{lstm_conditioning_forward.1} parent=0 // pred_check_branch
    %13 = sbr.rel (0) target = $region5
  $region4: #{lstm_conditioning_forward.1} parent=0 // pred_region
    _
  $region5: #{lstm_conditioning_forward.1} parent=0 // pred_fallthru
    _
  // Predicated region
  $region6: #{lstm_conditioning_forward.1} parent=0 // pred_check
    _
  $region7: #{lstm_conditioning_forward.1} parent=0 // pred_check_branch
    %15 = sbr.rel (0) target = $region9
  $region8: #{lstm_conditioning_forward.1} parent=0 // pred_region
    _
  $region9: #{lstm_conditioning_forward.1} parent=0 // pred_fallthru
    _
  // Predicated region
  $region10: #{lstm_conditioning_forward.1} parent=0 // pred_check
    _
  $region11: #{lstm_conditioning_forward.1} parent=0 // pred_check_branch
    %17 = sbr.rel (0) target = $region13
  $region12: #{lstm_conditioning_forward.1} parent=0 // pred_region
    _
  $region13: #{lstm_conditioning_forward.1} parent=0 // pred_fallthru
    _
  // Predicated region
  $region14: #{lstm_conditioning_forward.1} parent=0 // pred_check
    _
  $region15: #{lstm_conditioning_forward.1} parent=0 // pred_check_branch
    %19 = sbr.rel (0) target = $region17
  $region16: #{lstm_conditioning_forward.1} parent=0 // pred_region
    _
  $region17: #{lstm_conditioning_forward.1} parent=0 // pred_fallthru
    _
  // Predicated region
  $region18: #{lstm_conditioning_forward.1} parent=0 // pred_check
    _
  $region19: #{lstm_conditioning_forward.1} parent=0 // pred_check_branch
    %21 = sbr.rel (0) target = $region21
  $region20: #{lstm_conditioning_forward.1} parent=0 // pred_region
    _
  $region21: #{lstm_conditioning_forward.1} parent=0 // pred_fallthru
    _
  // Predicated region
  $region22: #{lstm_conditioning_forward.1} parent=0 // pred_check
    _
  $region23: #{lstm_conditioning_forward.1} parent=0 // pred_check_branch
    %23 = sbr.rel (0) target = $region25
  $region24: #{lstm_conditioning_forward.1} parent=0 // pred_region
    _
  $region25: #{lstm_conditioning_forward.1} parent=0 // pred_fallthru
    _
  // Predicated region
  $region26: #{lstm_conditioning_forward.1} parent=0 // pred_check
    _
  $region27: #{lstm_conditioning_forward.1} parent=0 // pred_check_branch
    %25 = sbr.rel (0) target = $region29
  $region28: #{lstm_conditioning_forward.1} parent=0 // pred_region
    _
  $region29: #{lstm_conditioning_forward.1} parent=0 // pred_fallthru
    _
  %v27 = vlaneseq
  %v28 = vand.u32 %v27, 127
  %vm29 = vcmp.ge.s32.totalorder %v28, 64
  %vm30 = vcmp.lt.s32.totalorder %v28, 96
  %vm31 = vmand %vm29, %vm30
  %v32 = vsel %vm31, 1.0, 0.5
  %v33 = vsel %vm31, 0.0, 0.5
  %v34 = vld [vmem:[%s3] sm:$0xf]
  %v35 = vld [vmem:[%s3 + $0x4] sm:$0xf]
  %v36 = vld [vmem:[%s3 + $0x8] sm:$0xf]
  %v37 = vld [vmem:[%s3 + $0xc] sm:$0xf]
  %s38 = scalar_lea.vmem %s3, 16
  %v39 = vld [vmem:[%s38] sm:$0xf]
  %v40 = vld [vmem:[%s38 + $0x4] sm:$0xf]
  %v41 = vld [vmem:[%s38 + $0x8] sm:$0xf]
  %v42 = vld [vmem:[%s38 + $0xc] sm:$0xf]
  %s43 = scalar_lea.vmem %s3, 32
  %v44 = vld [vmem:[%s43] sm:$0xf]
  %v45 = vld [vmem:[%s43 + $0x4] sm:$0xf]
  %v46 = vld [vmem:[%s43 + $0x8] sm:$0xf]
  %v47 = vld [vmem:[%s43 + $0xc] sm:$0xf]
  %v48 = vld [vmem:[%s2] sm:$0xf]
  %v49 = vld [vmem:[%s2 + $0x4] sm:$0xf]
  %v50 = vld [vmem:[%s2 + $0x8] sm:$0xf]
  %v51 = vld [vmem:[%s2 + $0xc] sm:$0xf]
  %s52 = scalar_lea.vmem %s2, 16
  %v53 = vld [vmem:[%s52] sm:$0xf]
  %v54 = vld [vmem:[%s52 + $0x4] sm:$0xf]
  %v55 = vld [vmem:[%s52 + $0x8] sm:$0xf]
  %v56 = vld [vmem:[%s52 + $0xc] sm:$0xf]
  %v57 = vld [vmem:[%s4] sm:$0x1]
  %s58 = scalar_lea.vmem %s4, 1
  %v59 = vld [vmem:[%s58] sm:$0x1]
  %s60 = scalar_lea.vmem %s4, 2
  %v61 = vld [vmem:[%s60] sm:$0x1]
  %v62 = vld [vmem:[%s0] sm:$0xff]
  %v63 = vld [vmem:[%s0 + $0x8] sm:$0xff]
  %v64 = vld [vmem:[%s0 + $0x10] sm:$0xff]
  %v65 = vld [vmem:[%s0 + $0x18] sm:$0xff]
  %v66 = vld [vmem:[%s0 + $0x20] sm:$0xff]
  %v67 = vld [vmem:[%s0 + $0x28] sm:$0xff]
  %v68 = vld [vmem:[%s0 + $0x30] sm:$0xff]
  %v69 = vld [vmem:[%s0 + $0x38] sm:$0xff]
  %v70 = vpack.c.bf16 %v63, %v62
  %v71 = vpack.c.bf16 %v65, %v64
  %v72 = vpack.c.bf16 %v67, %v66
  %v73 = vpack.c.bf16 %v69, %v68
  %v74 = vld [vmem:[%s1] sm:$0xf]
  %v75 = vld [vmem:[%s1 + $0x4] sm:$0xf]
  %v77 = vlaneseq
  %v78 = vshrl.u32 %v77, 7
  %v79 = vsub.s32 0, %v78
  %v80 = vrot.slane %v57, %v79
  %v84 = vunpack.c.l.b16 %v74
  %v85 = vunpack.c.l.b16 %v75
  %v86 = vpack.c.b16 %v85, %v84
  %vm88 = vcmask 130048
  %v90 = vsel %vm88, %v70, 0
  %v93 = vsel %vm88, %v71, 0
  %v96 = vsel %vm88, %v72, 0
  %v99 = vsel %vm88, %v73, 0
  %101 = vmatprep.subr.bf16.mxu0 0
  %102 = vmatpush1.bf16.msra.mxu0 %v86
  %103 = vmatprep.subr.bf16.mxu0 0
  %104 = vmatpush1.bf16.msra.mxu0 0
  %105 = vmatprep.subr.bf16.mxu0 0
  %106 = vmatpush1.bf16.msra.mxu0 0
  %107 = vmatprep.subr.bf16.mxu0 0
  %108 = vmatpush1.bf16.msra.mxu0 0
  %109 = vmatprep.subr.bf16.mxu0 0
  %110 = vmatpush1.bf16.msra.mxu0 0
  %111 = vmatprep.subr.bf16.mxu0 0
  %112 = vmatpush1.bf16.msra.mxu0 0
  %113 = vmatprep.subr.bf16.mxu0 0
  %114 = vmatpush1.bf16.msra.mxu0 0
  %115 = vmatprep.subr.bf16.mxu0 0
  %116 = vmatpush1.bf16.msra.mxu0 0
  %117 = vmatprep.subr.bf16.mxu0 0
  %118 = vmatpush1.bf16.msra.mxu0 0
  %119 = vmatprep.subr.bf16.mxu0 0
  %120 = vmatpush1.bf16.msra.mxu0 0
  %121 = vmatprep.subr.bf16.mxu0 0
  %122 = vmatpush1.bf16.msra.mxu0 0
  %123 = vmatprep.subr.bf16.mxu0 0
  %124 = vmatpush1.bf16.msra.mxu0 0
  %125 = vmatprep.subr.bf16.mxu0 0
  %126 = vmatpush1.bf16.msra.mxu0 0
  %127 = vmatprep.subr.bf16.mxu0 0
  %128 = vmatpush1.bf16.msra.mxu0 0
  %129 = vmatprep.subr.bf16.mxu0 0
  %130 = vmatpush1.bf16.msra.mxu0 0
  %131 = vmatprep.subr.bf16.mxu0 0
  %132 = vmatpush1.bf16.msra.mxu0 0
  %133 = vmatprep.mubr.bf16.mxu0 0
  %134 = vmatmul.mubr.bf16.gmra.mrb[0].mxu0 %v90
  %v135 = vpop.f32.mrb[0].mxu0
  %v136 = vadd.f32 %v80, %v135
  %v137 = vpop.f32.mrb[0].mxu0
  %v138 = vpop.f32.mrb[0].mxu0
  %v139 = vadd.f32 %v80, %v138
  %v140 = vpop.f32.mrb[0].mxu0
  %141 = vmatprep.mubr.bf16.mxu0 0
  %142 = vmatmul.mubr.bf16.gmra.mrb[0].mxu0 %v93
  %v143 = vpop.f32.mrb[0].mxu0
  %v144 = vadd.f32 %v80, %v143
  %v145 = vpop.f32.mrb[0].mxu0
  %v146 = vpop.f32.mrb[0].mxu0
  %v147 = vadd.f32 %v80, %v146
  %v148 = vpop.f32.mrb[0].mxu0
  %149 = vmatprep.mubr.bf16.mxu0 0
  %150 = vmatmul.mubr.bf16.gmra.mrb[0].mxu0 %v96
  %v151 = vpop.f32.mrb[0].mxu0
  %v152 = vadd.f32 %v80, %v151
  %v153 = vpop.f32.mrb[0].mxu0
  %v154 = vpop.f32.mrb[0].mxu0
  %v155 = vadd.f32 %v80, %v154
  %v156 = vpop.f32.mrb[0].mxu0
  %157 = vmatprep.mubr.bf16.mxu0 0
  %158 = vmatmul.mubr.bf16.gmra.mrb[0].mxu0 %v99
  %v159 = vpop.f32.mrb[0].mxu0
  %v160 = vadd.f32 %v80, %v159
  %v161 = vpop.f32.mrb[0].mxu0
  %v162 = vpop.f32.mrb[0].mxu0
  %v163 = vadd.f32 %v80, %v162
  %v164 = vpop.f32.mrb[0].mxu0
  %165 = vdwg.mxu0
  %v170 = vunpack.c.l.b16 %v34
  %v171 = vunpack.c.l.b16 %v35
  %v172 = vunpack.c.l.b16 %v36
  %v173 = vunpack.c.l.b16 %v37
  %v174 = vpack.c.b16 %v171, %v170
  %v175 = vpack.c.b16 %v173, %v172
  %vm178 = vcmask 261120
  %v180 = vsel %vm178, 0, 0
  %182 = vmatprep.subr.bf16.mxu0 0
  %183 = vmatpush1.bf16.msra.mxu0 %v174
  %184 = vmatprep.subr.bf16.mxu0 0
  %185 = vmatpush1.bf16.msra.mxu0 %v175
  %186 = vmatprep.subr.bf16.mxu0 0
  %187 = vmatpush1.bf16.msra.mxu0 0
  %188 = vmatprep.subr.bf16.mxu0 0
  %189 = vmatpush1.bf16.msra.mxu0 0
  %190 = vmatprep.subr.bf16.mxu0 0
  %191 = vmatpush1.bf16.msra.mxu0 0
  %192 = vmatprep.subr.bf16.mxu0 0
  %193 = vmatpush1.bf16.msra.mxu0 0
  %194 = vmatprep.subr.bf16.mxu0 0
  %195 = vmatpush1.bf16.msra.mxu0 0
  %196 = vmatprep.subr.bf16.mxu0 0
  %197 = vmatpush1.bf16.msra.mxu0 0
  %198 = vmatprep.subr.bf16.mxu0 0
  %199 = vmatpush1.bf16.msra.mxu0 0
  %200 = vmatprep.subr.bf16.mxu0 0
  %201 = vmatpush1.bf16.msra.mxu0 0
  %202 = vmatprep.subr.bf16.mxu0 0
  %203 = vmatpush1.bf16.msra.mxu0 0
  %204 = vmatprep.subr.bf16.mxu0 0
  %205 = vmatpush1.bf16.msra.mxu0 0
  %206 = vmatprep.subr.bf16.mxu0 0
  %207 = vmatpush1.bf16.msra.mxu0 0
  %208 = vmatprep.subr.bf16.mxu0 0
  %209 = vmatpush1.bf16.msra.mxu0 0
  %210 = vmatprep.subr.bf16.mxu0 0
  %211 = vmatpush1.bf16.msra.mxu0 0
  %212 = vmatprep.subr.bf16.mxu0 0
  %213 = vmatpush1.bf16.msra.mxu0 0
  %214 = vmatprep.mubr.bf16.mxu0 0
  %215 = vmatmul.mubr.bf16.gmra.mrb[0].mxu0 %v180
  %v216 = vpop.f32.mrb[0].mxu0
  %v217 = vadd.f32 0.0, %v216
  %v218 = vpop.f32.mrb[0].mxu0
  %v219 = vpop.f32.mrb[0].mxu0
  %v220 = vpop.f32.mrb[0].mxu0
  %221 = vdwg.mxu0
  %v222 = vadd.f32 %v136, %v217
  %v223 = vtanh.pop %v222
  %v224 = vmul.f32 %v223, %v32
  %v225 = vadd.f32 %v224, %v33
  %v226 = vmul.f32 %v225, 0.0
  %228 = vrot.lane.b32.xlu0 %v225, 64
  %v229 = vpop.permute.xlu0 %228
  %v231 = vmul.f32 %v225, %v229
  %233 = vrot.lane.b32.xlu0 %v231, 32
  %v234 = vpop.permute.xlu0 %233
  %v236 = vadd.f32 %v226, %v234
  %v237 = vtanh.pop %v236
  %239 = vrot.lane.b32.xlu0 %v237, 64
  %v240 = vpop.permute.xlu0 %239
  %v242 = vmul.f32 %v225, %v240
  %v243 = vpack.c.bf16 %v242, %v242
  %v245 = vlaneseq
  %v246 = vshrl.u32 %v245, 7
  %v247 = vsub.s32 0, %v246
  %v248 = vrot.slane %v59, %v247
  %251 = vrot.lane.b32.xlu0 %v243, 32
  %v252 = vpop.permute.xlu0 %251
  %v257 = vunpack.c.l.b16 %v48
  %v258 = vunpack.c.l.b16 %v49
  %v259 = vunpack.c.l.b16 %v50
  %v260 = vunpack.c.l.b16 %v51
  %v261 = vpack.c.b16 %v258, %v257
  %v262 = vpack.c.b16 %v260, %v259
  %v266 = vsel %vm178, %v252, 0
  %268 = vmatprep.subr.bf16.mxu0 0
  %269 = vmatpush1.bf16.msra.mxu0 %v261
  %270 = vmatprep.subr.bf16.mxu0 0
  %271 = vmatpush1.bf16.msra.mxu0 %v262
  %272 = vmatprep.subr.bf16.mxu0 0
  %273 = vmatpush1.bf16.msra.mxu0 0
  %274 = vmatprep.subr.bf16.mxu0 0
  %275 = vmatpush1.bf16.msra.mxu0 0
  %276 = vmatprep.subr.bf16.mxu0 0
  %277 = vmatpush1.bf16.msra.mxu0 0
  %278 = vmatprep.subr.bf16.mxu0 0
  %279 = vmatpush1.bf16.msra.mxu0 0
  %280 = vmatprep.subr.bf16.mxu0 0
  %281 = vmatpush1.bf16.msra.mxu0 0
  %282 = vmatprep.subr.bf16.mxu0 0
  %283 = vmatpush1.bf16.msra.mxu0 0
  %284 = vmatprep.subr.bf16.mxu0 0
  %285 = vmatpush1.bf16.msra.mxu0 0
  %286 = vmatprep.subr.bf16.mxu0 0
  %287 = vmatpush1.bf16.msra.mxu0 0
  %288 = vmatprep.subr.bf16.mxu0 0
  %289 = vmatpush1.bf16.msra.mxu0 0
  %290 = vmatprep.subr.bf16.mxu0 0
  %291 = vmatpush1.bf16.msra.mxu0 0
  %292 = vmatprep.subr.bf16.mxu0 0
  %293 = vmatpush1.bf16.msra.mxu0 0
  %294 = vmatprep.subr.bf16.mxu0 0
  %295 = vmatpush1.bf16.msra.mxu0 0
  %296 = vmatprep.subr.bf16.mxu0 0
  %297 = vmatpush1.bf16.msra.mxu0 0
  %298 = vmatprep.subr.bf16.mxu0 0
  %299 = vmatpush1.bf16.msra.mxu0 0
  %300 = vmatprep.mubr.bf16.mxu0 0
  %301 = vmatmul.mubr.bf16.gmra.mrb[0].mxu0 %v266
  %v302 = vpop.f32.mrb[0].mxu0
  %v303 = vadd.f32 %v248, %v302
  %v304 = vpop.f32.mrb[0].mxu0
  %v305 = vpop.f32.mrb[0].mxu0
  %v306 = vpop.f32.mrb[0].mxu0
  %307 = vdwg.mxu0
  %v312 = vunpack.c.l.b16 %v39
  %v313 = vunpack.c.l.b16 %v40
  %v314 = vunpack.c.l.b16 %v41
  %v315 = vunpack.c.l.b16 %v42
  %v316 = vpack.c.b16 %v313, %v312
  %v317 = vpack.c.b16 %v315, %v314
  %320 = vmatprep.subr.bf16.mxu0 0
  %321 = vmatpush1.bf16.msra.mxu0 %v316
  %322 = vmatprep.subr.bf16.mxu0 0
  %323 = vmatpush1.bf16.msra.mxu0 %v317
  %324 = vmatprep.subr.bf16.mxu0 0
  %325 = vmatpush1.bf16.msra.mxu0 0
  %326 = vmatprep.subr.bf16.mxu0 0
  %327 = vmatpush1.bf16.msra.mxu0 0
  %328 = vmatprep.subr.bf16.mxu0 0
  %329 = vmatpush1.bf16.msra.mxu0 0
  %330 = vmatprep.subr.bf16.mxu0 0
  %331 = vmatpush1.bf16.msra.mxu0 0
  %332 = vmatprep.subr.bf16.mxu0 0
  %333 = vmatpush1.bf16.msra.mxu0 0
  %334 = vmatprep.subr.bf16.mxu0 0
  %335 = vmatpush1.bf16.msra.mxu0 0
  %336 = vmatprep.subr.bf16.mxu0 0
  %337 = vmatpush1.bf16.msra.mxu0 0
  %338 = vmatprep.subr.bf16.mxu0 0
  %339 = vmatpush1.bf16.msra.mxu0 0
  %340 = vmatprep.subr.bf16.mxu0 0
  %341 = vmatpush1.bf16.msra.mxu0 0
  %342 = vmatprep.subr.bf16.mxu0 0
  %343 = vmatpush1.bf16.msra.mxu0 0
  %344 = vmatprep.subr.bf16.mxu0 0
  %345 = vmatpush1.bf16.msra.mxu0 0
  %346 = vmatprep.subr.bf16.mxu0 0
  %347 = vmatpush1.bf16.msra.mxu0 0
  %348 = vmatprep.subr.bf16.mxu0 0
  %349 = vmatpush1.bf16.msra.mxu0 0
  %350 = vmatprep.subr.bf16.mxu0 0
  %351 = vmatpush1.bf16.msra.mxu0 0
  %352 = vmatprep.mubr.bf16.mxu0 0
  %353 = vmatmul.mubr.bf16.gmra.mrb[0].mxu0 %v180
  %v354 = vpop.f32.mrb[0].mxu0
  %v355 = vadd.f32 0.0, %v354
  %v356 = vpop.f32.mrb[0].mxu0
  %v357 = vpop.f32.mrb[0].mxu0
  %v358 = vpop.f32.mrb[0].mxu0
  %359 = vdwg.mxu0
  %v360 = vadd.f32 %v303, %v355
  %v361 = vtanh.pop %v360
  %v362 = vmul.f32 %v361, %v32
  %v363 = vadd.f32 %v362, %v33
  %v364 = vmul.f32 %v363, 0.0
  %366 = vrot.lane.b32.xlu0 %v363, 64
  %v367 = vpop.permute.xlu0 %366
  %v369 = vmul.f32 %v363, %v367
  %371 = vrot.lane.b32.xlu0 %v369, 32
  %v372 = vpop.permute.xlu0 %371
  %v374 = vadd.f32 %v364, %v372
  %v375 = vtanh.pop %v374
  %377 = vrot.lane.b32.xlu0 %v375, 64
  %v378 = vpop.permute.xlu0 %377
  %v380 = vmul.f32 %v363, %v378
  %v381 = vpack.c.bf16 %v380, %v380
  %v383 = vlaneseq
  %v384 = vshrl.u32 %v383, 7
  %v385 = vsub.s32 0, %v384
  %v386 = vrot.slane %v61, %v385
  %389 = vrot.lane.b32.xlu0 %v381, 32
  %v390 = vpop.permute.xlu0 %389
  %v395 = vunpack.c.l.b16 %v53
  %v396 = vunpack.c.l.b16 %v54
  %v397 = vunpack.c.l.b16 %v55
  %v398 = vunpack.c.l.b16 %v56
  %v399 = vpack.c.b16 %v396, %v395
  %v400 = vpack.c.b16 %v398, %v397
  %v404 = vsel %vm178, %v390, 0
  %406 = vmatprep.subr.bf16.mxu0 0
  %407 = vmatpush1.bf16.msra.mxu0 %v399
  %408 = vmatprep.subr.bf16.mxu0 0
  %409 = vmatpush1.bf16.msra.mxu0 %v400
  %410 = vmatprep.subr.bf16.mxu0 0
  %411 = vmatpush1.bf16.msra.mxu0 0
  %412 = vmatprep.subr.bf16.mxu0 0
  %413 = vmatpush1.bf16.msra.mxu0 0
  %414 = vmatprep.subr.bf16.mxu0 0
  %415 = vmatpush1.bf16.msra.mxu0 0
  %416 = vmatprep.subr.bf16.mxu0 0
  %417 = vmatpush1.bf16.msra.mxu0 0
  %418 = vmatprep.subr.bf16.mxu0 0
  %419 = vmatpush1.bf16.msra.mxu0 0
  %420 = vmatprep.subr.bf16.mxu0 0
  %421 = vmatpush1.bf16.msra.mxu0 0
  %422 = vmatprep.subr.bf16.mxu0 0
  %423 = vmatpush1.bf16.msra.mxu0 0
  %424 = vmatprep.subr.bf16.mxu0 0
  %425 = vmatpush1.bf16.msra.mxu0 0
  %426 = vmatprep.subr.bf16.mxu0 0
  %427 = vmatpush1.bf16.msra.mxu0 0
  %428 = vmatprep.subr.bf16.mxu0 0
  %429 = vmatpush1.bf16.msra.mxu0 0
  %430 = vmatprep.subr.bf16.mxu0 0
  %431 = vmatpush1.bf16.msra.mxu0 0
  %432 = vmatprep.subr.bf16.mxu0 0
  %433 = vmatpush1.bf16.msra.mxu0 0
  %434 = vmatprep.subr.bf16.mxu0 0
  %435 = vmatpush1.bf16.msra.mxu0 0
  %436 = vmatprep.subr.bf16.mxu0 0
  %437 = vmatpush1.bf16.msra.mxu0 0
  %438 = vmatprep.mubr.bf16.mxu0 0
  %439 = vmatmul.mubr.bf16.gmra.mrb[0].mxu0 %v404
  %v440 = vpop.f32.mrb[0].mxu0
  %v441 = vadd.f32 %v386, %v440
  %v442 = vpop.f32.mrb[0].mxu0
  %v443 = vpop.f32.mrb[0].mxu0
  %v444 = vpop.f32.mrb[0].mxu0
  %445 = vdwg.mxu0
  %446 = vmatprep.subr.bf16.mxu0 0
  %447 = vmatpush1.bf16.msra.mxu0 %v174
  %448 = vmatprep.subr.bf16.mxu0 0
  %449 = vmatpush1.bf16.msra.mxu0 %v175
  %450 = vmatprep.subr.bf16.mxu0 0
  %451 = vmatpush1.bf16.msra.mxu0 0
  %452 = vmatprep.subr.bf16.mxu0 0
  %453 = vmatpush1.bf16.msra.mxu0 0
  %454 = vmatprep.subr.bf16.mxu0 0
  %455 = vmatpush1.bf16.msra.mxu0 0
  %456 = vmatprep.subr.bf16.mxu0 0
  %457 = vmatpush1.bf16.msra.mxu0 0
  %458 = vmatprep.subr.bf16.mxu0 0
  %459 = vmatpush1.bf16.msra.mxu0 0
  %460 = vmatprep.subr.bf16.mxu0 0
  %461 = vmatpush1.bf16.msra.mxu0 0
  %462 = vmatprep.subr.bf16.mxu0 0
  %463 = vmatpush1.bf16.msra.mxu0 0
  %464 = vmatprep.subr.bf16.mxu0 0
  %465 = vmatpush1.bf16.msra.mxu0 0
  %466 = vmatprep.subr.bf16.mxu0 0
  %467 = vmatpush1.bf16.msra.mxu0 0
  %468 = vmatprep.subr.bf16.mxu0 0
  %469 = vmatpush1.bf16.msra.mxu0 0
  %470 = vmatprep.subr.bf16.mxu0 0
  %471 = vmatpush1.bf16.msra.mxu0 0
  %472 = vmatprep.subr.bf16.mxu0 0
  %473 = vmatpush1.bf16.msra.mxu0 0
  %474 = vmatprep.subr.bf16.mxu0 0
  %475 = vmatpush1.bf16.msra.mxu0 0
  %476 = vmatprep.subr.bf16.mxu0 0
  %477 = vmatpush1.bf16.msra.mxu0 0
  %478 = vmatprep.mubr.bf16.mxu0 0
  %479 = vmatmul.mubr.bf16.gmra.mrb[0].mxu0 %v266
  %v480 = vpop.f32.mrb[0].mxu0
  %v481 = vadd.f32 0.0, %v480
  %v482 = vpop.f32.mrb[0].mxu0
  %v483 = vpop.f32.mrb[0].mxu0
  %v484 = vpop.f32.mrb[0].mxu0
  %485 = vdwg.mxu0
  %v486 = vadd.f32 %v139, %v481
  %v487 = vtanh.pop %v486
  %v488 = vmul.f32 %v487, %v32
  %v489 = vadd.f32 %v488, %v33
  %v490 = vmul.f32 %v489, %v236
  %492 = vrot.lane.b32.xlu0 %v489, 64
  %v493 = vpop.permute.xlu0 %492
  %v495 = vmul.f32 %v489, %v493
  %497 = vrot.lane.b32.xlu0 %v495, 32
  %v498 = vpop.permute.xlu0 %497
  %v500 = vadd.f32 %v490, %v498
  %v501 = vtanh.pop %v500
  %503 = vrot.lane.b32.xlu0 %v501, 64
  %v504 = vpop.permute.xlu0 %503
  %v506 = vmul.f32 %v489, %v504
  %v507 = vpack.c.bf16 %v506, %v506
  %509 = vrot.lane.b32.xlu0 %v507, 32
  %v510 = vpop.permute.xlu0 %509
  %v512 = vsel %vm178, %v510, 0
  %514 = vmatprep.subr.bf16.mxu0 0
  %515 = vmatpush1.bf16.msra.mxu0 %v261
  %516 = vmatprep.subr.bf16.mxu0 0
  %517 = vmatpush1.bf16.msra.mxu0 %v262
  %518 = vmatprep.subr.bf16.mxu0 0
  %519 = vmatpush1.bf16.msra.mxu0 0
  %520 = vmatprep.subr.bf16.mxu0 0
  %521 = vmatpush1.bf16.msra.mxu0 0
  %522 = vmatprep.subr.bf16.mxu0 0
  %523 = vmatpush1.bf16.msra.mxu0 0
  %524 = vmatprep.subr.bf16.mxu0 0
  %525 = vmatpush1.bf16.msra.mxu0 0
  %526 = vmatprep.subr.bf16.mxu0 0
  %527 = vmatpush1.bf16.msra.mxu0 0
  %528 = vmatprep.subr.bf16.mxu0 0
  %529 = vmatpush1.bf16.msra.mxu0 0
  %530 = vmatprep.subr.bf16.mxu0 0
  %531 = vmatpush1.bf16.msra.mxu0 0
  %532 = vmatprep.subr.bf16.mxu0 0
  %533 = vmatpush1.bf16.msra.mxu0 0
  %534 = vmatprep.subr.bf16.mxu0 0
  %535 = vmatpush1.bf16.msra.mxu0 0
  %536 = vmatprep.subr.bf16.mxu0 0
  %537 = vmatpush1.bf16.msra.mxu0 0
  %538 = vmatprep.subr.bf16.mxu0 0
  %539 = vmatpush1.bf16.msra.mxu0 0
  %540 = vmatprep.subr.bf16.mxu0 0
  %541 = vmatpush1.bf16.msra.mxu0 0
  %542 = vmatprep.subr.bf16.mxu0 0
  %543 = vmatpush1.bf16.msra.mxu0 0
  %544 = vmatprep.subr.bf16.mxu0 0
  %545 = vmatpush1.bf16.msra.mxu0 0
  %546 = vmatprep.mubr.bf16.mxu0 0
  %547 = vmatmul.mubr.bf16.gmra.mrb[0].mxu0 %v512
  %v548 = vpop.f32.mrb[0].mxu0
  %v549 = vadd.f32 %v248, %v548
  %v550 = vpop.f32.mrb[0].mxu0
  %v551 = vpop.f32.mrb[0].mxu0
  %v552 = vpop.f32.mrb[0].mxu0
  %553 = vdwg.mxu0
  %v558 = vunpack.c.l.b16 %v44
  %v559 = vunpack.c.l.b16 %v45
  %v560 = vunpack.c.l.b16 %v46
  %v561 = vunpack.c.l.b16 %v47
  %v562 = vpack.c.b16 %v559, %v558
  %v563 = vpack.c.b16 %v561, %v560
  %566 = vmatprep.subr.bf16.mxu0 0
  %567 = vmatpush1.bf16.msra.mxu0 %v562
  %568 = vmatprep.subr.bf16.mxu0 0
  %569 = vmatpush1.bf16.msra.mxu0 %v563
  %570 = vmatprep.subr.bf16.mxu0 0
  %571 = vmatpush1.bf16.msra.mxu0 0
  %572 = vmatprep.subr.bf16.mxu0 0
  %573 = vmatpush1.bf16.msra.mxu0 0
  %574 = vmatprep.subr.bf16.mxu0 0
  %575 = vmatpush1.bf16.msra.mxu0 0
  %576 = vmatprep.subr.bf16.mxu0 0
  %577 = vmatpush1.bf16.msra.mxu0 0
  %578 = vmatprep.subr.bf16.mxu0 0
  %579 = vmatpush1.bf16.msra.mxu0 0
  %580 = vmatprep.subr.bf16.mxu0 0
  %581 = vmatpush1.bf16.msra.mxu0 0
  %582 = vmatprep.subr.bf16.mxu0 0
  %583 = vmatpush1.bf16.msra.mxu0 0
  %584 = vmatprep.subr.bf16.mxu0 0
  %585 = vmatpush1.bf16.msra.mxu0 0
  %586 = vmatprep.subr.bf16.mxu0 0
  %587 = vmatpush1.bf16.msra.mxu0 0
  %588 = vmatprep.subr.bf16.mxu0 0
  %589 = vmatpush1.bf16.msra.mxu0 0
  %590 = vmatprep.subr.bf16.mxu0 0
  %591 = vmatpush1.bf16.msra.mxu0 0
  %592 = vmatprep.subr.bf16.mxu0 0
  %593 = vmatpush1.bf16.msra.mxu0 0
  %594 = vmatprep.subr.bf16.mxu0 0
  %595 = vmatpush1.bf16.msra.mxu0 0
  %596 = vmatprep.subr.bf16.mxu0 0
  %597 = vmatpush1.bf16.msra.mxu0 0
  %598 = vmatprep.mubr.bf16.mxu0 0
  %599 = vmatmul.mubr.bf16.gmra.mrb[0].mxu0 %v180
  %v600 = vpop.f32.mrb[0].mxu0
  %v601 = vadd.f32 0.0, %v600
  %v602 = vpop.f32.mrb[0].mxu0
  %v603 = vpop.f32.mrb[0].mxu0
  %v604 = vpop.f32.mrb[0].mxu0
  %605 = vdwg.mxu0
  %v606 = vadd.f32 %v441, %v601
  %v607 = vtanh.pop %v606
  %v608 = vmul.f32 %v607, %v32
  %v609 = vadd.f32 %v608, %v33
  %v610 = vmul.f32 %v609, 0.0
  %612 = vrot.lane.b32.xlu0 %v609, 64
  %v613 = vpop.permute.xlu0 %612
  %v615 = vmul.f32 %v609, %v613
  %617 = vrot.lane.b32.xlu0 %v615, 32
  %v618 = vpop.permute.xlu0 %617
  %v620 = vadd.f32 %v610, %v618
  %v621 = vtanh.pop %v620
  %623 = vrot.lane.b32.xlu0 %v621, 64
  %v624 = vpop.permute.xlu0 %623
  %v626 = vmul.f32 %v609, %v624
  %v627 = vpack.c.bf16 %v626, %v626
  %628 = vmatprep.subr.bf16.mxu0 0
  %629 = vmatpush1.bf16.msra.mxu0 %v316
  %630 = vmatprep.subr.bf16.mxu0 0
  %631 = vmatpush1.bf16.msra.mxu0 %v317
  %632 = vmatprep.subr.bf16.mxu0 0
  %633 = vmatpush1.bf16.msra.mxu0 0
  %634 = vmatprep.subr.bf16.mxu0 0
  %635 = vmatpush1.bf16.msra.mxu0 0
  %636 = vmatprep.subr.bf16.mxu0 0
  %637 = vmatpush1.bf16.msra.mxu0 0
  %638 = vmatprep.subr.bf16.mxu0 0
  %639 = vmatpush1.bf16.msra.mxu0 0
  %640 = vmatprep.subr.bf16.mxu0 0
  %641 = vmatpush1.bf16.msra.mxu0 0
  %642 = vmatprep.subr.bf16.mxu0 0
  %643 = vmatpush1.bf16.msra.mxu0 0
  %644 = vmatprep.subr.bf16.mxu0 0
  %645 = vmatpush1.bf16.msra.mxu0 0
  %646 = vmatprep.subr.bf16.mxu0 0
  %647 = vmatpush1.bf16.msra.mxu0 0
  %648 = vmatprep.subr.bf16.mxu0 0
  %649 = vmatpush1.bf16.msra.mxu0 0
  %650 = vmatprep.subr.bf16.mxu0 0
  %651 = vmatpush1.bf16.msra.mxu0 0
  %652 = vmatprep.subr.bf16.mxu0 0
  %653 = vmatpush1.bf16.msra.mxu0 0
  %654 = vmatprep.subr.bf16.mxu0 0
  %655 = vmatpush1.bf16.msra.mxu0 0
  %656 = vmatprep.subr.bf16.mxu0 0
  %657 = vmatpush1.bf16.msra.mxu0 0
  %658 = vmatprep.subr.bf16.mxu0 0
  %659 = vmatpush1.bf16.msra.mxu0 0
  %660 = vmatprep.mubr.bf16.mxu0 0
  %661 = vmatmul.mubr.bf16.gmra.mrb[0].mxu0 %v404
  %v662 = vpop.f32.mrb[0].mxu0
  %v663 = vadd.f32 0.0, %v662
  %v664 = vpop.f32.mrb[0].mxu0
  %v665 = vpop.f32.mrb[0].mxu0
  %v666 = vpop.f32.mrb[0].mxu0
  %667 = vdwg.mxu0
  %v668 = vadd.f32 %v549, %v663
  %v669 = vtanh.pop %v668
  %v670 = vmul.f32 %v669, %v32
  %v671 = vadd.f32 %v670, %v33
  %v672 = vmul.f32 %v671, %v374
  %674 = vrot.lane.b32.xlu0 %v671, 64
  %v675 = vpop.permute.xlu0 %674
  %v677 = vmul.f32 %v671, %v675
  %679 = vrot.lane.b32.xlu0 %v677, 32
  %v680 = vpop.permute.xlu0 %679
  %v682 = vadd.f32 %v672, %v680
  %v683 = vtanh.pop %v682
  %685 = vrot.lane.b32.xlu0 %v683, 64
  %v686 = vpop.permute.xlu0 %685
  %v688 = vmul.f32 %v671, %v686
  %v689 = vpack.c.bf16 %v688, %v688
  %691 = vrot.lane.b32.xlu0 %v689, 32
  %v692 = vpop.permute.xlu0 %691
  %v694 = vsel %vm178, %v692, 0
  %696 = vmatprep.subr.bf16.mxu0 0
  %697 = vmatpush1.bf16.msra.mxu0 %v399
  %698 = vmatprep.subr.bf16.mxu0 0
  %699 = vmatpush1.bf16.msra.mxu0 %v400
  %700 = vmatprep.subr.bf16.mxu0 0
  %701 = vmatpush1.bf16.msra.mxu0 0
  %702 = vmatprep.subr.bf16.mxu0 0
  %703 = vmatpush1.bf16.msra.mxu0 0
  %704 = vmatprep.subr.bf16.mxu0 0
  %705 = vmatpush1.bf16.msra.mxu0 0
  %706 = vmatprep.subr.bf16.mxu0 0
  %707 = vmatpush1.bf16.msra.mxu0 0
  %708 = vmatprep.subr.bf16.mxu0 0
  %709 = vmatpush1.bf16.msra.mxu0 0
  %710 = vmatprep.subr.bf16.mxu0 0
  %711 = vmatpush1.bf16.msra.mxu0 0
  %712 = vmatprep.subr.bf16.mxu0 0
  %713 = vmatpush1.bf16.msra.mxu0 0
  %714 = vmatprep.subr.bf16.mxu0 0
  %715 = vmatpush1.bf16.msra.mxu0 0
  %716 = vmatprep.subr.bf16.mxu0 0
  %717 = vmatpush1.bf16.msra.mxu0 0
  %718 = vmatprep.subr.bf16.mxu0 0
  %719 = vmatpush1.bf16.msra.mxu0 0
  %720 = vmatprep.subr.bf16.mxu0 0
  %721 = vmatpush1.bf16.msra.mxu0 0
  %722 = vmatprep.subr.bf16.mxu0 0
  %723 = vmatpush1.bf16.msra.mxu0 0
  %724 = vmatprep.subr.bf16.mxu0 0
  %725 = vmatpush1.bf16.msra.mxu0 0
  %726 = vmatprep.subr.bf16.mxu0 0
  %727 = vmatpush1.bf16.msra.mxu0 0
  %728 = vmatprep.mubr.bf16.mxu0 0
  %729 = vmatmul.mubr.bf16.gmra.mrb[0].mxu0 %v694
  %v730 = vpop.f32.mrb[0].mxu0
  %v731 = vadd.f32 %v386, %v730
  %v732 = vpop.f32.mrb[0].mxu0
  %v733 = vpop.f32.mrb[0].mxu0
  %v734 = vpop.f32.mrb[0].mxu0
  %735 = vdwg.mxu0
  %736 = vmatprep.subr.bf16.mxu0 0
  %737 = vmatpush1.bf16.msra.mxu0 %v174
  %738 = vmatprep.subr.bf16.mxu0 0
  %739 = vmatpush1.bf16.msra.mxu0 %v175
  %740 = vmatprep.subr.bf16.mxu0 0
  %741 = vmatpush1.bf16.msra.mxu0 0
  %742 = vmatprep.subr.bf16.mxu0 0
  %743 = vmatpush1.bf16.msra.mxu0 0
  %744 = vmatprep.subr.bf16.mxu0 0
  %745 = vmatpush1.bf16.msra.mxu0 0
  %746 = vmatprep.subr.bf16.mxu0 0
  %747 = vmatpush1.bf16.msra.mxu0 0
  %748 = vmatprep.subr.bf16.mxu0 0
  %749 = vmatpush1.bf16.msra.mxu0 0
  %750 = vmatprep.subr.bf16.mxu0 0
  %751 = vmatpush1.bf16.msra.mxu0 0
  %752 = vmatprep.subr.bf16.mxu0 0
  %753 = vmatpush1.bf16.msra.mxu0 0
  %754 = vmatprep.subr.bf16.mxu0 0
  %755 = vmatpush1.bf16.msra.mxu0 0
  %756 = vmatprep.subr.bf16.mxu0 0
  %757 = vmatpush1.bf16.msra.mxu0 0
  %758 = vmatprep.subr.bf16.mxu0 0
  %759 = vmatpush1.bf16.msra.mxu0 0
  %760 = vmatprep.subr.bf16.mxu0 0
  %761 = vmatpush1.bf16.msra.mxu0 0
  %762 = vmatprep.subr.bf16.mxu0 0
  %763 = vmatpush1.bf16.msra.mxu0 0
  %764 = vmatprep.subr.bf16.mxu0 0
  %765 = vmatpush1.bf16.msra.mxu0 0
  %766 = vmatprep.subr.bf16.mxu0 0
  %767 = vmatpush1.bf16.msra.mxu0 0
  %768 = vmatprep.mubr.bf16.mxu0 0
  %769 = vmatmul.mubr.bf16.gmra.mrb[0].mxu0 %v512
  %v770 = vpop.f32.mrb[0].mxu0
  %v771 = vadd.f32 0.0, %v770
  %v772 = vpop.f32.mrb[0].mxu0
  %v773 = vpop.f32.mrb[0].mxu0
  %v774 = vpop.f32.mrb[0].mxu0
  %775 = vdwg.mxu0
  %v776 = vadd.f32 %v144, %v771
  %v777 = vtanh.pop %v776
  %v778 = vmul.f32 %v777, %v32
  %v779 = vadd.f32 %v778, %v33
  %v780 = vmul.f32 %v779, %v500
  %782 = vrot.lane.b32.xlu0 %v779, 64
  %v783 = vpop.permute.xlu0 %782
  %v785 = vmul.f32 %v779, %v783
  %787 = vrot.lane.b32.xlu0 %v785, 32
  %v788 = vpop.permute.xlu0 %787
  %v790 = vadd.f32 %v780, %v788
  %v791 = vtanh.pop %v790
  %793 = vrot.lane.b32.xlu0 %v791, 64
  %v794 = vpop.permute.xlu0 %793
  %v796 = vmul.f32 %v779, %v794
  %v797 = vpack.c.bf16 %v796, %v796
  %799 = vrot.lane.b32.xlu0 %v797, 32
  %v800 = vpop.permute.xlu0 %799
  %v802 = vsel %vm178, %v800, 0
  %804 = vmatprep.subr.bf16.mxu0 0
  %805 = vmatpush1.bf16.msra.mxu0 %v261
  %806 = vmatprep.subr.bf16.mxu0 0
  %807 = vmatpush1.bf16.msra.mxu0 %v262
  %808 = vmatprep.subr.bf16.mxu0 0
  %809 = vmatpush1.bf16.msra.mxu0 0
  %810 = vmatprep.subr.bf16.mxu0 0
  %811 = vmatpush1.bf16.msra.mxu0 0
  %812 = vmatprep.subr.bf16.mxu0 0
  %813 = vmatpush1.bf16.msra.mxu0 0
  %814 = vmatprep.subr.bf16.mxu0 0
  %815 = vmatpush1.bf16.msra.mxu0 0
  %816 = vmatprep.subr.bf16.mxu0 0
  %817 = vmatpush1.bf16.msra.mxu0 0
  %818 = vmatprep.subr.bf16.mxu0 0
  %819 = vmatpush1.bf16.msra.mxu0 0
  %820 = vmatprep.subr.bf16.mxu0 0
  %821 = vmatpush1.bf16.msra.mxu0 0
  %822 = vmatprep.subr.bf16.mxu0 0
  %823 = vmatpush1.bf16.msra.mxu0 0
  %824 = vmatprep.subr.bf16.mxu0 0
  %825 = vmatpush1.bf16.msra.mxu0 0
  %826 = vmatprep.subr.bf16.mxu0 0
  %827 = vmatpush1.bf16.msra.mxu0 0
  %828 = vmatprep.subr.bf16.mxu0 0
  %829 = vmatpush1.bf16.msra.mxu0 0
  %830 = vmatprep.subr.bf16.mxu0 0
  %831 = vmatpush1.bf16.msra.mxu0 0
  %832 = vmatprep.subr.bf16.mxu0 0
  %833 = vmatpush1.bf16.msra.mxu0 0
  %834 = vmatprep.subr.bf16.mxu0 0
  %835 = vmatpush1.bf16.msra.mxu0 0
  %836 = vmatprep.mubr.bf16.mxu0 0
  %837 = vmatmul.mubr.bf16.gmra.mrb[0].mxu0 %v802
  %v838 = vpop.f32.mrb[0].mxu0
  %v839 = vadd.f32 %v248, %v838
  %v840 = vpop.f32.mrb[0].mxu0
  %v841 = vpop.f32.mrb[0].mxu0
  %v842 = vpop.f32.mrb[0].mxu0
  %843 = vdwg.mxu0
  %845 = vrot.lane.b32.xlu0 %v627, 32
  %v846 = vpop.permute.xlu0 %845
  %v848 = vsel %vm178, %v846, 0
  %850 = vmatprep.subr.bf16.mxu0 0
  %851 = vmatpush1.bf16.msra.mxu0 %v562
  %852 = vmatprep.subr.bf16.mxu0 0
  %853 = vmatpush1.bf16.msra.mxu0 %v563
  %854 = vmatprep.subr.bf16.mxu0 0
  %855 = vmatpush1.bf16.msra.mxu0 0
  %856 = vmatprep.subr.bf16.mxu0 0
  %857 = vmatpush1.bf16.msra.mxu0 0
  %858 = vmatprep.subr.bf16.mxu0 0
  %859 = vmatpush1.bf16.msra.mxu0 0
  %860 = vmatprep.subr.bf16.mxu0 0
  %861 = vmatpush1.bf16.msra.mxu0 0
  %862 = vmatprep.subr.bf16.mxu0 0
  %863 = vmatpush1.bf16.msra.mxu0 0
  %864 = vmatprep.subr.bf16.mxu0 0
  %865 = vmatpush1.bf16.msra.mxu0 0
  %866 = vmatprep.subr.bf16.mxu0 0
  %867 = vmatpush1.bf16.msra.mxu0 0
  %868 = vmatprep.subr.bf16.mxu0 0
  %869 = vmatpush1.bf16.msra.mxu0 0
  %870 = vmatprep.subr.bf16.mxu0 0
  %871 = vmatpush1.bf16.msra.mxu0 0
  %872 = vmatprep.subr.bf16.mxu0 0
  %873 = vmatpush1.bf16.msra.mxu0 0
  %874 = vmatprep.subr.bf16.mxu0 0
  %875 = vmatpush1.bf16.msra.mxu0 0
  %876 = vmatprep.subr.bf16.mxu0 0
  %877 = vmatpush1.bf16.msra.mxu0 0
  %878 = vmatprep.subr.bf16.mxu0 0
  %879 = vmatpush1.bf16.msra.mxu0 0
  %880 = vmatprep.subr.bf16.mxu0 0
  %881 = vmatpush1.bf16.msra.mxu0 0
  %882 = vmatprep.mubr.bf16.mxu0 0
  %883 = vmatmul.mubr.bf16.gmra.mrb[0].mxu0 %v848
  %v884 = vpop.f32.mrb[0].mxu0
  %v885 = vadd.f32 0.0, %v884
  %v886 = vpop.f32.mrb[0].mxu0
  %v887 = vpop.f32.mrb[0].mxu0
  %v888 = vpop.f32.mrb[0].mxu0
  %889 = vdwg.mxu0
  %v890 = vadd.f32 %v731, %v885
  %v891 = vtanh.pop %v890
  %v892 = vmul.f32 %v891, %v32
  %v893 = vadd.f32 %v892, %v33
  %v894 = vmul.f32 %v893, %v620
  %896 = vrot.lane.b32.xlu0 %v893, 64
  %v897 = vpop.permute.xlu0 %896
  %v899 = vmul.f32 %v893, %v897
  %901 = vrot.lane.b32.xlu0 %v899, 32
  %v902 = vpop.permute.xlu0 %901
  %v904 = vadd.f32 %v894, %v902
  %v905 = vtanh.pop %v904
  %907 = vrot.lane.b32.xlu0 %v905, 64
  %v908 = vpop.permute.xlu0 %907
  %v910 = vmul.f32 %v893, %v908
  %v911 = vpack.c.bf16 %v910, %v910
  %912 = vmatprep.subr.bf16.mxu0 0
  %913 = vmatpush1.bf16.msra.mxu0 %v316
  %914 = vmatprep.subr.bf16.mxu0 0
  %915 = vmatpush1.bf16.msra.mxu0 %v317
  %916 = vmatprep.subr.bf16.mxu0 0
  %917 = vmatpush1.bf16.msra.mxu0 0
  %918 = vmatprep.subr.bf16.mxu0 0
  %919 = vmatpush1.bf16.msra.mxu0 0
  %920 = vmatprep.subr.bf16.mxu0 0
  %921 = vmatpush1.bf16.msra.mxu0 0
  %922 = vmatprep.subr.bf16.mxu0 0
  %923 = vmatpush1.bf16.msra.mxu0 0
  %924 = vmatprep.subr.bf16.mxu0 0
  %925 = vmatpush1.bf16.msra.mxu0 0
  %926 = vmatprep.subr.bf16.mxu0 0
  %927 = vmatpush1.bf16.msra.mxu0 0
  %928 = vmatprep.subr.bf16.mxu0 0
  %929 = vmatpush1.bf16.msra.mxu0 0
  %930 = vmatprep.subr.bf16.mxu0 0
  %931 = vmatpush1.bf16.msra.mxu0 0
  %932 = vmatprep.subr.bf16.mxu0 0
  %933 = vmatpush1.bf16.msra.mxu0 0
  %934 = vmatprep.subr.bf16.mxu0 0
  %935 = vmatpush1.bf16.msra.mxu0 0
  %936 = vmatprep.subr.bf16.mxu0 0
  %937 = vmatpush1.bf16.msra.mxu0 0
  %938 = vmatprep.subr.bf16.mxu0 0
  %939 = vmatpush1.bf16.msra.mxu0 0
  %940 = vmatprep.subr.bf16.mxu0 0
  %941 = vmatpush1.bf16.msra.mxu0 0
  %942 = vmatprep.subr.bf16.mxu0 0
  %943 = vmatpush1.bf16.msra.mxu0 0
  %944 = vmatprep.mubr.bf16.mxu0 0
  %945 = vmatmul.mubr.bf16.gmra.mrb[0].mxu0 %v694
  %v946 = vpop.f32.mrb[0].mxu0
  %v947 = vadd.f32 0.0, %v946
  %v948 = vpop.f32.mrb[0].mxu0
  %v949 = vpop.f32.mrb[0].mxu0
  %v950 = vpop.f32.mrb[0].mxu0
  %951 = vdwg.mxu0
  %v952 = vadd.f32 %v839, %v947
  %v953 = vtanh.pop %v952
  %v954 = vmul.f32 %v953, %v32
  %v955 = vadd.f32 %v954, %v33
  %v956 = vmul.f32 %v955, %v682
  %958 = vrot.lane.b32.xlu0 %v955, 64
  %v959 = vpop.permute.xlu0 %958
  %v961 = vmul.f32 %v955, %v959
  %963 = vrot.lane.b32.xlu0 %v961, 32
  %v964 = vpop.permute.xlu0 %963
  %v966 = vadd.f32 %v956, %v964
  %v967 = vtanh.pop %v966
  %969 = vrot.lane.b32.xlu0 %v967, 64
  %v970 = vpop.permute.xlu0 %969
  %v972 = vmul.f32 %v955, %v970
  %v973 = vpack.c.bf16 %v972, %v972
  %975 = vrot.lane.b32.xlu0 %v973, 32
  %v976 = vpop.permute.xlu0 %975
  %v978 = vsel %vm178, %v976, 0
  %980 = vmatprep.subr.bf16.mxu0 0
  %981 = vmatpush1.bf16.msra.mxu0 %v399
  %982 = vmatprep.subr.bf16.mxu0 0
  %983 = vmatpush1.bf16.msra.mxu0 %v400
  %984 = vmatprep.subr.bf16.mxu0 0
  %985 = vmatpush1.bf16.msra.mxu0 0
  %986 = vmatprep.subr.bf16.mxu0 0
  %987 = vmatpush1.bf16.msra.mxu0 0
  %988 = vmatprep.subr.bf16.mxu0 0
  %989 = vmatpush1.bf16.msra.mxu0 0
  %990 = vmatprep.subr.bf16.mxu0 0
  %991 = vmatpush1.bf16.msra.mxu0 0
  %992 = vmatprep.subr.bf16.mxu0 0
  %993 = vmatpush1.bf16.msra.mxu0 0
  %994 = vmatprep.subr.bf16.mxu0 0
  %995 = vmatpush1.bf16.msra.mxu0 0
  %996 = vmatprep.subr.bf16.mxu0 0
  %997 = vmatpush1.bf16.msra.mxu0 0
  %998 = vmatprep.subr.bf16.mxu0 0
  %999 = vmatpush1.bf16.msra.mxu0 0
  %1000 = vmatprep.subr.bf16.mxu0 0
  %1001 = vmatpush1.bf16.msra.mxu0 0
  %1002 = vmatprep.subr.bf16.mxu0 0
  %1003 = vmatpush1.bf16.msra.mxu0 0
  %1004 = vmatprep.subr.bf16.mxu0 0
  %1005 = vmatpush1.bf16.msra.mxu0 0
  %1006 = vmatprep.subr.bf16.mxu0 0
  %1007 = vmatpush1.bf16.msra.mxu0 0
  %1008 = vmatprep.subr.bf16.mxu0 0
  %1009 = vmatpush1.bf16.msra.mxu0 0
  %1010 = vmatprep.subr.bf16.mxu0 0
  %1011 = vmatpush1.bf16.msra.mxu0 0
  %1012 = vmatprep.mubr.bf16.mxu0 0
  %1013 = vmatmul.mubr.bf16.gmra.mrb[0].mxu0 %v978
  %v1014 = vpop.f32.mrb[0].mxu0
  %v1015 = vadd.f32 %v386, %v1014
  %v1016 = vpop.f32.mrb[0].mxu0
  %v1017 = vpop.f32.mrb[0].mxu0
  %v1018 = vpop.f32.mrb[0].mxu0
  %1019 = vdwg.mxu0
  %1020 = vmatprep.subr.bf16.mxu0 0
  %1021 = vmatpush1.bf16.msra.mxu0 %v174
  %1022 = vmatprep.subr.bf16.mxu0 0
  %1023 = vmatpush1.bf16.msra.mxu0 %v175
  %1024 = vmatprep.subr.bf16.mxu0 0
  %1025 = vmatpush1.bf16.msra.mxu0 0
  %1026 = vmatprep.subr.bf16.mxu0 0
  %1027 = vmatpush1.bf16.msra.mxu0 0
  %1028 = vmatprep.subr.bf16.mxu0 0
  %1029 = vmatpush1.bf16.msra.mxu0 0
  %1030 = vmatprep.subr.bf16.mxu0 0
  %1031 = vmatpush1.bf16.msra.mxu0 0
  %1032 = vmatprep.subr.bf16.mxu0 0
  %1033 = vmatpush1.bf16.msra.mxu0 0
  %1034 = vmatprep.subr.bf16.mxu0 0
  %1035 = vmatpush1.bf16.msra.mxu0 0
  %1036 = vmatprep.subr.bf16.mxu0 0
  %1037 = vmatpush1.bf16.msra.mxu0 0
  %1038 = vmatprep.subr.bf16.mxu0 0
  %1039 = vmatpush1.bf16.msra.mxu0 0
  %1040 = vmatprep.subr.bf16.mxu0 0
  %1041 = vmatpush1.bf16.msra.mxu0 0
  %1042 = vmatprep.subr.bf16.mxu0 0
  %1043 = vmatpush1.bf16.msra.mxu0 0
  %1044 = vmatprep.subr.bf16.mxu0 0
  %1045 = vmatpush1.bf16.msra.mxu0 0
  %1046 = vmatprep.subr.bf16.mxu0 0
  %1047 = vmatpush1.bf16.msra.mxu0 0
  %1048 = vmatprep.subr.bf16.mxu0 0
  %1049 = vmatpush1.bf16.msra.mxu0 0
  %1050 = vmatprep.subr.bf16.mxu0 0
  %1051 = vmatpush1.bf16.msra.mxu0 0
  %1052 = vmatprep.mubr.bf16.mxu0 0
  %1053 = vmatmul.mubr.bf16.gmra.mrb[0].mxu0 %v802
  %v1054 = vpop.f32.mrb[0].mxu0
  %v1055 = vadd.f32 0.0, %v1054
  %v1056 = vpop.f32.mrb[0].mxu0
  %v1057 = vpop.f32.mrb[0].mxu0
  %v1058 = vpop.f32.mrb[0].mxu0
  %1059 = vdwg.mxu0
  %v1060 = vadd.f32 %v147, %v1055
  %v1061 = vtanh.pop %v1060
  %v1062 = vmul.f32 %v1061, %v32
  %v1063 = vadd.f32 %v1062, %v33
  %v1064 = vmul.f32 %v1063, %v790
  %1066 = vrot.lane.b32.xlu0 %v1063, 64
  %v1067 = vpop.permute.xlu0 %1066
  %v1069 = vmul.f32 %v1063, %v1067
  %1071 = vrot.lane.b32.xlu0 %v1069, 32
  %v1072 = vpop.permute.xlu0 %1071
  %v1074 = vadd.f32 %v1064, %v1072
  %v1075 = vtanh.pop %v1074
  %1077 = vrot.lane.b32.xlu0 %v1075, 64
  %v1078 = vpop.permute.xlu0 %1077
  %v1080 = vmul.f32 %v1063, %v1078
  %v1081 = vpack.c.bf16 %v1080, %v1080
  %1083 = vrot.lane.b32.xlu0 %v1081, 32
  %v1084 = vpop.permute.xlu0 %1083
  %v1086 = vsel %vm178, %v1084, 0
  %1088 = vmatprep.subr.bf16.mxu0 0
  %1089 = vmatpush1.bf16.msra.mxu0 %v261
  %1090 = vmatprep.subr.bf16.mxu0 0
  %1091 = vmatpush1.bf16.msra.mxu0 %v262
  %1092 = vmatprep.subr.bf16.mxu0 0
  %1093 = vmatpush1.bf16.msra.mxu0 0
  %1094 = vmatprep.subr.bf16.mxu0 0
  %1095 = vmatpush1.bf16.msra.mxu0 0
  %1096 = vmatprep.subr.bf16.mxu0 0
  %1097 = vmatpush1.bf16.msra.mxu0 0
  %1098 = vmatprep.subr.bf16.mxu0 0
  %1099 = vmatpush1.bf16.msra.mxu0 0
  %1100 = vmatprep.subr.bf16.mxu0 0
  %1101 = vmatpush1.bf16.msra.mxu0 0
  %1102 = vmatprep.subr.bf16.mxu0 0
  %1103 = vmatpush1.bf16.msra.mxu0 0
  %1104 = vmatprep.subr.bf16.mxu0 0
  %1105 = vmatpush1.bf16.msra.mxu0 0
  %1106 = vmatprep.subr.bf16.mxu0 0
  %1107 = vmatpush1.bf16.msra.mxu0 0
  %1108 = vmatprep.subr.bf16.mxu0 0
  %1109 = vmatpush1.bf16.msra.mxu0 0
  %1110 = vmatprep.subr.bf16.mxu0 0
  %1111 = vmatpush1.bf16.msra.mxu0 0
  %1112 = vmatprep.subr.bf16.mxu0 0
  %1113 = vmatpush1.bf16.msra.mxu0 0
  %1114 = vmatprep.subr.bf16.mxu0 0
  %1115 = vmatpush1.bf16.msra.mxu0 0
  %1116 = vmatprep.subr.bf16.mxu0 0
  %1117 = vmatpush1.bf16.msra.mxu0 0
  %1118 = vmatprep.subr.bf16.mxu0 0
  %1119 = vmatpush1.bf16.msra.mxu0 0
  %1120 = vmatprep.mubr.bf16.mxu0 0
  %1121 = vmatmul.mubr.bf16.gmra.mrb[0].mxu0 %v1086
  %v1122 = vpop.f32.mrb[0].mxu0
  %v1123 = vadd.f32 %v248, %v1122
  %v1124 = vpop.f32.mrb[0].mxu0
  %v1125 = vpop.f32.mrb[0].mxu0
  %v1126 = vpop.f32.mrb[0].mxu0
  %1127 = vdwg.mxu0
  %1129 = vrot.lane.b32.xlu0 %v911, 32
  %v1130 = vpop.permute.xlu0 %1129
  %v1132 = vsel %vm178, %v1130, 0
  %1134 = vmatprep.subr.bf16.mxu0 0
  %1135 = vmatpush1.bf16.msra.mxu0 %v562
  %1136 = vmatprep.subr.bf16.mxu0 0
  %1137 = vmatpush1.bf16.msra.mxu0 %v563
  %1138 = vmatprep.subr.bf16.mxu0 0
  %1139 = vmatpush1.bf16.msra.mxu0 0
  %1140 = vmatprep.subr.bf16.mxu0 0
  %1141 = vmatpush1.bf16.msra.mxu0 0
  %1142 = vmatprep.subr.bf16.mxu0 0
  %1143 = vmatpush1.bf16.msra.mxu0 0
  %1144 = vmatprep.subr.bf16.mxu0 0
  %1145 = vmatpush1.bf16.msra.mxu0 0
  %1146 = vmatprep.subr.bf16.mxu0 0
  %1147 = vmatpush1.bf16.msra.mxu0 0
  %1148 = vmatprep.subr.bf16.mxu0 0
  %1149 = vmatpush1.bf16.msra.mxu0 0
  %1150 = vmatprep.subr.bf16.mxu0 0
  %1151 = vmatpush1.bf16.msra.mxu0 0
  %1152 = vmatprep.subr.bf16.mxu0 0
  %1153 = vmatpush1.bf16.msra.mxu0 0
  %1154 = vmatprep.subr.bf16.mxu0 0
  %1155 = vmatpush1.bf16.msra.mxu0 0
  %1156 = vmatprep.subr.bf16.mxu0 0
  %1157 = vmatpush1.bf16.msra.mxu0 0
  %1158 = vmatprep.subr.bf16.mxu0 0
  %1159 = vmatpush1.bf16.msra.mxu0 0
  %1160 = vmatprep.subr.bf16.mxu0 0
  %1161 = vmatpush1.bf16.msra.mxu0 0
  %1162 = vmatprep.subr.bf16.mxu0 0
  %1163 = vmatpush1.bf16.msra.mxu0 0
  %1164 = vmatprep.subr.bf16.mxu0 0
  %1165 = vmatpush1.bf16.msra.mxu0 0
  %1166 = vmatprep.mubr.bf16.mxu0 0
  %1167 = vmatmul.mubr.bf16.gmra.mrb[0].mxu0 %v1132
  %v1168 = vpop.f32.mrb[0].mxu0
  %v1169 = vadd.f32 0.0, %v1168
  %v1170 = vpop.f32.mrb[0].mxu0
  %v1171 = vpop.f32.mrb[0].mxu0
  %v1172 = vpop.f32.mrb[0].mxu0
  %1173 = vdwg.mxu0
  %v1174 = vadd.f32 %v1015, %v1169
  %v1175 = vtanh.pop %v1174
  %v1176 = vmul.f32 %v1175, %v32
  %v1177 = vadd.f32 %v1176, %v33
  %v1178 = vmul.f32 %v1177, %v904
  %1180 = vrot.lane.b32.xlu0 %v1177, 64
  %v1181 = vpop.permute.xlu0 %1180
  %v1183 = vmul.f32 %v1177, %v1181
  %1185 = vrot.lane.b32.xlu0 %v1183, 32
  %v1186 = vpop.permute.xlu0 %1185
  %v1188 = vadd.f32 %v1178, %v1186
  %v1189 = vtanh.pop %v1188
  %1191 = vrot.lane.b32.xlu0 %v1189, 64
  %v1192 = vpop.permute.xlu0 %1191
  %v1194 = vmul.f32 %v1177, %v1192
  %v1195 = vpack.c.bf16 %v1194, %v1194
  %1196 = vmatprep.subr.bf16.mxu0 0
  %1197 = vmatpush1.bf16.msra.mxu0 %v316
  %1198 = vmatprep.subr.bf16.mxu0 0
  %1199 = vmatpush1.bf16.msra.mxu0 %v317
  %1200 = vmatprep.subr.bf16.mxu0 0
  %1201 = vmatpush1.bf16.msra.mxu0 0
  %1202 = vmatprep.subr.bf16.mxu0 0
  %1203 = vmatpush1.bf16.msra.mxu0 0
  %1204 = vmatprep.subr.bf16.mxu0 0
  %1205 = vmatpush1.bf16.msra.mxu0 0
  %1206 = vmatprep.subr.bf16.mxu0 0
  %1207 = vmatpush1.bf16.msra.mxu0 0
  %1208 = vmatprep.subr.bf16.mxu0 0
  %1209 = vmatpush1.bf16.msra.mxu0 0
  %1210 = vmatprep.subr.bf16.mxu0 0
  %1211 = vmatpush1.bf16.msra.mxu0 0
  %1212 = vmatprep.subr.bf16.mxu0 0
  %1213 = vmatpush1.bf16.msra.mxu0 0
  %1214 = vmatprep.subr.bf16.mxu0 0
  %1215 = vmatpush1.bf16.msra.mxu0 0
  %1216 = vmatprep.subr.bf16.mxu0 0
  %1217 = vmatpush1.bf16.msra.mxu0 0
  %1218 = vmatprep.subr.bf16.mxu0 0
  %1219 = vmatpush1.bf16.msra.mxu0 0
  %1220 = vmatprep.subr.bf16.mxu0 0
  %1221 = vmatpush1.bf16.msra.mxu0 0
  %1222 = vmatprep.subr.bf16.mxu0 0
  %1223 = vmatpush1.bf16.msra.mxu0 0
  %1224 = vmatprep.subr.bf16.mxu0 0
  %1225 = vmatpush1.bf16.msra.mxu0 0
  %1226 = vmatprep.subr.bf16.mxu0 0
  %1227 = vmatpush1.bf16.msra.mxu0 0
  %1228 = vmatprep.mubr.bf16.mxu0 0
  %1229 = vmatmul.mubr.bf16.gmra.mrb[0].mxu0 %v978
  %v1230 = vpop.f32.mrb[0].mxu0
  %v1231 = vadd.f32 0.0, %v1230
  %v1232 = vpop.f32.mrb[0].mxu0
  %v1233 = vpop.f32.mrb[0].mxu0
  %v1234 = vpop.f32.mrb[0].mxu0
  %1235 = vdwg.mxu0
  %v1236 = vadd.f32 %v1123, %v1231
  %v1237 = vtanh.pop %v1236
  %v1238 = vmul.f32 %v1237, %v32
  %v1239 = vadd.f32 %v1238, %v33
  %v1240 = vmul.f32 %v1239, %v966
  %1242 = vrot.lane.b32.xlu0 %v1239, 64
  %v1243 = vpop.permute.xlu0 %1242
  %v1245 = vmul.f32 %v1239, %v1243
  %1247 = vrot.lane.b32.xlu0 %v1245, 32
  %v1248 = vpop.permute.xlu0 %1247
  %v1250 = vadd.f32 %v1240, %v1248
  %v1251 = vtanh.pop %v1250
  %1253 = vrot.lane.b32.xlu0 %v1251, 64
  %v1254 = vpop.permute.xlu0 %1253
  %v1256 = vmul.f32 %v1239, %v1254
  %v1257 = vpack.c.bf16 %v1256, %v1256
  %1259 = vrot.lane.b32.xlu0 %v1257, 32
  %v1260 = vpop.permute.xlu0 %1259
  %v1262 = vsel %vm178, %v1260, 0
  %1264 = vmatprep.subr.bf16.mxu0 0
  %1265 = vmatpush1.bf16.msra.mxu0 %v399
  %1266 = vmatprep.subr.bf16.mxu0 0
  %1267 = vmatpush1.bf16.msra.mxu0 %v400
  %1268 = vmatprep.subr.bf16.mxu0 0
  %1269 = vmatpush1.bf16.msra.mxu0 0
  %1270 = vmatprep.subr.bf16.mxu0 0
  %1271 = vmatpush1.bf16.msra.mxu0 0
  %1272 = vmatprep.subr.bf16.mxu0 0
  %1273 = vmatpush1.bf16.msra.mxu0 0
  %1274 = vmatprep.subr.bf16.mxu0 0
  %1275 = vmatpush1.bf16.msra.mxu0 0
  %1276 = vmatprep.subr.bf16.mxu0 0
  %1277 = vmatpush1.bf16.msra.mxu0 0
  %1278 = vmatprep.subr.bf16.mxu0 0
  %1279 = vmatpush1.bf16.msra.mxu0 0
  %1280 = vmatprep.subr.bf16.mxu0 0
  %1281 = vmatpush1.bf16.msra.mxu0 0
  %1282 = vmatprep.subr.bf16.mxu0 0
  %1283 = vmatpush1.bf16.msra.mxu0 0
  %1284 = vmatprep.subr.bf16.mxu0 0
  %1285 = vmatpush1.bf16.msra.mxu0 0
  %1286 = vmatprep.subr.bf16.mxu0 0
  %1287 = vmatpush1.bf16.msra.mxu0 0
  %1288 = vmatprep.subr.bf16.mxu0 0
  %1289 = vmatpush1.bf16.msra.mxu0 0
  %1290 = vmatprep.subr.bf16.mxu0 0
  %1291 = vmatpush1.bf16.msra.mxu0 0
  %1292 = vmatprep.subr.bf16.mxu0 0
  %1293 = vmatpush1.bf16.msra.mxu0 0
  %1294 = vmatprep.subr.bf16.mxu0 0
  %1295 = vmatpush1.bf16.msra.mxu0 0
  %1296 = vmatprep.mubr.bf16.mxu0 0
  %1297 = vmatmul.mubr.bf16.gmra.mrb[0].mxu0 %v1262
  %v1298 = vpop.f32.mrb[0].mxu0
  %v1299 = vadd.f32 %v386, %v1298
  %v1300 = vpop.f32.mrb[0].mxu0
  %v1301 = vpop.f32.mrb[0].mxu0
  %v1302 = vpop.f32.mrb[0].mxu0
  %1303 = vdwg.mxu0
  %1304 = vmatprep.subr.bf16.mxu0 0
  %1305 = vmatpush1.bf16.msra.mxu0 %v174
  %1306 = vmatprep.subr.bf16.mxu0 0
  %1307 = vmatpush1.bf16.msra.mxu0 %v175
  %1308 = vmatprep.subr.bf16.mxu0 0
  %1309 = vmatpush1.bf16.msra.mxu0 0
  %1310 = vmatprep.subr.bf16.mxu0 0
  %1311 = vmatpush1.bf16.msra.mxu0 0
  %1312 = vmatprep.subr.bf16.mxu0 0
  %1313 = vmatpush1.bf16.msra.mxu0 0
  %1314 = vmatprep.subr.bf16.mxu0 0
  %1315 = vmatpush1.bf16.msra.mxu0 0
  %1316 = vmatprep.subr.bf16.mxu0 0
  %1317 = vmatpush1.bf16.msra.mxu0 0
  %1318 = vmatprep.subr.bf16.mxu0 0
  %1319 = vmatpush1.bf16.msra.mxu0 0
  %1320 = vmatprep.subr.bf16.mxu0 0
  %1321 = vmatpush1.bf16.msra.mxu0 0
  %1322 = vmatprep.subr.bf16.mxu0 0
  %1323 = vmatpush1.bf16.msra.mxu0 0
  %1324 = vmatprep.subr.bf16.mxu0 0
  %1325 = vmatpush1.bf16.msra.mxu0 0
  %1326 = vmatprep.subr.bf16.mxu0 0
  %1327 = vmatpush1.bf16.msra.mxu0 0
  %1328 = vmatprep.subr.bf16.mxu0 0
  %1329 = vmatpush1.bf16.msra.mxu0 0
  %1330 = vmatprep.subr.bf16.mxu0 0
  %1331 = vmatpush1.bf16.msra.mxu0 0
  %1332 = vmatprep.subr.bf16.mxu0 0
  %1333 = vmatpush1.bf16.msra.mxu0 0
  %1334 = vmatprep.subr.bf16.mxu0 0
  %1335 = vmatpush1.bf16.msra.mxu0 0
  %1336 = vmatprep.mubr.bf16.mxu0 0
  %1337 = vmatmul.mubr.bf16.gmra.mrb[0].mxu0 %v1086
  %v1338 = vpop.f32.mrb[0].mxu0
  %v1339 = vadd.f32 0.0, %v1338
  %v1340 = vpop.f32.mrb[0].mxu0
  %v1341 = vpop.f32.mrb[0].mxu0
  %v1342 = vpop.f32.mrb[0].mxu0
  %1343 = vdwg.mxu0
  %v1344 = vadd.f32 %v152, %v1339
  %v1345 = vtanh.pop %v1344
  %v1346 = vmul.f32 %v1345, %v32
  %v1347 = vadd.f32 %v1346, %v33
  %v1348 = vmul.f32 %v1347, %v1074
  %1350 = vrot.lane.b32.xlu0 %v1347, 64
  %v1351 = vpop.permute.xlu0 %1350
  %v1353 = vmul.f32 %v1347, %v1351
  %1355 = vrot.lane.b32.xlu0 %v1353, 32
  %v1356 = vpop.permute.xlu0 %1355
  %v1358 = vadd.f32 %v1348, %v1356
  %v1359 = vtanh.pop %v1358
  %1361 = vrot.lane.b32.xlu0 %v1359, 64
  %v1362 = vpop.permute.xlu0 %1361
  %v1364 = vmul.f32 %v1347, %v1362
  %v1365 = vpack.c.bf16 %v1364, %v1364
  %1367 = vrot.lane.b32.xlu0 %v1365, 32
  %v1368 = vpop.permute.xlu0 %1367
  %v1370 = vsel %vm178, %v1368, 0
  %1372 = vmatprep.subr.bf16.mxu0 0
  %1373 = vmatpush1.bf16.msra.mxu0 %v261
  %1374 = vmatprep.subr.bf16.mxu0 0
  %1375 = vmatpush1.bf16.msra.mxu0 %v262
  %1376 = vmatprep.subr.bf16.mxu0 0
  %1377 = vmatpush1.bf16.msra.mxu0 0
  %1378 = vmatprep.subr.bf16.mxu0 0
  %1379 = vmatpush1.bf16.msra.mxu0 0
  %1380 = vmatprep.subr.bf16.mxu0 0
  %1381 = vmatpush1.bf16.msra.mxu0 0
  %1382 = vmatprep.subr.bf16.mxu0 0
  %1383 = vmatpush1.bf16.msra.mxu0 0
  %1384 = vmatprep.subr.bf16.mxu0 0
  %1385 = vmatpush1.bf16.msra.mxu0 0
  %1386 = vmatprep.subr.bf16.mxu0 0
  %1387 = vmatpush1.bf16.msra.mxu0 0
  %1388 = vmatprep.subr.bf16.mxu0 0
  %1389 = vmatpush1.bf16.msra.mxu0 0
  %1390 = vmatprep.subr.bf16.mxu0 0
  %1391 = vmatpush1.bf16.msra.mxu0 0
  %1392 = vmatprep.subr.bf16.mxu0 0
  %1393 = vmatpush1.bf16.msra.mxu0 0
  %1394 = vmatprep.subr.bf16.mxu0 0
  %1395 = vmatpush1.bf16.msra.mxu0 0
  %1396 = vmatprep.subr.bf16.mxu0 0
  %1397 = vmatpush1.bf16.msra.mxu0 0
  %1398 = vmatprep.subr.bf16.mxu0 0
  %1399 = vmatpush1.bf16.msra.mxu0 0
  %1400 = vmatprep.subr.bf16.mxu0 0
  %1401 = vmatpush1.bf16.msra.mxu0 0
  %1402 = vmatprep.subr.bf16.mxu0 0
  %1403 = vmatpush1.bf16.msra.mxu0 0
  %1404 = vmatprep.mubr.bf16.mxu0 0
  %1405 = vmatmul.mubr.bf16.gmra.mrb[0].mxu0 %v1370
  %v1406 = vpop.f32.mrb[0].mxu0
  %v1407 = vadd.f32 %v248, %v1406
  %v1408 = vpop.f32.mrb[0].mxu0
  %v1409 = vpop.f32.mrb[0].mxu0
  %v1410 = vpop.f32.mrb[0].mxu0
  %1411 = vdwg.mxu0
  %1413 = vrot.lane.b32.xlu0 %v1195, 32
  %v1414 = vpop.permute.xlu0 %1413
  %v1416 = vsel %vm178, %v1414, 0
  %1418 = vmatprep.subr.bf16.mxu0 0
  %1419 = vmatpush1.bf16.msra.mxu0 %v562
  %1420 = vmatprep.subr.bf16.mxu0 0
  %1421 = vmatpush1.bf16.msra.mxu0 %v563
  %1422 = vmatprep.subr.bf16.mxu0 0
  %1423 = vmatpush1.bf16.msra.mxu0 0
  %1424 = vmatprep.subr.bf16.mxu0 0
  %1425 = vmatpush1.bf16.msra.mxu0 0
  %1426 = vmatprep.subr.bf16.mxu0 0
  %1427 = vmatpush1.bf16.msra.mxu0 0
  %1428 = vmatprep.subr.bf16.mxu0 0
  %1429 = vmatpush1.bf16.msra.mxu0 0
  %1430 = vmatprep.subr.bf16.mxu0 0
  %1431 = vmatpush1.bf16.msra.mxu0 0
  %1432 = vmatprep.subr.bf16.mxu0 0
  %1433 = vmatpush1.bf16.msra.mxu0 0
  %1434 = vmatprep.subr.bf16.mxu0 0
  %1435 = vmatpush1.bf16.msra.mxu0 0
  %1436 = vmatprep.subr.bf16.mxu0 0
  %1437 = vmatpush1.bf16.msra.mxu0 0
  %1438 = vmatprep.subr.bf16.mxu0 0
  %1439 = vmatpush1.bf16.msra.mxu0 0
  %1440 = vmatprep.subr.bf16.mxu0 0
  %1441 = vmatpush1.bf16.msra.mxu0 0
  %1442 = vmatprep.subr.bf16.mxu0 0
  %1443 = vmatpush1.bf16.msra.mxu0 0
  %1444 = vmatprep.subr.bf16.mxu0 0
  %1445 = vmatpush1.bf16.msra.mxu0 0
  %1446 = vmatprep.subr.bf16.mxu0 0
  %1447 = vmatpush1.bf16.msra.mxu0 0
  %1448 = vmatprep.subr.bf16.mxu0 0
  %1449 = vmatpush1.bf16.msra.mxu0 0
  %1450 = vmatprep.mubr.bf16.mxu0 0
  %1451 = vmatmul.mubr.bf16.gmra.mrb[0].mxu0 %v1416
  %v1452 = vpop.f32.mrb[0].mxu0
  %v1453 = vadd.f32 0.0, %v1452
  %v1454 = vpop.f32.mrb[0].mxu0
  %v1455 = vpop.f32.mrb[0].mxu0
  %v1456 = vpop.f32.mrb[0].mxu0
  %1457 = vdwg.mxu0
  %v1458 = vadd.f32 %v1299, %v1453
  %v1459 = vtanh.pop %v1458
  %v1460 = vmul.f32 %v1459, %v32
  %v1461 = vadd.f32 %v1460, %v33
  %v1462 = vmul.f32 %v1461, %v1188
  %1464 = vrot.lane.b32.xlu0 %v1461, 64
  %v1465 = vpop.permute.xlu0 %1464
  %v1467 = vmul.f32 %v1461, %v1465
  %1469 = vrot.lane.b32.xlu0 %v1467, 32
  %v1470 = vpop.permute.xlu0 %1469
  %v1472 = vadd.f32 %v1462, %v1470
  %v1473 = vtanh.pop %v1472
  %1475 = vrot.lane.b32.xlu0 %v1473, 64
  %v1476 = vpop.permute.xlu0 %1475
  %v1478 = vmul.f32 %v1461, %v1476
  %v1479 = vpack.c.bf16 %v1478, %v1478
  %1480 = vmatprep.subr.bf16.mxu0 0
  %1481 = vmatpush1.bf16.msra.mxu0 %v316
  %1482 = vmatprep.subr.bf16.mxu0 0
  %1483 = vmatpush1.bf16.msra.mxu0 %v317
  %1484 = vmatprep.subr.bf16.mxu0 0
  %1485 = vmatpush1.bf16.msra.mxu0 0
  %1486 = vmatprep.subr.bf16.mxu0 0
  %1487 = vmatpush1.bf16.msra.mxu0 0
  %1488 = vmatprep.subr.bf16.mxu0 0
  %1489 = vmatpush1.bf16.msra.mxu0 0
  %1490 = vmatprep.subr.bf16.mxu0 0
  %1491 = vmatpush1.bf16.msra.mxu0 0
  %1492 = vmatprep.subr.bf16.mxu0 0
  %1493 = vmatpush1.bf16.msra.mxu0 0
  %1494 = vmatprep.subr.bf16.mxu0 0
  %1495 = vmatpush1.bf16.msra.mxu0 0
  %1496 = vmatprep.subr.bf16.mxu0 0
  %1497 = vmatpush1.bf16.msra.mxu0 0
  %1498 = vmatprep.subr.bf16.mxu0 0
  %1499 = vmatpush1.bf16.msra.mxu0 0
  %1500 = vmatprep.subr.bf16.mxu0 0
  %1501 = vmatpush1.bf16.msra.mxu0 0
  %1502 = vmatprep.subr.bf16.mxu0 0
  %1503 = vmatpush1.bf16.msra.mxu0 0
  %1504 = vmatprep.subr.bf16.mxu0 0
  %1505 = vmatpush1.bf16.msra.mxu0 0
  %1506 = vmatprep.subr.bf16.mxu0 0
  %1507 = vmatpush1.bf16.msra.mxu0 0
  %1508 = vmatprep.subr.bf16.mxu0 0
  %1509 = vmatpush1.bf16.msra.mxu0 0
  %1510 = vmatprep.subr.bf16.mxu0 0
  %1511 = vmatpush1.bf16.msra.mxu0 0
  %1512 = vmatprep.mubr.bf16.mxu0 0
  %1513 = vmatmul.mubr.bf16.gmra.mrb[0].mxu0 %v1262
  %v1514 = vpop.f32.mrb[0].mxu0
  %v1515 = vadd.f32 0.0, %v1514
  %v1516 = vpop.f32.mrb[0].mxu0
  %v1517 = vpop.f32.mrb[0].mxu0
  %v1518 = vpop.f32.mrb[0].mxu0
  %1519 = vdwg.mxu0
  %v1520 = vadd.f32 %v1407, %v1515
  %v1521 = vtanh.pop %v1520
  %v1522 = vmul.f32 %v1521, %v32
  %v1523 = vadd.f32 %v1522, %v33
  %v1524 = vmul.f32 %v1523, %v1250
  %1526 = vrot.lane.b32.xlu0 %v1523, 64
  %v1527 = vpop.permute.xlu0 %1526
  %v1529 = vmul.f32 %v1523, %v1527
  %1531 = vrot.lane.b32.xlu0 %v1529, 32
  %v1532 = vpop.permute.xlu0 %1531
  %v1534 = vadd.f32 %v1524, %v1532
  %v1535 = vtanh.pop %v1534
  %1537 = vrot.lane.b32.xlu0 %v1535, 64
  %v1538 = vpop.permute.xlu0 %1537
  %v1540 = vmul.f32 %v1523, %v1538
  %v1541 = vpack.c.bf16 %v1540, %v1540
  %1543 = vrot.lane.b32.xlu0 %v1541, 32
  %v1544 = vpop.permute.xlu0 %1543
  %v1546 = vsel %vm178, %v1544, 0
  %1548 = vmatprep.subr.bf16.mxu0 0
  %1549 = vmatpush1.bf16.msra.mxu0 %v399
  %1550 = vmatprep.subr.bf16.mxu0 0
  %1551 = vmatpush1.bf16.msra.mxu0 %v400
  %1552 = vmatprep.subr.bf16.mxu0 0
  %1553 = vmatpush1.bf16.msra.mxu0 0
  %1554 = vmatprep.subr.bf16.mxu0 0
  %1555 = vmatpush1.bf16.msra.mxu0 0
  %1556 = vmatprep.subr.bf16.mxu0 0
  %1557 = vmatpush1.bf16.msra.mxu0 0
  %1558 = vmatprep.subr.bf16.mxu0 0
  %1559 = vmatpush1.bf16.msra.mxu0 0
  %1560 = vmatprep.subr.bf16.mxu0 0
  %1561 = vmatpush1.bf16.msra.mxu0 0
  %1562 = vmatprep.subr.bf16.mxu0 0
  %1563 = vmatpush1.bf16.msra.mxu0 0
  %1564 = vmatprep.subr.bf16.mxu0 0
  %1565 = vmatpush1.bf16.msra.mxu0 0
  %1566 = vmatprep.subr.bf16.mxu0 0
  %1567 = vmatpush1.bf16.msra.mxu0 0
  %1568 = vmatprep.subr.bf16.mxu0 0
  %1569 = vmatpush1.bf16.msra.mxu0 0
  %1570 = vmatprep.subr.bf16.mxu0 0
  %1571 = vmatpush1.bf16.msra.mxu0 0
  %1572 = vmatprep.subr.bf16.mxu0 0
  %1573 = vmatpush1.bf16.msra.mxu0 0
  %1574 = vmatprep.subr.bf16.mxu0 0
  %1575 = vmatpush1.bf16.msra.mxu0 0
  %1576 = vmatprep.subr.bf16.mxu0 0
  %1577 = vmatpush1.bf16.msra.mxu0 0
  %1578 = vmatprep.subr.bf16.mxu0 0
  %1579 = vmatpush1.bf16.msra.mxu0 0
  %1580 = vmatprep.mubr.bf16.mxu0 0
  %1581 = vmatmul.mubr.bf16.gmra.mrb[0].mxu0 %v1546
  %v1582 = vpop.f32.mrb[0].mxu0
  %v1583 = vadd.f32 %v386, %v1582
  %v1584 = vpop.f32.mrb[0].mxu0
  %v1585 = vpop.f32.mrb[0].mxu0
  %v1586 = vpop.f32.mrb[0].mxu0
  %1587 = vdwg.mxu0
  %1588 = vmatprep.subr.bf16.mxu0 0
  %1589 = vmatpush1.bf16.msra.mxu0 %v174
  %1590 = vmatprep.subr.bf16.mxu0 0
  %1591 = vmatpush1.bf16.msra.mxu0 %v175
  %1592 = vmatprep.subr.bf16.mxu0 0
  %1593 = vmatpush1.bf16.msra.mxu0 0
  %1594 = vmatprep.subr.bf16.mxu0 0
  %1595 = vmatpush1.bf16.msra.mxu0 0
  %1596 = vmatprep.subr.bf16.mxu0 0
  %1597 = vmatpush1.bf16.msra.mxu0 0
  %1598 = vmatprep.subr.bf16.mxu0 0
  %1599 = vmatpush1.bf16.msra.mxu0 0
  %1600 = vmatprep.subr.bf16.mxu0 0
  %1601 = vmatpush1.bf16.msra.mxu0 0
  %1602 = vmatprep.subr.bf16.mxu0 0
  %1603 = vmatpush1.bf16.msra.mxu0 0
  %1604 = vmatprep.subr.bf16.mxu0 0
  %1605 = vmatpush1.bf16.msra.mxu0 0
  %1606 = vmatprep.subr.bf16.mxu0 0
  %1607 = vmatpush1.bf16.msra.mxu0 0
  %1608 = vmatprep.subr.bf16.mxu0 0
  %1609 = vmatpush1.bf16.msra.mxu0 0
  %1610 = vmatprep.subr.bf16.mxu0 0
  %1611 = vmatpush1.bf16.msra.mxu0 0
  %1612 = vmatprep.subr.bf16.mxu0 0
  %1613 = vmatpush1.bf16.msra.mxu0 0
  %1614 = vmatprep.subr.bf16.mxu0 0
  %1615 = vmatpush1.bf16.msra.mxu0 0
  %1616 = vmatprep.subr.bf16.mxu0 0
  %1617 = vmatpush1.bf16.msra.mxu0 0
  %1618 = vmatprep.subr.bf16.mxu0 0
  %1619 = vmatpush1.bf16.msra.mxu0 0
  %1620 = vmatprep.mubr.bf16.mxu0 0
  %1621 = vmatmul.mubr.bf16.gmra.mrb[0].mxu0 %v1370
  %v1622 = vpop.f32.mrb[0].mxu0
  %v1623 = vadd.f32 0.0, %v1622
  %v1624 = vpop.f32.mrb[0].mxu0
  %v1625 = vpop.f32.mrb[0].mxu0
  %v1626 = vpop.f32.mrb[0].mxu0
  %1627 = vdwg.mxu0
  %v1628 = vadd.f32 %v155, %v1623
  %v1629 = vtanh.pop %v1628
  %v1630 = vmul.f32 %v1629, %v32
  %v1631 = vadd.f32 %v1630, %v33
  %v1632 = vmul.f32 %v1631, %v1358
  %1634 = vrot.lane.b32.xlu0 %v1631, 64
  %v1635 = vpop.permute.xlu0 %1634
  %v1637 = vmul.f32 %v1631, %v1635
  %1639 = vrot.lane.b32.xlu0 %v1637, 32
  %v1640 = vpop.permute.xlu0 %1639
  %v1642 = vadd.f32 %v1632, %v1640
  %v1643 = vtanh.pop %v1642
  %1645 = vrot.lane.b32.xlu0 %v1643, 64
  %v1646 = vpop.permute.xlu0 %1645
  %v1648 = vmul.f32 %v1631, %v1646
  %v1649 = vpack.c.bf16 %v1648, %v1648
  %1651 = vrot.lane.b32.xlu0 %v1649, 32
  %v1652 = vpop.permute.xlu0 %1651
  %v1654 = vsel %vm178, %v1652, 0
  %1656 = vmatprep.subr.bf16.mxu0 0
  %1657 = vmatpush1.bf16.msra.mxu0 %v261
  %1658 = vmatprep.subr.bf16.mxu0 0
  %1659 = vmatpush1.bf16.msra.mxu0 %v262
  %1660 = vmatprep.subr.bf16.mxu0 0
  %1661 = vmatpush1.bf16.msra.mxu0 0
  %1662 = vmatprep.subr.bf16.mxu0 0
  %1663 = vmatpush1.bf16.msra.mxu0 0
  %1664 = vmatprep.subr.bf16.mxu0 0
  %1665 = vmatpush1.bf16.msra.mxu0 0
  %1666 = vmatprep.subr.bf16.mxu0 0
  %1667 = vmatpush1.bf16.msra.mxu0 0
  %1668 = vmatprep.subr.bf16.mxu0 0
  %1669 = vmatpush1.bf16.msra.mxu0 0
  %1670 = vmatprep.subr.bf16.mxu0 0
  %1671 = vmatpush1.bf16.msra.mxu0 0
  %1672 = vmatprep.subr.bf16.mxu0 0
  %1673 = vmatpush1.bf16.msra.mxu0 0
  %1674 = vmatprep.subr.bf16.mxu0 0
  %1675 = vmatpush1.bf16.msra.mxu0 0
  %1676 = vmatprep.subr.bf16.mxu0 0
  %1677 = vmatpush1.bf16.msra.mxu0 0
  %1678 = vmatprep.subr.bf16.mxu0 0
  %1679 = vmatpush1.bf16.msra.mxu0 0
  %1680 = vmatprep.subr.bf16.mxu0 0
  %1681 = vmatpush1.bf16.msra.mxu0 0
  %1682 = vmatprep.subr.bf16.mxu0 0
  %1683 = vmatpush1.bf16.msra.mxu0 0
  %1684 = vmatprep.subr.bf16.mxu0 0
  %1685 = vmatpush1.bf16.msra.mxu0 0
  %1686 = vmatprep.subr.bf16.mxu0 0
  %1687 = vmatpush1.bf16.msra.mxu0 0
  %1688 = vmatprep.mubr.bf16.mxu0 0
  %1689 = vmatmul.mubr.bf16.gmra.mrb[0].mxu0 %v1654
  %v1690 = vpop.f32.mrb[0].mxu0
  %v1691 = vadd.f32 %v248, %v1690
  %v1692 = vpop.f32.mrb[0].mxu0
  %v1693 = vpop.f32.mrb[0].mxu0
  %v1694 = vpop.f32.mrb[0].mxu0
  %1695 = vdwg.mxu0
  %1697 = vrot.lane.b32.xlu0 %v1479, 32
  %v1698 = vpop.permute.xlu0 %1697
  %v1700 = vsel %vm178, %v1698, 0
  %1702 = vmatprep.subr.bf16.mxu0 0
  %1703 = vmatpush1.bf16.msra.mxu0 %v562
  %1704 = vmatprep.subr.bf16.mxu0 0
  %1705 = vmatpush1.bf16.msra.mxu0 %v563
  %1706 = vmatprep.subr.bf16.mxu0 0
  %1707 = vmatpush1.bf16.msra.mxu0 0
  %1708 = vmatprep.subr.bf16.mxu0 0
  %1709 = vmatpush1.bf16.msra.mxu0 0
  %1710 = vmatprep.subr.bf16.mxu0 0
  %1711 = vmatpush1.bf16.msra.mxu0 0
  %1712 = vmatprep.subr.bf16.mxu0 0
  %1713 = vmatpush1.bf16.msra.mxu0 0
  %1714 = vmatprep.subr.bf16.mxu0 0
  %1715 = vmatpush1.bf16.msra.mxu0 0
  %1716 = vmatprep.subr.bf16.mxu0 0
  %1717 = vmatpush1.bf16.msra.mxu0 0
  %1718 = vmatprep.subr.bf16.mxu0 0
  %1719 = vmatpush1.bf16.msra.mxu0 0
  %1720 = vmatprep.subr.bf16.mxu0 0
  %1721 = vmatpush1.bf16.msra.mxu0 0
  %1722 = vmatprep.subr.bf16.mxu0 0
  %1723 = vmatpush1.bf16.msra.mxu0 0
  %1724 = vmatprep.subr.bf16.mxu0 0
  %1725 = vmatpush1.bf16.msra.mxu0 0
  %1726 = vmatprep.subr.bf16.mxu0 0
  %1727 = vmatpush1.bf16.msra.mxu0 0
  %1728 = vmatprep.subr.bf16.mxu0 0
  %1729 = vmatpush1.bf16.msra.mxu0 0
  %1730 = vmatprep.subr.bf16.mxu0 0
  %1731 = vmatpush1.bf16.msra.mxu0 0
  %1732 = vmatprep.subr.bf16.mxu0 0
  %1733 = vmatpush1.bf16.msra.mxu0 0
  %1734 = vmatprep.mubr.bf16.mxu0 0
  %1735 = vmatmul.mubr.bf16.gmra.mrb[0].mxu0 %v1700
  %v1736 = vpop.f32.mrb[0].mxu0
  %v1737 = vadd.f32 0.0, %v1736
  %v1738 = vpop.f32.mrb[0].mxu0
  %v1739 = vpop.f32.mrb[0].mxu0
  %v1740 = vpop.f32.mrb[0].mxu0
  %1741 = vdwg.mxu0
  %v1742 = vadd.f32 %v1583, %v1737
  %v1743 = vtanh.pop %v1742
  %v1744 = vmul.f32 %v1743, %v32
  %v1745 = vadd.f32 %v1744, %v33
  %v1746 = vmul.f32 %v1745, %v1472
  %1748 = vrot.lane.b32.xlu0 %v1745, 64
  %v1749 = vpop.permute.xlu0 %1748
  %v1751 = vmul.f32 %v1745, %v1749
  %1753 = vrot.lane.b32.xlu0 %v1751, 32
  %v1754 = vpop.permute.xlu0 %1753
  %v1756 = vadd.f32 %v1746, %v1754
  %v1757 = vtanh.pop %v1756
  %1759 = vrot.lane.b32.xlu0 %v1757, 64
  %v1760 = vpop.permute.xlu0 %1759
  %v1762 = vmul.f32 %v1745, %v1760
  %v1763 = vpack.c.bf16 %v1762, %v1762
  %1764 = vmatprep.subr.bf16.mxu0 0
  %1765 = vmatpush1.bf16.msra.mxu0 %v316
  %1766 = vmatprep.subr.bf16.mxu0 0
  %1767 = vmatpush1.bf16.msra.mxu0 %v317
  %1768 = vmatprep.subr.bf16.mxu0 0
  %1769 = vmatpush1.bf16.msra.mxu0 0
  %1770 = vmatprep.subr.bf16.mxu0 0
  %1771 = vmatpush1.bf16.msra.mxu0 0
  %1772 = vmatprep.subr.bf16.mxu0 0
  %1773 = vmatpush1.bf16.msra.mxu0 0
  %1774 = vmatprep.subr.bf16.mxu0 0
  %1775 = vmatpush1.bf16.msra.mxu0 0
  %1776 = vmatprep.subr.bf16.mxu0 0
  %1777 = vmatpush1.bf16.msra.mxu0 0
  %1778 = vmatprep.subr.bf16.mxu0 0
  %1779 = vmatpush1.bf16.msra.mxu0 0
  %1780 = vmatprep.subr.bf16.mxu0 0
  %1781 = vmatpush1.bf16.msra.mxu0 0
  %1782 = vmatprep.subr.bf16.mxu0 0
  %1783 = vmatpush1.bf16.msra.mxu0 0
  %1784 = vmatprep.subr.bf16.mxu0 0
  %1785 = vmatpush1.bf16.msra.mxu0 0
  %1786 = vmatprep.subr.bf16.mxu0 0
  %1787 = vmatpush1.bf16.msra.mxu0 0
  %1788 = vmatprep.subr.bf16.mxu0 0
  %1789 = vmatpush1.bf16.msra.mxu0 0
  %1790 = vmatprep.subr.bf16.mxu0 0
  %1791 = vmatpush1.bf16.msra.mxu0 0
  %1792 = vmatprep.subr.bf16.mxu0 0
  %1793 = vmatpush1.bf16.msra.mxu0 0
  %1794 = vmatprep.subr.bf16.mxu0 0
  %1795 = vmatpush1.bf16.msra.mxu0 0
  %1796 = vmatprep.mubr.bf16.mxu0 0
  %1797 = vmatmul.mubr.bf16.gmra.mrb[0].mxu0 %v1546
  %v1798 = vpop.f32.mrb[0].mxu0
  %v1799 = vadd.f32 0.0, %v1798
  %v1800 = vpop.f32.mrb[0].mxu0
  %v1801 = vpop.f32.mrb[0].mxu0
  %v1802 = vpop.f32.mrb[0].mxu0
  %1803 = vdwg.mxu0
  %v1804 = vadd.f32 %v1691, %v1799
  %v1805 = vtanh.pop %v1804
  %v1806 = vmul.f32 %v1805, %v32
  %v1807 = vadd.f32 %v1806, %v33
  %v1808 = vmul.f32 %v1807, %v1534
  %1810 = vrot.lane.b32.xlu0 %v1807, 64
  %v1811 = vpop.permute.xlu0 %1810
  %v1813 = vmul.f32 %v1807, %v1811
  %1815 = vrot.lane.b32.xlu0 %v1813, 32
  %v1816 = vpop.permute.xlu0 %1815
  %v1818 = vadd.f32 %v1808, %v1816
  %v1819 = vtanh.pop %v1818
  %1821 = vrot.lane.b32.xlu0 %v1819, 64
  %v1822 = vpop.permute.xlu0 %1821
  %v1824 = vmul.f32 %v1807, %v1822
  %v1825 = vpack.c.bf16 %v1824, %v1824
  %1827 = vrot.lane.b32.xlu0 %v1825, 32
  %v1828 = vpop.permute.xlu0 %1827
  %v1830 = vsel %vm178, %v1828, 0
  %1832 = vmatprep.subr.bf16.mxu0 0
  %1833 = vmatpush1.bf16.msra.mxu0 %v399
  %1834 = vmatprep.subr.bf16.mxu0 0
  %1835 = vmatpush1.bf16.msra.mxu0 %v400
  %1836 = vmatprep.subr.bf16.mxu0 0
  %1837 = vmatpush1.bf16.msra.mxu0 0
  %1838 = vmatprep.subr.bf16.mxu0 0
  %1839 = vmatpush1.bf16.msra.mxu0 0
  %1840 = vmatprep.subr.bf16.mxu0 0
  %1841 = vmatpush1.bf16.msra.mxu0 0
  %1842 = vmatprep.subr.bf16.mxu0 0
  %1843 = vmatpush1.bf16.msra.mxu0 0
  %1844 = vmatprep.subr.bf16.mxu0 0
  %1845 = vmatpush1.bf16.msra.mxu0 0
  %1846 = vmatprep.subr.bf16.mxu0 0
  %1847 = vmatpush1.bf16.msra.mxu0 0
  %1848 = vmatprep.subr.bf16.mxu0 0
  %1849 = vmatpush1.bf16.msra.mxu0 0
  %1850 = vmatprep.subr.bf16.mxu0 0
  %1851 = vmatpush1.bf16.msra.mxu0 0
  %1852 = vmatprep.subr.bf16.mxu0 0
  %1853 = vmatpush1.bf16.msra.mxu0 0
  %1854 = vmatprep.subr.bf16.mxu0 0
  %1855 = vmatpush1.bf16.msra.mxu0 0
  %1856 = vmatprep.subr.bf16.mxu0 0
  %1857 = vmatpush1.bf16.msra.mxu0 0
  %1858 = vmatprep.subr.bf16.mxu0 0
  %1859 = vmatpush1.bf16.msra.mxu0 0
  %1860 = vmatprep.subr.bf16.mxu0 0
  %1861 = vmatpush1.bf16.msra.mxu0 0
  %1862 = vmatprep.subr.bf16.mxu0 0
  %1863 = vmatpush1.bf16.msra.mxu0 0
  %1864 = vmatprep.mubr.bf16.mxu0 0
  %1865 = vmatmul.mubr.bf16.gmra.mrb[0].mxu0 %v1830
  %v1866 = vpop.f32.mrb[0].mxu0
  %v1867 = vadd.f32 %v386, %v1866
  %v1868 = vpop.f32.mrb[0].mxu0
  %v1869 = vpop.f32.mrb[0].mxu0
  %v1870 = vpop.f32.mrb[0].mxu0
  %1871 = vdwg.mxu0
  %1872 = vmatprep.subr.bf16.mxu0 0
  %1873 = vmatpush1.bf16.msra.mxu0 %v174
  %1874 = vmatprep.subr.bf16.mxu0 0
  %1875 = vmatpush1.bf16.msra.mxu0 %v175
  %1876 = vmatprep.subr.bf16.mxu0 0
  %1877 = vmatpush1.bf16.msra.mxu0 0
  %1878 = vmatprep.subr.bf16.mxu0 0
  %1879 = vmatpush1.bf16.msra.mxu0 0
  %1880 = vmatprep.subr.bf16.mxu0 0
  %1881 = vmatpush1.bf16.msra.mxu0 0
  %1882 = vmatprep.subr.bf16.mxu0 0
  %1883 = vmatpush1.bf16.msra.mxu0 0
  %1884 = vmatprep.subr.bf16.mxu0 0
  %1885 = vmatpush1.bf16.msra.mxu0 0
  %1886 = vmatprep.subr.bf16.mxu0 0
  %1887 = vmatpush1.bf16.msra.mxu0 0
  %1888 = vmatprep.subr.bf16.mxu0 0
  %1889 = vmatpush1.bf16.msra.mxu0 0
  %1890 = vmatprep.subr.bf16.mxu0 0
  %1891 = vmatpush1.bf16.msra.mxu0 0
  %1892 = vmatprep.subr.bf16.mxu0 0
  %1893 = vmatpush1.bf16.msra.mxu0 0
  %1894 = vmatprep.subr.bf16.mxu0 0
  %1895 = vmatpush1.bf16.msra.mxu0 0
  %1896 = vmatprep.subr.bf16.mxu0 0
  %1897 = vmatpush1.bf16.msra.mxu0 0
  %1898 = vmatprep.subr.bf16.mxu0 0
  %1899 = vmatpush1.bf16.msra.mxu0 0
  %1900 = vmatprep.subr.bf16.mxu0 0
  %1901 = vmatpush1.bf16.msra.mxu0 0
  %1902 = vmatprep.subr.bf16.mxu0 0
  %1903 = vmatpush1.bf16.msra.mxu0 0
  %1904 = vmatprep.mubr.bf16.mxu0 0
  %1905 = vmatmul.mubr.bf16.gmra.mrb[0].mxu0 %v1654
  %v1906 = vpop.f32.mrb[0].mxu0
  %v1907 = vadd.f32 0.0, %v1906
  %v1908 = vpop.f32.mrb[0].mxu0
  %v1909 = vpop.f32.mrb[0].mxu0
  %v1910 = vpop.f32.mrb[0].mxu0
  %1911 = vdwg.mxu0
  %v1912 = vadd.f32 %v160, %v1907
  %v1913 = vtanh.pop %v1912
  %v1914 = vmul.f32 %v1913, %v32
  %v1915 = vadd.f32 %v1914, %v33
  %v1916 = vmul.f32 %v1915, %v1642
  %1918 = vrot.lane.b32.xlu0 %v1915, 64
  %v1919 = vpop.permute.xlu0 %1918
  %v1921 = vmul.f32 %v1915, %v1919
  %1923 = vrot.lane.b32.xlu0 %v1921, 32
  %v1924 = vpop.permute.xlu0 %1923
  %v1926 = vadd.f32 %v1916, %v1924
  %v1927 = vtanh.pop %v1926
  %1929 = vrot.lane.b32.xlu0 %v1927, 64
  %v1930 = vpop.permute.xlu0 %1929
  %v1932 = vmul.f32 %v1915, %v1930
  %v1933 = vpack.c.bf16 %v1932, %v1932
  %1935 = vrot.lane.b32.xlu0 %v1933, 32
  %v1936 = vpop.permute.xlu0 %1935
  %v1938 = vsel %vm178, %v1936, 0
  %1940 = vmatprep.subr.bf16.mxu0 0
  %1941 = vmatpush1.bf16.msra.mxu0 %v261
  %1942 = vmatprep.subr.bf16.mxu0 0
  %1943 = vmatpush1.bf16.msra.mxu0 %v262
  %1944 = vmatprep.subr.bf16.mxu0 0
  %1945 = vmatpush1.bf16.msra.mxu0 0
  %1946 = vmatprep.subr.bf16.mxu0 0
  %1947 = vmatpush1.bf16.msra.mxu0 0
  %1948 = vmatprep.subr.bf16.mxu0 0
  %1949 = vmatpush1.bf16.msra.mxu0 0
  %1950 = vmatprep.subr.bf16.mxu0 0
  %1951 = vmatpush1.bf16.msra.mxu0 0
  %1952 = vmatprep.subr.bf16.mxu0 0
  %1953 = vmatpush1.bf16.msra.mxu0 0
  %1954 = vmatprep.subr.bf16.mxu0 0
  %1955 = vmatpush1.bf16.msra.mxu0 0
  %1956 = vmatprep.subr.bf16.mxu0 0
  %1957 = vmatpush1.bf16.msra.mxu0 0
  %1958 = vmatprep.subr.bf16.mxu0 0
  %1959 = vmatpush1.bf16.msra.mxu0 0
  %1960 = vmatprep.subr.bf16.mxu0 0
  %1961 = vmatpush1.bf16.msra.mxu0 0
  %1962 = vmatprep.subr.bf16.mxu0 0
  %1963 = vmatpush1.bf16.msra.mxu0 0
  %1964 = vmatprep.subr.bf16.mxu0 0
  %1965 = vmatpush1.bf16.msra.mxu0 0
  %1966 = vmatprep.subr.bf16.mxu0 0
  %1967 = vmatpush1.bf16.msra.mxu0 0
  %1968 = vmatprep.subr.bf16.mxu0 0
  %1969 = vmatpush1.bf16.msra.mxu0 0
  %1970 = vmatprep.subr.bf16.mxu0 0
  %1971 = vmatpush1.bf16.msra.mxu0 0
  %1972 = vmatprep.mubr.bf16.mxu0 0
  %1973 = vmatmul.mubr.bf16.gmra.mrb[0].mxu0 %v1938
  %v1974 = vpop.f32.mrb[0].mxu0
  %v1975 = vadd.f32 %v248, %v1974
  %v1976 = vpop.f32.mrb[0].mxu0
  %v1977 = vpop.f32.mrb[0].mxu0
  %v1978 = vpop.f32.mrb[0].mxu0
  %1979 = vdwg.mxu0
  %1981 = vrot.lane.b32.xlu0 %v1763, 32
  %v1982 = vpop.permute.xlu0 %1981
  %v1984 = vsel %vm178, %v1982, 0
  %1986 = vmatprep.subr.bf16.mxu0 0
  %1987 = vmatpush1.bf16.msra.mxu0 %v562
  %1988 = vmatprep.subr.bf16.mxu0 0
  %1989 = vmatpush1.bf16.msra.mxu0 %v563
  %1990 = vmatprep.subr.bf16.mxu0 0
  %1991 = vmatpush1.bf16.msra.mxu0 0
  %1992 = vmatprep.subr.bf16.mxu0 0
  %1993 = vmatpush1.bf16.msra.mxu0 0
  %1994 = vmatprep.subr.bf16.mxu0 0
  %1995 = vmatpush1.bf16.msra.mxu0 0
  %1996 = vmatprep.subr.bf16.mxu0 0
  %1997 = vmatpush1.bf16.msra.mxu0 0
  %1998 = vmatprep.subr.bf16.mxu0 0
  %1999 = vmatpush1.bf16.msra.mxu0 0
  %2000 = vmatprep.subr.bf16.mxu0 0
  %2001 = vmatpush1.bf16.msra.mxu0 0
  %2002 = vmatprep.subr.bf16.mxu0 0
  %2003 = vmatpush1.bf16.msra.mxu0 0
  %2004 = vmatprep.subr.bf16.mxu0 0
  %2005 = vmatpush1.bf16.msra.mxu0 0
  %2006 = vmatprep.subr.bf16.mxu0 0
  %2007 = vmatpush1.bf16.msra.mxu0 0
  %2008 = vmatprep.subr.bf16.mxu0 0
  %2009 = vmatpush1.bf16.msra.mxu0 0
  %2010 = vmatprep.subr.bf16.mxu0 0
  %2011 = vmatpush1.bf16.msra.mxu0 0
  %2012 = vmatprep.subr.bf16.mxu0 0
  %2013 = vmatpush1.bf16.msra.mxu0 0
  %2014 = vmatprep.subr.bf16.mxu0 0
  %2015 = vmatpush1.bf16.msra.mxu0 0
  %2016 = vmatprep.subr.bf16.mxu0 0
  %2017 = vmatpush1.bf16.msra.mxu0 0
  %2018 = vmatprep.mubr.bf16.mxu0 0
  %2019 = vmatmul.mubr.bf16.gmra.mrb[0].mxu0 %v1984
  %v2020 = vpop.f32.mrb[0].mxu0
  %v2021 = vadd.f32 0.0, %v2020
  %v2022 = vpop.f32.mrb[0].mxu0
  %v2023 = vpop.f32.mrb[0].mxu0
  %v2024 = vpop.f32.mrb[0].mxu0
  %2025 = vdwg.mxu0
  %v2026 = vadd.f32 %v1867, %v2021
  %v2027 = vtanh.pop %v2026
  %v2028 = vmul.f32 %v2027, %v32
  %v2029 = vadd.f32 %v2028, %v33
  %v2030 = vmul.f32 %v2029, %v1756
  %2032 = vrot.lane.b32.xlu0 %v2029, 64
  %v2033 = vpop.permute.xlu0 %2032
  %v2035 = vmul.f32 %v2029, %v2033
  %2037 = vrot.lane.b32.xlu0 %v2035, 32
  %v2038 = vpop.permute.xlu0 %2037
  %v2040 = vadd.f32 %v2030, %v2038
  %v2041 = vtanh.pop %v2040
  %2043 = vrot.lane.b32.xlu0 %v2041, 64
  %v2044 = vpop.permute.xlu0 %2043
  %v2046 = vmul.f32 %v2029, %v2044
  %v2047 = vpack.c.bf16 %v2046, %v2046
  %2048 = vmatprep.subr.bf16.mxu0 0
  %2049 = vmatpush1.bf16.msra.mxu0 %v316
  %2050 = vmatprep.subr.bf16.mxu0 0
  %2051 = vmatpush1.bf16.msra.mxu0 %v317
  %2052 = vmatprep.subr.bf16.mxu0 0
  %2053 = vmatpush1.bf16.msra.mxu0 0
  %2054 = vmatprep.subr.bf16.mxu0 0
  %2055 = vmatpush1.bf16.msra.mxu0 0
  %2056 = vmatprep.subr.bf16.mxu0 0
  %2057 = vmatpush1.bf16.msra.mxu0 0
  %2058 = vmatprep.subr.bf16.mxu0 0
  %2059 = vmatpush1.bf16.msra.mxu0 0
  %2060 = vmatprep.subr.bf16.mxu0 0
  %2061 = vmatpush1.bf16.msra.mxu0 0
  %2062 = vmatprep.subr.bf16.mxu0 0
  %2063 = vmatpush1.bf16.msra.mxu0 0
  %2064 = vmatprep.subr.bf16.mxu0 0
  %2065 = vmatpush1.bf16.msra.mxu0 0
  %2066 = vmatprep.subr.bf16.mxu0 0
  %2067 = vmatpush1.bf16.msra.mxu0 0
  %2068 = vmatprep.subr.bf16.mxu0 0
  %2069 = vmatpush1.bf16.msra.mxu0 0
  %2070 = vmatprep.subr.bf16.mxu0 0
  %2071 = vmatpush1.bf16.msra.mxu0 0
  %2072 = vmatprep.subr.bf16.mxu0 0
  %2073 = vmatpush1.bf16.msra.mxu0 0
  %2074 = vmatprep.subr.bf16.mxu0 0
  %2075 = vmatpush1.bf16.msra.mxu0 0
  %2076 = vmatprep.subr.bf16.mxu0 0
  %2077 = vmatpush1.bf16.msra.mxu0 0
  %2078 = vmatprep.subr.bf16.mxu0 0
  %2079 = vmatpush1.bf16.msra.mxu0 0
  %2080 = vmatprep.mubr.bf16.mxu0 0
  %2081 = vmatmul.mubr.bf16.gmra.mrb[0].mxu0 %v1830
  %v2082 = vpop.f32.mrb[0].mxu0
  %v2083 = vadd.f32 0.0, %v2082
  %v2084 = vpop.f32.mrb[0].mxu0
  %v2085 = vpop.f32.mrb[0].mxu0
  %v2086 = vpop.f32.mrb[0].mxu0
  %2087 = vdwg.mxu0
  %v2088 = vadd.f32 %v1975, %v2083
  %v2089 = vtanh.pop %v2088
  %v2090 = vmul.f32 %v2089, %v32
  %v2091 = vadd.f32 %v2090, %v33
  %v2092 = vmul.f32 %v2091, %v1818
  %2094 = vrot.lane.b32.xlu0 %v2091, 64
  %v2095 = vpop.permute.xlu0 %2094
  %v2097 = vmul.f32 %v2091, %v2095
  %2099 = vrot.lane.b32.xlu0 %v2097, 32
  %v2100 = vpop.permute.xlu0 %2099
  %v2102 = vadd.f32 %v2092, %v2100
  %v2103 = vtanh.pop %v2102
  %2105 = vrot.lane.b32.xlu0 %v2103, 64
  %v2106 = vpop.permute.xlu0 %2105
  %v2108 = vmul.f32 %v2091, %v2106
  %v2109 = vpack.c.bf16 %v2108, %v2108
  %2111 = vrot.lane.b32.xlu0 %v2109, 32
  %v2112 = vpop.permute.xlu0 %2111
  %v2114 = vsel %vm178, %v2112, 0
  %2116 = vmatprep.subr.bf16.mxu0 0
  %2117 = vmatpush1.bf16.msra.mxu0 %v399
  %2118 = vmatprep.subr.bf16.mxu0 0
  %2119 = vmatpush1.bf16.msra.mxu0 %v400
  %2120 = vmatprep.subr.bf16.mxu0 0
  %2121 = vmatpush1.bf16.msra.mxu0 0
  %2122 = vmatprep.subr.bf16.mxu0 0
  %2123 = vmatpush1.bf16.msra.mxu0 0
  %2124 = vmatprep.subr.bf16.mxu0 0
  %2125 = vmatpush1.bf16.msra.mxu0 0
  %2126 = vmatprep.subr.bf16.mxu0 0
  %2127 = vmatpush1.bf16.msra.mxu0 0
  %2128 = vmatprep.subr.bf16.mxu0 0
  %2129 = vmatpush1.bf16.msra.mxu0 0
  %2130 = vmatprep.subr.bf16.mxu0 0
  %2131 = vmatpush1.bf16.msra.mxu0 0
  %2132 = vmatprep.subr.bf16.mxu0 0
  %2133 = vmatpush1.bf16.msra.mxu0 0
  %2134 = vmatprep.subr.bf16.mxu0 0
  %2135 = vmatpush1.bf16.msra.mxu0 0
  %2136 = vmatprep.subr.bf16.mxu0 0
  %2137 = vmatpush1.bf16.msra.mxu0 0
  %2138 = vmatprep.subr.bf16.mxu0 0
  %2139 = vmatpush1.bf16.msra.mxu0 0
  %2140 = vmatprep.subr.bf16.mxu0 0
  %2141 = vmatpush1.bf16.msra.mxu0 0
  %2142 = vmatprep.subr.bf16.mxu0 0
  %2143 = vmatpush1.bf16.msra.mxu0 0
  %2144 = vmatprep.subr.bf16.mxu0 0
  %2145 = vmatpush1.bf16.msra.mxu0 0
  %2146 = vmatprep.subr.bf16.mxu0 0
  %2147 = vmatpush1.bf16.msra.mxu0 0
  %2148 = vmatprep.mubr.bf16.mxu0 0
  %2149 = vmatmul.mubr.bf16.gmra.mrb[0].mxu0 %v2114
  %v2150 = vpop.f32.mrb[0].mxu0
  %v2151 = vadd.f32 %v386, %v2150
  %v2152 = vpop.f32.mrb[0].mxu0
  %v2153 = vpop.f32.mrb[0].mxu0
  %v2154 = vpop.f32.mrb[0].mxu0
  %2155 = vdwg.mxu0
  %2156 = vmatprep.subr.bf16.mxu0 0
  %2157 = vmatpush1.bf16.msra.mxu0 %v174
  %2158 = vmatprep.subr.bf16.mxu0 0
  %2159 = vmatpush1.bf16.msra.mxu0 %v175
  %2160 = vmatprep.subr.bf16.mxu0 0
  %2161 = vmatpush1.bf16.msra.mxu0 0
  %2162 = vmatprep.subr.bf16.mxu0 0
  %2163 = vmatpush1.bf16.msra.mxu0 0
  %2164 = vmatprep.subr.bf16.mxu0 0
  %2165 = vmatpush1.bf16.msra.mxu0 0
  %2166 = vmatprep.subr.bf16.mxu0 0
  %2167 = vmatpush1.bf16.msra.mxu0 0
  %2168 = vmatprep.subr.bf16.mxu0 0
  %2169 = vmatpush1.bf16.msra.mxu0 0
  %2170 = vmatprep.subr.bf16.mxu0 0
  %2171 = vmatpush1.bf16.msra.mxu0 0
  %2172 = vmatprep.subr.bf16.mxu0 0
  %2173 = vmatpush1.bf16.msra.mxu0 0
  %2174 = vmatprep.subr.bf16.mxu0 0
  %2175 = vmatpush1.bf16.msra.mxu0 0
  %2176 = vmatprep.subr.bf16.mxu0 0
  %2177 = vmatpush1.bf16.msra.mxu0 0
  %2178 = vmatprep.subr.bf16.mxu0 0
  %2179 = vmatpush1.bf16.msra.mxu0 0
  %2180 = vmatprep.subr.bf16.mxu0 0
  %2181 = vmatpush1.bf16.msra.mxu0 0
  %2182 = vmatprep.subr.bf16.mxu0 0
  %2183 = vmatpush1.bf16.msra.mxu0 0
  %2184 = vmatprep.subr.bf16.mxu0 0
  %2185 = vmatpush1.bf16.msra.mxu0 0
  %2186 = vmatprep.subr.bf16.mxu0 0
  %2187 = vmatpush1.bf16.msra.mxu0 0
  %2188 = vmatprep.mubr.bf16.mxu0 0
  %2189 = vmatmul.mubr.bf16.gmra.mrb[0].mxu0 %v1938
  %v2190 = vpop.f32.mrb[0].mxu0
  %v2191 = vadd.f32 0.0, %v2190
  %v2192 = vpop.f32.mrb[0].mxu0
  %v2193 = vpop.f32.mrb[0].mxu0
  %v2194 = vpop.f32.mrb[0].mxu0
  %2195 = vdwg.mxu0
  %v2196 = vadd.f32 %v163, %v2191
  %v2197 = vtanh.pop %v2196
  %v2198 = vmul.f32 %v2197, %v32
  %v2199 = vadd.f32 %v2198, %v33
  %v2200 = vmul.f32 %v2199, %v1926
  %2202 = vrot.lane.b32.xlu0 %v2199, 64
  %v2203 = vpop.permute.xlu0 %2202
  %v2205 = vmul.f32 %v2199, %v2203
  %2207 = vrot.lane.b32.xlu0 %v2205, 32
  %v2208 = vpop.permute.xlu0 %2207
  %v2210 = vadd.f32 %v2200, %v2208
  %v2211 = vtanh.pop %v2210
  %2213 = vrot.lane.b32.xlu0 %v2211, 64
  %v2214 = vpop.permute.xlu0 %2213
  %v2216 = vmul.f32 %v2199, %v2214
  %v2217 = vpack.c.bf16 %v2216, %v2216
  %2219 = vrot.lane.b32.xlu0 %v2217, 32
  %v2220 = vpop.permute.xlu0 %2219
  %v2222 = vsel %vm178, %v2220, 0
  %2224 = vmatprep.subr.bf16.mxu0 0
  %2225 = vmatpush1.bf16.msra.mxu0 %v261
  %2226 = vmatprep.subr.bf16.mxu0 0
  %2227 = vmatpush1.bf16.msra.mxu0 %v262
  %2228 = vmatprep.subr.bf16.mxu0 0
  %2229 = vmatpush1.bf16.msra.mxu0 0
  %2230 = vmatprep.subr.bf16.mxu0 0
  %2231 = vmatpush1.bf16.msra.mxu0 0
  %2232 = vmatprep.subr.bf16.mxu0 0
  %2233 = vmatpush1.bf16.msra.mxu0 0
  %2234 = vmatprep.subr.bf16.mxu0 0
  %2235 = vmatpush1.bf16.msra.mxu0 0
  %2236 = vmatprep.subr.bf16.mxu0 0
  %2237 = vmatpush1.bf16.msra.mxu0 0
  %2238 = vmatprep.subr.bf16.mxu0 0
  %2239 = vmatpush1.bf16.msra.mxu0 0
  %2240 = vmatprep.subr.bf16.mxu0 0
  %2241 = vmatpush1.bf16.msra.mxu0 0
  %2242 = vmatprep.subr.bf16.mxu0 0
  %2243 = vmatpush1.bf16.msra.mxu0 0
  %2244 = vmatprep.subr.bf16.mxu0 0
  %2245 = vmatpush1.bf16.msra.mxu0 0
  %2246 = vmatprep.subr.bf16.mxu0 0
  %2247 = vmatpush1.bf16.msra.mxu0 0
  %2248 = vmatprep.subr.bf16.mxu0 0
  %2249 = vmatpush1.bf16.msra.mxu0 0
  %2250 = vmatprep.subr.bf16.mxu0 0
  %2251 = vmatpush1.bf16.msra.mxu0 0
  %2252 = vmatprep.subr.bf16.mxu0 0
  %2253 = vmatpush1.bf16.msra.mxu0 0
  %2254 = vmatprep.subr.bf16.mxu0 0
  %2255 = vmatpush1.bf16.msra.mxu0 0
  %2256 = vmatprep.mubr.bf16.mxu0 0
  %2257 = vmatmul.mubr.bf16.gmra.mrb[0].mxu0 %v2222
  %v2258 = vpop.f32.mrb[0].mxu0
  %v2259 = vadd.f32 %v248, %v2258
  %v2260 = vpop.f32.mrb[0].mxu0
  %v2261 = vpop.f32.mrb[0].mxu0
  %v2262 = vpop.f32.mrb[0].mxu0
  %2263 = vdwg.mxu0
  %2265 = vrot.lane.b32.xlu0 %v2047, 32
  %v2266 = vpop.permute.xlu0 %2265
  %v2268 = vsel %vm178, %v2266, 0
  %2270 = vmatprep.subr.bf16.mxu0 0
  %2271 = vmatpush1.bf16.msra.mxu0 %v562
  %2272 = vmatprep.subr.bf16.mxu0 0
  %2273 = vmatpush1.bf16.msra.mxu0 %v563
  %2274 = vmatprep.subr.bf16.mxu0 0
  %2275 = vmatpush1.bf16.msra.mxu0 0
  %2276 = vmatprep.subr.bf16.mxu0 0
  %2277 = vmatpush1.bf16.msra.mxu0 0
  %2278 = vmatprep.subr.bf16.mxu0 0
  %2279 = vmatpush1.bf16.msra.mxu0 0
  %2280 = vmatprep.subr.bf16.mxu0 0
  %2281 = vmatpush1.bf16.msra.mxu0 0
  %2282 = vmatprep.subr.bf16.mxu0 0
  %2283 = vmatpush1.bf16.msra.mxu0 0
  %2284 = vmatprep.subr.bf16.mxu0 0
  %2285 = vmatpush1.bf16.msra.mxu0 0
  %2286 = vmatprep.subr.bf16.mxu0 0
  %2287 = vmatpush1.bf16.msra.mxu0 0
  %2288 = vmatprep.subr.bf16.mxu0 0
  %2289 = vmatpush1.bf16.msra.mxu0 0
  %2290 = vmatprep.subr.bf16.mxu0 0
  %2291 = vmatpush1.bf16.msra.mxu0 0
  %2292 = vmatprep.subr.bf16.mxu0 0
  %2293 = vmatpush1.bf16.msra.mxu0 0
  %2294 = vmatprep.subr.bf16.mxu0 0
  %2295 = vmatpush1.bf16.msra.mxu0 0
  %2296 = vmatprep.subr.bf16.mxu0 0
  %2297 = vmatpush1.bf16.msra.mxu0 0
  %2298 = vmatprep.subr.bf16.mxu0 0
  %2299 = vmatpush1.bf16.msra.mxu0 0
  %2300 = vmatprep.subr.bf16.mxu0 0
  %2301 = vmatpush1.bf16.msra.mxu0 0
  %2302 = vmatprep.mubr.bf16.mxu0 0
  %2303 = vmatmul.mubr.bf16.gmra.mrb[0].mxu0 %v2268
  %v2304 = vpop.f32.mrb[0].mxu0
  %v2305 = vadd.f32 0.0, %v2304
  %v2306 = vpop.f32.mrb[0].mxu0
  %v2307 = vpop.f32.mrb[0].mxu0
  %v2308 = vpop.f32.mrb[0].mxu0
  %2309 = vdwg.mxu0
  %v2310 = vadd.f32 %v2151, %v2305
  %v2311 = vtanh.pop %v2310
  %v2312 = vmul.f32 %v2311, %v32
  %v2313 = vadd.f32 %v2312, %v33
  %v2314 = vmul.f32 %v2313, %v2040
  %2316 = vrot.lane.b32.xlu0 %v2313, 64
  %v2317 = vpop.permute.xlu0 %2316
  %v2319 = vmul.f32 %v2313, %v2317
  %2321 = vrot.lane.b32.xlu0 %v2319, 32
  %v2322 = vpop.permute.xlu0 %2321
  %v2324 = vadd.f32 %v2314, %v2322
  %v2325 = vtanh.pop %v2324
  %2327 = vrot.lane.b32.xlu0 %v2325, 64
  %v2328 = vpop.permute.xlu0 %2327
  %v2330 = vmul.f32 %v2313, %v2328
  %v2331 = vpack.c.bf16 %v2330, %v2330
  %2332 = vmatprep.subr.bf16.mxu0 0
  %2333 = vmatpush1.bf16.msra.mxu0 %v316
  %2334 = vmatprep.subr.bf16.mxu0 0
  %2335 = vmatpush1.bf16.msra.mxu0 %v317
  %2336 = vmatprep.subr.bf16.mxu0 0
  %2337 = vmatpush1.bf16.msra.mxu0 0
  %2338 = vmatprep.subr.bf16.mxu0 0
  %2339 = vmatpush1.bf16.msra.mxu0 0
  %2340 = vmatprep.subr.bf16.mxu0 0
  %2341 = vmatpush1.bf16.msra.mxu0 0
  %2342 = vmatprep.subr.bf16.mxu0 0
  %2343 = vmatpush1.bf16.msra.mxu0 0
  %2344 = vmatprep.subr.bf16.mxu0 0
  %2345 = vmatpush1.bf16.msra.mxu0 0
  %2346 = vmatprep.subr.bf16.mxu0 0
  %2347 = vmatpush1.bf16.msra.mxu0 0
  %2348 = vmatprep.subr.bf16.mxu0 0
  %2349 = vmatpush1.bf16.msra.mxu0 0
  %2350 = vmatprep.subr.bf16.mxu0 0
  %2351 = vmatpush1.bf16.msra.mxu0 0
  %2352 = vmatprep.subr.bf16.mxu0 0
  %2353 = vmatpush1.bf16.msra.mxu0 0
  %2354 = vmatprep.subr.bf16.mxu0 0
  %2355 = vmatpush1.bf16.msra.mxu0 0
  %2356 = vmatprep.subr.bf16.mxu0 0
  %2357 = vmatpush1.bf16.msra.mxu0 0
  %2358 = vmatprep.subr.bf16.mxu0 0
  %2359 = vmatpush1.bf16.msra.mxu0 0
  %2360 = vmatprep.subr.bf16.mxu0 0
  %2361 = vmatpush1.bf16.msra.mxu0 0
  %2362 = vmatprep.subr.bf16.mxu0 0
  %2363 = vmatpush1.bf16.msra.mxu0 0
  %2364 = vmatprep.mubr.bf16.mxu0 0
  %2365 = vmatmul.mubr.bf16.gmra.mrb[0].mxu0 %v2114
  %v2366 = vpop.f32.mrb[0].mxu0
  %v2367 = vadd.f32 0.0, %v2366
  %v2368 = vpop.f32.mrb[0].mxu0
  %v2369 = vpop.f32.mrb[0].mxu0
  %v2370 = vpop.f32.mrb[0].mxu0
  %2371 = vdwg.mxu0
  %v2372 = vadd.f32 %v2259, %v2367
  %v2373 = vtanh.pop %v2372
  %v2374 = vmul.f32 %v2373, %v32
  %v2375 = vadd.f32 %v2374, %v33
  %v2376 = vmul.f32 %v2375, %v2102
  %2378 = vrot.lane.b32.xlu0 %v2375, 64
  %v2379 = vpop.permute.xlu0 %2378
  %v2381 = vmul.f32 %v2375, %v2379
  %2383 = vrot.lane.b32.xlu0 %v2381, 32
  %v2384 = vpop.permute.xlu0 %2383
  %v2386 = vadd.f32 %v2376, %v2384
  %v2387 = vtanh.pop %v2386
  %2389 = vrot.lane.b32.xlu0 %v2387, 64
  %v2390 = vpop.permute.xlu0 %2389
  %v2392 = vmul.f32 %v2375, %v2390
  %v2393 = vpack.c.bf16 %v2392, %v2392
  %2395 = vrot.lane.b32.xlu0 %v2393, 32
  %v2396 = vpop.permute.xlu0 %2395
  %v2398 = vsel %vm178, %v2396, 0
  %2400 = vmatprep.subr.bf16.mxu0 0
  %2401 = vmatpush1.bf16.msra.mxu0 %v399
  %2402 = vmatprep.subr.bf16.mxu0 0
  %2403 = vmatpush1.bf16.msra.mxu0 %v400
  %2404 = vmatprep.subr.bf16.mxu0 0
  %2405 = vmatpush1.bf16.msra.mxu0 0
  %2406 = vmatprep.subr.bf16.mxu0 0
  %2407 = vmatpush1.bf16.msra.mxu0 0
  %2408 = vmatprep.subr.bf16.mxu0 0
  %2409 = vmatpush1.bf16.msra.mxu0 0
  %2410 = vmatprep.subr.bf16.mxu0 0
  %2411 = vmatpush1.bf16.msra.mxu0 0
  %2412 = vmatprep.subr.bf16.mxu0 0
  %2413 = vmatpush1.bf16.msra.mxu0 0
  %2414 = vmatprep.subr.bf16.mxu0 0
  %2415 = vmatpush1.bf16.msra.mxu0 0
  %2416 = vmatprep.subr.bf16.mxu0 0
  %2417 = vmatpush1.bf16.msra.mxu0 0
  %2418 = vmatprep.subr.bf16.mxu0 0
  %2419 = vmatpush1.bf16.msra.mxu0 0
  %2420 = vmatprep.subr.bf16.mxu0 0
  %2421 = vmatpush1.bf16.msra.mxu0 0
  %2422 = vmatprep.subr.bf16.mxu0 0
  %2423 = vmatpush1.bf16.msra.mxu0 0
  %2424 = vmatprep.subr.bf16.mxu0 0
  %2425 = vmatpush1.bf16.msra.mxu0 0
  %2426 = vmatprep.subr.bf16.mxu0 0
  %2427 = vmatpush1.bf16.msra.mxu0 0
  %2428 = vmatprep.subr.bf16.mxu0 0
  %2429 = vmatpush1.bf16.msra.mxu0 0
  %2430 = vmatprep.subr.bf16.mxu0 0
  %2431 = vmatpush1.bf16.msra.mxu0 0
  %2432 = vmatprep.mubr.bf16.mxu0 0
  %2433 = vmatmul.mubr.bf16.gmra.mrb[0].mxu0 %v2398
  %v2434 = vpop.f32.mrb[0].mxu0
  %v2435 = vadd.f32 %v386, %v2434
  %v2436 = vpop.f32.mrb[0].mxu0
  %v2437 = vpop.f32.mrb[0].mxu0
  %v2438 = vpop.f32.mrb[0].mxu0
  %2439 = vdwg.mxu0
  %2441 = vrot.lane.b32.xlu0 %v2331, 32
  %v2442 = vpop.permute.xlu0 %2441
  %v2444 = vsel %vm178, %v2442, 0
  %2446 = vmatprep.subr.bf16.mxu0 0
  %2447 = vmatpush1.bf16.msra.mxu0 %v562
  %2448 = vmatprep.subr.bf16.mxu0 0
  %2449 = vmatpush1.bf16.msra.mxu0 %v563
  %2450 = vmatprep.subr.bf16.mxu0 0
  %2451 = vmatpush1.bf16.msra.mxu0 0
  %2452 = vmatprep.subr.bf16.mxu0 0
  %2453 = vmatpush1.bf16.msra.mxu0 0
  %2454 = vmatprep.subr.bf16.mxu0 0
  %2455 = vmatpush1.bf16.msra.mxu0 0
  %2456 = vmatprep.subr.bf16.mxu0 0
  %2457 = vmatpush1.bf16.msra.mxu0 0
  %2458 = vmatprep.subr.bf16.mxu0 0
  %2459 = vmatpush1.bf16.msra.mxu0 0
  %2460 = vmatprep.subr.bf16.mxu0 0
  %2461 = vmatpush1.bf16.msra.mxu0 0
  %2462 = vmatprep.subr.bf16.mxu0 0
  %2463 = vmatpush1.bf16.msra.mxu0 0
  %2464 = vmatprep.subr.bf16.mxu0 0
  %2465 = vmatpush1.bf16.msra.mxu0 0
  %2466 = vmatprep.subr.bf16.mxu0 0
  %2467 = vmatpush1.bf16.msra.mxu0 0
  %2468 = vmatprep.subr.bf16.mxu0 0
  %2469 = vmatpush1.bf16.msra.mxu0 0
  %2470 = vmatprep.subr.bf16.mxu0 0
  %2471 = vmatpush1.bf16.msra.mxu0 0
  %2472 = vmatprep.subr.bf16.mxu0 0
  %2473 = vmatpush1.bf16.msra.mxu0 0
  %2474 = vmatprep.subr.bf16.mxu0 0
  %2475 = vmatpush1.bf16.msra.mxu0 0
  %2476 = vmatprep.subr.bf16.mxu0 0
  %2477 = vmatpush1.bf16.msra.mxu0 0
  %2478 = vmatprep.mubr.bf16.mxu0 0
  %2479 = vmatmul.mubr.bf16.gmra.mrb[0].mxu0 %v2444
  %v2480 = vpop.f32.mrb[0].mxu0
  %v2481 = vadd.f32 0.0, %v2480
  %v2482 = vpop.f32.mrb[0].mxu0
  %v2483 = vpop.f32.mrb[0].mxu0
  %v2484 = vpop.f32.mrb[0].mxu0
  %2485 = vdwg.mxu0
  %v2486 = vadd.f32 %v2435, %v2481
  %v2487 = vtanh.pop %v2486
  %v2488 = vmul.f32 %v2487, %v32
  %v2489 = vadd.f32 %v2488, %v33
  %v2490 = vmul.f32 %v2489, %v2324
  %2492 = vrot.lane.b32.xlu0 %v2489, 64
  %v2493 = vpop.permute.xlu0 %2492
  %v2495 = vmul.f32 %v2489, %v2493
  %2497 = vrot.lane.b32.xlu0 %v2495, 32
  %v2498 = vpop.permute.xlu0 %2497
  %v2500 = vadd.f32 %v2490, %v2498
  %v2501 = vtanh.pop %v2500
  %2503 = vrot.lane.b32.xlu0 %v2501, 64
  %v2504 = vpop.permute.xlu0 %2503
  %v2506 = vmul.f32 %v2489, %v2504
  %v2507 = vld [vmem:[%s5] sm:$0xff]
  %v2508 = vld [vmem:[%s5 + $0x8] sm:$0xff]
  %v2509 = vld [vmem:[%s5 + $0x10] sm:$0xff]
  %v2510 = vld [vmem:[%s5 + $0x18] sm:$0xff]
  %v2511 = vld [vmem:[%s6] sm:$0x1]
  %v2513 = vlaneseq
  %v2514 = vshrl.u32 %v2513, 7
  %v2515 = vsub.s32 0, %v2514
  %v2516 = vrot.slane %v2511, %v2515
  %2519 = vrot.lane.b32.xlu0 %v2506, 32
  %v2520 = vpop.permute.xlu0 %2519
  %v2521 = vsel %vm178, %v2520, 0
  %2523 = vmatprep.subr.mxu0 0.0
  %2524 = vmatpush1.msra.mxu0 %v2507
  %2525 = vmatprep.subr.mxu0 0.0
  %2526 = vmatpush1.msra.mxu0 %v2508
  %2527 = vmatprep.subr.mxu0 0.0
  %2528 = vmatpush1.msra.mxu0 %v2509
  %2529 = vmatprep.subr.mxu0 0.0
  %2530 = vmatpush1.msra.mxu0 %v2510
  %2531 = vmatprep.subr.mxu0 0.0
  %2532 = vmatpush1.msra.mxu0 0.0
  %2533 = vmatprep.subr.mxu0 0.0
  %2534 = vmatpush1.msra.mxu0 0.0
  %2535 = vmatprep.subr.mxu0 0.0
  %2536 = vmatpush1.msra.mxu0 0.0
  %2537 = vmatprep.subr.mxu0 0.0
  %2538 = vmatpush1.msra.mxu0 0.0
  %2539 = vmatprep.subr.mxu0 0.0
  %2540 = vmatpush1.msra.mxu0 0.0
  %2541 = vmatprep.subr.mxu0 0.0
  %2542 = vmatpush1.msra.mxu0 0.0
  %2543 = vmatprep.subr.mxu0 0.0
  %2544 = vmatpush1.msra.mxu0 0.0
  %2545 = vmatprep.subr.mxu0 0.0
  %2546 = vmatpush1.msra.mxu0 0.0
  %2547 = vmatprep.subr.mxu0 0.0
  %2548 = vmatpush1.msra.mxu0 0.0
  %2549 = vmatprep.subr.mxu0 0.0
  %2550 = vmatpush1.msra.mxu0 0.0
  %2551 = vmatprep.subr.mxu0 0.0
  %2552 = vmatpush1.msra.mxu0 0.0
  %2553 = vmatprep.subr.mxu0 0.0
  %2554 = vmatpush1.msra.mxu0 0.0
  %2555 = vmatprep.subr.mxu0 0.0
  %2556 = vmatpush1.msra.mxu0 0.0
  %2557 = vmatprep.subr.mxu0 0.0
  %2558 = vmatpush1.msra.mxu0 0.0
  %2559 = vmatprep.subr.mxu0 0.0
  %2560 = vmatpush1.msra.mxu0 0.0
  %2561 = vmatprep.subr.mxu0 0.0
  %2562 = vmatpush1.msra.mxu0 0.0
  %2563 = vmatprep.subr.mxu0 0.0
  %2564 = vmatpush1.msra.mxu0 0.0
  %2565 = vmatprep.subr.mxu0 0.0
  %2566 = vmatpush1.msra.mxu0 0.0
  %2567 = vmatprep.subr.mxu0 0.0
  %2568 = vmatpush1.msra.mxu0 0.0
  %2569 = vmatprep.subr.mxu0 0.0
  %2570 = vmatpush1.msra.mxu0 0.0
  %2571 = vmatprep.subr.mxu0 0.0
  %2572 = vmatpush1.msra.mxu0 0.0
  %2573 = vmatprep.subr.mxu0 0.0
  %2574 = vmatpush1.msra.mxu0 0.0
  %2575 = vmatprep.subr.mxu0 0.0
  %2576 = vmatpush1.msra.mxu0 0.0
  %2577 = vmatprep.subr.mxu0 0.0
  %2578 = vmatpush1.msra.mxu0 0.0
  %2579 = vmatprep.subr.mxu0 0.0
  %2580 = vmatpush1.msra.mxu0 0.0
  %2581 = vmatprep.subr.mxu0 0.0
  %2582 = vmatpush1.msra.mxu0 0.0
  %2583 = vmatprep.subr.mxu0 0.0
  %2584 = vmatpush1.msra.mxu0 0.0
  %2585 = vmatprep.subr.mxu0 0.0
  %2586 = vmatpush1.msra.mxu0 0.0
  %2587 = vmatprep.mubr.f32.mxu0 0.0
  %2588 = vmatmul.mubr.f32.gmra.mrb[0].mxu0 %v2521
  %v2589 = vpop.f32.mrb[0].mxu0
  %v2590 = vadd.f32 %v2516, %v2589
  %v2591 = vpop.f32.mrb[0].mxu0
  %2592 = vdwg.mxu0
  %vm2593 = vcmask 15360
  %2594 = vst.msk [vmem:[%s7] sm:$0xff] %vm2593, %v2590
  // Predicated region
  $region30: #{lstm_conditioning_forward.1} parent=0 // pred_check
    _
  $region31: #{lstm_conditioning_forward.1} parent=0 // pred_check_branch
    %2596 = sbr.rel (0) target = $region33
  $region32: #{lstm_conditioning_forward.1} parent=0 // pred_region
    _
  $region33: #{lstm_conditioning_forward.1} parent=0 // pred_fallthru
    _
  // Predicated region
  $region34: #{lstm_conditioning_forward.1} parent=0 // pred_check
    _
  $region35: #{lstm_conditioning_forward.1} parent=0 // pred_check_branch
    %2598 = sbr.rel (0) target = $region37
  $region36: #{lstm_conditioning_forward.1} parent=0 // pred_region
    _
  $region37: #{lstm_conditioning_forward.1} parent=0 // pred_fallthru
    _

</llo_original>
